<compile_context>
chip_gen: v7x
topology: tpu7x:2x2x1
jax: 0.10.0
libtpu: 0.0.40
codegen_flags: <defaults>
</compile_context>

<pallas_src>
import functools

import jax
import jax.numpy as jnp
from jax.experimental import pallas as pl
from jax.experimental.pallas import tpu as pltpu


def _round_up(x, m):
    return (x + m - 1) // m * m


def _tensorcores_per_chip():
    # v7x parts expose 2 TensorCores per chip; v5e/v6e have 1.  Keep the batch
    # split off unless we are confident a second core exists.
    try:
        kind = jax.devices()[0].device_kind.lower()
    except Exception:
        return 1
    return 2 if "v7" in kind else 1


def _physical_vmem_bytes():
    try:
        return int(pltpu.get_tpu_info().vmem_capacity_bytes)
    except Exception:
        return 64 * 1024 * 1024  # conservative: v7x has 64 MiB per TensorCore


# ---------------------------------------------------------------------------
# Pallas LSTM layer kernel: grid = (batch_chunks, time_chunks).
# Time axis is sequential ("arbitrary"); h/c state is carried in f32 VMEM
# scratch across time chunks.  Each grid step runs `time_chunk` unrolled steps.
# ---------------------------------------------------------------------------
def _lstm_chunk_kernel(gx_ref, h0_ref, c0_ref, whh_hbm_ref,
                       out_ref, hT_ref, cT_ref,
                       whh_sc, h_sc, c_sc, dma_sem,
                       *, time_chunk, seq_len, h_pad, compute_dtype):
    tc = pl.program_id(1)

    @pl.when(tc == 0)
    def _():
        # Stage the fused recurrent weight once per batch chunk into a single
        # VMEM buffer (no double-buffering of a constant tensor) and load the
        # initial state.
        cp = pltpu.make_async_copy(whh_hbm_ref, whh_sc, dma_sem)
        cp.start()
        cp.wait()
        h_sc[...] = h0_ref[...].astype(jnp.float32)
        c_sc[...] = c0_ref[...].astype(jnp.float32)

    w = whh_sc[...]                              # (H_pad, 4*H_pad) compute dtype

    def step(t, carry):
        h_prev, c_prev = carry                   # f32 (Bc, H_pad)
        # One fused (Bc,H) x (H,4H) MXU matmul per time step; gx (bf16) is
        # upcast to f32 on load and added to the f32 matmul result.  Gate
        # slices are lane-aligned because h_pad is a multiple of 128.
        gates = gx_ref[t].astype(jnp.float32) + jnp.dot(
            h_prev.astype(compute_dtype), w, preferred_element_type=jnp.float32)

        i_g = jax.nn.sigmoid(gates[:, 0 * h_pad:1 * h_pad])
        f_g = jax.nn.sigmoid(gates[:, 1 * h_pad:2 * h_pad])
        g_g = jnp.tanh(gates[:, 2 * h_pad:3 * h_pad])
        o_g = jax.nn.sigmoid(gates[:, 3 * h_pad:4 * h_pad])

        c_new = f_g * c_prev + i_g * g_g
        h_new = o_g * jnp.tanh(c_new)
        out_ref[t] = h_new.astype(out_ref.dtype)

        # Capture the final state exactly at the last *valid* step; padded
        # tail steps (>= seq_len) then run unmasked without corrupting hT/cT,
        # which keeps selects off the serial h -> h critical path.
        @pl.when(tc * time_chunk + t == seq_len - 1)
        def _():
            hT_ref[...] = h_new.astype(hT_ref.dtype)
            cT_ref[...] = c_new.astype(cT_ref.dtype)

        return h_new, c_new

    h_fin, c_fin = jax.lax.fori_loop(
        0, time_chunk, step, (h_sc[...], c_sc[...]), unroll=True)
    h_sc[...] = h_fin
    c_sc[...] = c_fin


def lstm_layer(x, h0, c0, w_ih, w_hh, b_ih, b_hh, *,
               time_chunk=32, compute_dtype=jnp.bfloat16, out_dtype=None):
    """Single-layer LSTM over a full sequence.

    x:  (T, B, Din) time-major (like nn.LSTM default)
    h0, c0: (1, B, H) float32
    w_ih: (4H, Din), w_hh: (4H, H), b_ih/b_hh: (4H,)  (PyTorch gate order i,f,g,o)
    Returns (out (T, B, H) out_dtype, hT (1, B, H) f32, cT (1, B, H) f32).
    """
    T, B, Din = x.shape
    H = w_hh.shape[1]
    assert w_ih.shape[0] == 4 * H and w_ih.shape[1] == Din
    out_dtype = compute_dtype if out_dtype is None else out_dtype

    H_pad = max(_round_up(H, 128), 128)
    B_pad = max(_round_up(B, 8), 8)
    cd_bytes = jnp.dtype(compute_dtype).itemsize
    out_bytes = jnp.dtype(out_dtype).itemsize

    # --- Hoisted input projection: one GEMM over all T*B rows.  Gates are laid
    # out lane-contiguously at offsets k*H_pad so the kernel never transposes.
    w_ih_g = jnp.transpose(w_ih.reshape(4, H, Din), (2, 0, 1))        # (Din,4,H)
    w_ih_g = jnp.pad(w_ih_g, ((0, 0), (0, 0), (0, H_pad - H)))
    wih_t = w_ih_g.reshape(Din, 4 * H_pad).astype(compute_dtype)
    bias = jnp.pad((b_ih + b_hh).astype(jnp.float32).reshape(4, H),
                   ((0, 0), (0, H_pad - H))).reshape(4 * H_pad)

    gx = jnp.dot(x.reshape(T * B, Din).astype(compute_dtype), wih_t,
                 preferred_element_type=jnp.float32) + bias           # f32
    gx = gx.astype(compute_dtype).reshape(T, B, 4 * H_pad)            # bf16 stream

    # --- Fused recurrent weight (H_pad, 4*H_pad): gate k occupies lanes
    # [k*H_pad, k*H_pad + H); padded rows/lanes are zero (keeps padded h/c at 0).
    w_hh_g = jnp.transpose(w_hh.reshape(4, H, H), (2, 0, 1))          # (H,4,H)
    w_hh_g = jnp.pad(w_hh_g, ((0, H_pad - H), (0, 0), (0, H_pad - H)))
    whh_fused = w_hh_g.reshape(H_pad, 4 * H_pad).astype(compute_dtype)

    # --- Batch split only on 2-TC parts and only when each chunk still fills
    # >=128 MXU rows; otherwise it just serializes the recurrence.
    nb = 1
    if _tensorcores_per_chip() >= 2 and B_pad % 16 == 0 and (B_pad // 2) >= 128:
        nb = 2
    Bc = B_pad // nb

    # --- Time chunking: amortize per-grid-step overhead; shrink the chunk
    # until double-buffered gx/out + single-buffered W_hh fit the VMEM budget.
    vmem_cap = _physical_vmem_bytes()
    budget = int(vmem_cap * 0.75)

    def vmem_needed(tt_):
        gx_b = 2 * tt_ * Bc * 4 * H_pad * cd_bytes       # double-buffered gx
        out_b = 2 * tt_ * Bc * H_pad * out_bytes         # double-buffered out
        whh_b = H_pad * 4 * H_pad * cd_bytes             # single-buffered W_hh
        small = 10 * Bc * H_pad * 4                      # h0/c0/hT/cT blocks + h/c scratch
        return gx_b + out_b + whh_b + small

    tt = max(min(time_chunk, T), 1)
    while tt > 8 and vmem_needed(tt) > budget:
        tt = max(tt // 2, 8)
    T_pad = _round_up(T, tt)
    nt = T_pad // tt
    vmem_limit = int(min(max(vmem_needed(tt) * 3 // 2, 16 * 2**20), vmem_cap))

    # --- Pad activations / state (padded rows/lanes sliced off afterwards).
    if T_pad != T or B_pad != B:
        gx = jnp.pad(gx, ((0, T_pad - T), (0, B_pad - B), (0, 0)))
    h0p = jnp.pad(h0.reshape(B, H).astype(jnp.float32),
                  ((0, B_pad - B), (0, H_pad - H)))
    c0p = jnp.pad(c0.reshape(B, H).astype(jnp.float32),
                  ((0, B_pad - B), (0, H_pad - H)))

    kernel = functools.partial(_lstm_chunk_kernel, time_chunk=tt, seq_len=T,
                               h_pad=H_pad, compute_dtype=compute_dtype)

    cost = pl.CostEstimate(
        flops=2 * T_pad * B_pad * H_pad * 4 * H_pad,
        transcendentals=5 * T_pad * B_pad * H_pad,
        bytes_accessed=int(gx.size) * cd_bytes
                       + T_pad * B_pad * H_pad * out_bytes
                       + int(whh_fused.size) * cd_bytes
                       + 6 * B_pad * H_pad * 4)

    out, hT, cT = pl.pallas_call(
        kernel,
        out_shape=(jax.ShapeDtypeStruct((T_pad, B_pad, H_pad), out_dtype),
                   jax.ShapeDtypeStruct((B_pad, H_pad), jnp.float32),
                   jax.ShapeDtypeStruct((B_pad, H_pad), jnp.float32)),
        grid_spec=pltpu.PrefetchScalarGridSpec(
            num_scalar_prefetch=0,
            grid=(nb, nt),
            in_specs=[
                pl.BlockSpec((tt, Bc, 4 * H_pad), lambda b, t: (t, b, 0)),  # gx
                pl.BlockSpec((Bc, H_pad), lambda b, t: (b, 0)),             # h0
                pl.BlockSpec((Bc, H_pad), lambda b, t: (b, 0)),             # c0
                pl.BlockSpec(memory_space=pl.ANY),                          # W_hh (HBM)
            ],
            out_specs=[
                pl.BlockSpec((tt, Bc, H_pad), lambda b, t: (t, b, 0)),      # seq h
                pl.BlockSpec((Bc, H_pad), lambda b, t: (b, 0)),             # final h
                pl.BlockSpec((Bc, H_pad), lambda b, t: (b, 0)),             # final c
            ],
            scratch_shapes=[pltpu.VMEM((H_pad, 4 * H_pad), compute_dtype),
                            pltpu.VMEM((Bc, H_pad), jnp.float32),
                            pltpu.VMEM((Bc, H_pad), jnp.float32),
                            pltpu.SemaphoreType.DMA(())],
        ),
        compiler_params=pltpu.CompilerParams(
            dimension_semantics=("parallel", "arbitrary"),
            vmem_limit_bytes=vmem_limit),
        cost_estimate=cost,
    )(gx, h0p, c0p, whh_fused)

    out = out[:T, :B, :H]
    hT = hT[:B, :H].reshape(1, B, H)
    cT = cT[:B, :H].reshape(1, B, H)
    return out, hT, cT


# ---------------------------------------------------------------------------
# RNNModel (LSTM, tie_weights=False, joint_emb=None) in JAX + Pallas
# ---------------------------------------------------------------------------
class RNNModelJAX:
    def __init__(self, ntoken, ninp, nhid, nlayers, key,
                 compute_dtype=jnp.bfloat16):
        self.ntoken, self.ninp, self.nhid, self.nlayers = ntoken, ninp, nhid, nlayers
        self.compute_dtype = compute_dtype
        initrange = 0.1
        keys = jax.random.split(key, 2 + 4 * nlayers)

        # Embedding / encoder: uniform(-0.1, 0.1)  (init_weights)
        self.encoder_weight = jax.random.uniform(
            keys[0], (ntoken, ninp), jnp.float32, -initrange, initrange)
        # Decoder: Linear(nhid, ntoken), weight uniform(-0.1, 0.1), bias zeros
        self.decoder_weight = jax.random.uniform(
            keys[1], (ntoken, nhid), jnp.float32, -initrange, initrange)
        self.decoder_bias = jnp.zeros((ntoken,), jnp.float32)

        # LSTM layers (PyTorch default init: uniform(-1/sqrt(H), 1/sqrt(H)))
        self.lstm_params = []
        for l in range(nlayers):
            din = ninp if l == 0 else nhid
            h = nhid  # tie_weights=False and joint_emb=None -> all hidden = nhid
            k = 1.0 / jnp.sqrt(jnp.float32(h))
            kw = keys[2 + 4 * l: 2 + 4 * (l + 1)]
            w_ih = jax.random.uniform(kw[0], (4 * h, din), jnp.float32, -k, k)
            w_hh = jax.random.uniform(kw[1], (4 * h, h), jnp.float32, -k, k)
            b_ih = jax.random.uniform(kw[2], (4 * h,), jnp.float32, -k, k)
            b_hh = jax.random.uniform(kw[3], (4 * h,), jnp.float32, -k, k)
            self.lstm_params.append((w_ih, w_hh, b_ih, b_hh))

    def init_hidden(self, bsz):
        return [(jnp.zeros((1, bsz, self.nhid), jnp.float32),
                 jnp.zeros((1, bsz, self.nhid), jnp.float32))
                for _ in range(self.nlayers)]

    def forward(self, tokens, hidden):
        """tokens: (T, B) int32; hidden: list of (h0, c0) per layer."""
        # Embedding lookup (glue).  embedded_dropout / lockdrop: identity in eval.
        emb = jnp.take(self.encoder_weight, tokens, axis=0)   # (T, B, ninp)

        raw_output = emb
        new_hidden = []
        for l in range(self.nlayers):
            w_ih, w_hh, b_ih, b_hh = self.lstm_params[l]
            h0, c0 = hidden[l]
            is_last = (l == self.nlayers - 1)
            # Inter-layer activations stay in bf16 (pure bandwidth win); only
            # the final layer writes f32 for the returned result.
            raw_output, hT, cT = lstm_layer(
                raw_output, h0, c0, w_ih, w_hh, b_ih, b_hh,
                compute_dtype=self.compute_dtype,
                out_dtype=jnp.float32 if is_last else self.compute_dtype)
            new_hidden.append((hT, cT))
            # hdrop lockdrop between layers: identity in eval.

        output = raw_output                                    # (T, B, nhid) f32
        T, B, H = output.shape
        result = output.reshape(T * B, H)
        weight = self.decoder_weight   # tie_weights=False, joint_emb=None
        bias = self.decoder_bias
        return result, weight, bias, new_hidden


if __name__ == "__main__":
    ntoken, ninp, nhid, nlayers = 50, 16, 32, 2
    T, B = 8, 4

    key = jax.random.PRNGKey(0)
    k_model, k_tok = jax.random.split(key)

    model = RNNModelJAX(ntoken, ninp, nhid, nlayers, k_model)
    tokens = jax.random.randint(k_tok, (T, B), 0, ntoken, dtype=jnp.int32)
    hidden = model.init_hidden(B)

    fwd = jax.jit(model.forward)
    result, weight, bias, new_hidden = fwd(tokens, hidden)
    jax.block_until_ready(result)
    jax.block_until_ready(weight)
    jax.block_until_ready(bias)
    for h, c in new_hidden:
        jax.block_until_ready(h)
        jax.block_until_ready(c)

    assert result.shape == (T * B, nhid)
    assert weight.shape == (ntoken, nhid)
    assert bias.shape == (ntoken,)
    for h, c in new_hidden:
        assert h.shape == (1, B, nhid) and c.shape == (1, B, nhid)
    print("KERNEL_OK")
</pallas_src>

<mosaic_0001>
module attributes {stable_mosaic.version = 11 : i64} {
  func.func @_lstm_chunk_kernel(%arg0: i32, %arg1: i32, %arg2: memref<8x8x512xbf16, #tpu.memory_space<vmem>>, %arg3: memref<8x128xf32, #tpu.memory_space<vmem>>, %arg4: memref<8x128xf32, #tpu.memory_space<vmem>>, %arg5: memref<128x512xbf16, #tpu.memory_space<any>>, %arg6: memref<8x8x128xf32, #tpu.memory_space<vmem>>, %arg7: memref<8x128xf32, #tpu.memory_space<vmem>>, %arg8: memref<8x128xf32, #tpu.memory_space<vmem>>, %arg9: memref<128x512xbf16, #tpu.memory_space<vmem>>, %arg10: memref<8x128xf32, #tpu.memory_space<vmem>>, %arg11: memref<8x128xf32, #tpu.memory_space<vmem>>, %arg12: memref<!tpu.dma_semaphore, #tpu.memory_space<semaphore_mem>>) attributes {dimension_semantics = [#tpu.dimension_semantics<parallel>, #tpu.dimension_semantics<arbitrary>], iteration_bounds = array<i64: 1, 1>, scalar_prefetch = 0 : i64, scratch_operands = 4 : i64, tpu.core_type = #tpu.core_type<tc>, window_params = [{transform_indices = @transform_0, window_bounds = array<i64: 8, 8, 512>}, {transform_indices = @transform_1, window_bounds = array<i64: 8, 128>}, {transform_indices = @transform_2, window_bounds = array<i64: 8, 128>}, {}, {transform_indices = @transform_4, window_bounds = array<i64: 8, 8, 128>}, {transform_indices = @transform_5, window_bounds = array<i64: 8, 128>}, {transform_indices = @transform_6, window_bounds = array<i64: 8, 128>}]} {
    %c0_i32 = arith.constant 0 : i32
    %0 = arith.cmpi eq, %arg1, %c0_i32 : i32
    %1 = arith.extui %0 : i1 to i32
    %c0_i32_0 = arith.constant 0 : i32
    %2 = arith.cmpi ne, %1, %c0_i32_0 : i32
    scf.if %2 {
      tpu.enqueue_dma source(%arg5 : memref<128x512xbf16, #tpu.memory_space<any>>) target(%arg9 : memref<128x512xbf16, #tpu.memory_space<vmem>>) target_semaphore(%arg12 : memref<!tpu.dma_semaphore, #tpu.memory_space<semaphore_mem>>)
      tpu.wait_dma2 semaphore(%arg12 : memref<!tpu.dma_semaphore, #tpu.memory_space<semaphore_mem>>) src(%arg5 : memref<128x512xbf16, #tpu.memory_space<any>>) dst(%arg9 : memref<128x512xbf16, #tpu.memory_space<vmem>>)
      %c0_98 = arith.constant 0 : index
      %c0_99 = arith.constant 0 : index
      %336 = vector.load %arg3[%c0_98, %c0_99] : memref<8x128xf32, #tpu.memory_space<vmem>>, vector<8x128xf32>
      %c0_100 = arith.constant 0 : index
      %c0_101 = arith.constant 0 : index
      %337 = vector.load %arg10[%c0_100, %c0_101] : memref<8x128xf32, #tpu.memory_space<vmem>>, vector<8x128xf32>
      tpu.vector_store %arg10[%c0_100, %c0_101], %336 {strides = array<i32>} : memref<8x128xf32, #tpu.memory_space<vmem>>, vector<8x128xf32>,
      %c0_102 = arith.constant 0 : index
      %c0_103 = arith.constant 0 : index
      %338 = vector.load %arg4[%c0_102, %c0_103] : memref<8x128xf32, #tpu.memory_space<vmem>>, vector<8x128xf32>
      %c0_104 = arith.constant 0 : index
      %c0_105 = arith.constant 0 : index
      %339 = vector.load %arg11[%c0_104, %c0_105] : memref<8x128xf32, #tpu.memory_space<vmem>>, vector<8x128xf32>
      tpu.vector_store %arg11[%c0_104, %c0_105], %338 {strides = array<i32>} : memref<8x128xf32, #tpu.memory_space<vmem>>, vector<8x128xf32>,
    } else {
    }
    %c0 = arith.constant 0 : index
    %c0_1 = arith.constant 0 : index
    %3 = vector.load %arg9[%c0, %c0_1] : memref<128x512xbf16, #tpu.memory_space<vmem>>, vector<128x512xbf16>
    %c0_2 = arith.constant 0 : index
    %c0_3 = arith.constant 0 : index
    %4 = vector.load %arg10[%c0_2, %c0_3] : memref<8x128xf32, #tpu.memory_space<vmem>>, vector<8x128xf32>
    %c0_4 = arith.constant 0 : index
    %c0_5 = arith.constant 0 : index
    %5 = vector.load %arg11[%c0_4, %c0_5] : memref<8x128xf32, #tpu.memory_space<vmem>>, vector<8x128xf32>
    %c0_i32_6 = arith.constant 0 : i32
    %6 = arith.index_cast %c0_i32_6 : i32 to index
    %c0_7 = arith.constant 0 : index
    %c0_8 = arith.constant 0 : index
    %7 = vector.load %arg2[%6, %c0_7, %c0_8] : memref<8x8x512xbf16, #tpu.memory_space<vmem>>, vector<1x8x512xbf16>
    %8 = vector.shape_cast %7 : vector<1x8x512xbf16> to vector<8x512xbf16>
    %9 = arith.extf %8 : vector<8x512xbf16> to vector<8x512xf32>
    %10 = arith.truncf %4 : vector<8x128xf32> to vector<8x128xbf16>
    %cst = arith.constant dense<0.000000e+00> : vector<8x512xf32>
    %11 = tpu.matmul %10, %3, %cst {dimension_numbers = #tpu.dot_dimension_numbers<[1], [0], [0], [1], [0, 0, 1, 1], [], []>} : vector<8x128xbf16>, vector<128x512xbf16>, vector<8x512xf32> -> vector<8x512xf32>
    %12 = arith.addf %9, %11 : vector<8x512xf32>
    %13 = vector.extract_strided_slice %12 {offsets = [0, 0], sizes = [8, 128], strides = [1, 1]} : vector<8x512xf32> to vector<8x128xf32>
    %14 = arith.negf %13 : vector<8x128xf32>
    %15 = math.exp %14 : vector<8x128xf32>
    %cst_9 = arith.constant 1.000000e+00 : f32
    %16 = vector.broadcast %cst_9 : f32 to vector<8x128xf32>
    %17 = arith.addf %16, %15 : vector<8x128xf32>
    %18 = arith.divf %16, %17 : vector<8x128xf32>
    %19 = vector.extract_strided_slice %12 {offsets = [0, 128], sizes = [8, 128], strides = [1, 1]} : vector<8x512xf32> to vector<8x128xf32>
    %20 = arith.negf %19 : vector<8x128xf32>
    %21 = math.exp %20 : vector<8x128xf32>
    %cst_10 = arith.constant 1.000000e+00 : f32
    %22 = vector.broadcast %cst_10 : f32 to vector<8x128xf32>
    %23 = arith.addf %22, %21 : vector<8x128xf32>
    %24 = arith.divf %22, %23 : vector<8x128xf32>
    %25 = vector.extract_strided_slice %12 {offsets = [0, 256], sizes = [8, 128], strides = [1, 1]} : vector<8x512xf32> to vector<8x128xf32>
    %26 = math.tanh %25 : vector<8x128xf32>
    %27 = vector.extract_strided_slice %12 {offsets = [0, 384], sizes = [8, 128], strides = [1, 1]} : vector<8x512xf32> to vector<8x128xf32>
    %28 = arith.negf %27 : vector<8x128xf32>
    %29 = math.exp %28 : vector<8x128xf32>
    %cst_11 = arith.constant 1.000000e+00 : f32
    %30 = vector.broadcast %cst_11 : f32 to vector<8x128xf32>
    %31 = arith.addf %30, %29 : vector<8x128xf32>
    %32 = arith.divf %30, %31 : vector<8x128xf32>
    %33 = arith.mulf %24, %5 : vector<8x128xf32>
    %34 = arith.mulf %18, %26 : vector<8x128xf32>
    %35 = arith.addf %33, %34 : vector<8x128xf32>
    %36 = math.tanh %35 : vector<8x128xf32>
    %37 = arith.mulf %32, %36 : vector<8x128xf32>
    %38 = arith.index_cast %c0_i32_6 : i32 to index
    %c0_12 = arith.constant 0 : index
    %c0_13 = arith.constant 0 : index
    %39 = vector.load %arg6[%38, %c0_12, %c0_13] : memref<8x8x128xf32, #tpu.memory_space<vmem>>, vector<1x8x128xf32>
    %40 = vector.shape_cast %39 : vector<1x8x128xf32> to vector<8x128xf32>
    %41 = vector.shape_cast %37 : vector<8x128xf32> to vector<1x8x128xf32>
    tpu.vector_store %arg6[%38, %c0_12, %c0_13], %41 {strides = array<i32>} : memref<8x8x128xf32, #tpu.memory_space<vmem>>, vector<1x8x128xf32>,
    %c8_i32 = arith.constant 8 : i32
    %42 = arith.muli %arg1, %c8_i32 : i32
    %43 = arith.addi %42, %c0_i32_6 : i32
    %c7_i32 = arith.constant 7 : i32
    %44 = arith.cmpi eq, %43, %c7_i32 : i32
    %45 = arith.extui %44 : i1 to i32
    %c0_i32_14 = arith.constant 0 : i32
    %46 = arith.cmpi ne, %45, %c0_i32_14 : i32
    scf.if %46 {
      %c0_98 = arith.constant 0 : index
      %c0_99 = arith.constant 0 : index
      %336 = vector.load %arg7[%c0_98, %c0_99] : memref<8x128xf32, #tpu.memory_space<vmem>>, vector<8x128xf32>
      tpu.vector_store %arg7[%c0_98, %c0_99], %37 {strides = array<i32>} : memref<8x128xf32, #tpu.memory_space<vmem>>, vector<8x128xf32>,
      %c0_100 = arith.constant 0 : index
      %c0_101 = arith.constant 0 : index
      %337 = vector.load %arg8[%c0_100, %c0_101] : memref<8x128xf32, #tpu.memory_space<vmem>>, vector<8x128xf32>
      tpu.vector_store %arg8[%c0_100, %c0_101], %35 {strides = array<i32>} : memref<8x128xf32, #tpu.memory_space<vmem>>, vector<8x128xf32>,
    } else {
    }
    %c1_i32 = arith.constant 1 : i32
    %47 = arith.index_cast %c1_i32 : i32 to index
    %c0_15 = arith.constant 0 : index
    %c0_16 = arith.constant 0 : index
    %48 = vector.load %arg2[%47, %c0_15, %c0_16] : memref<8x8x512xbf16, #tpu.memory_space<vmem>>, vector<1x8x512xbf16>
    %49 = vector.shape_cast %48 : vector<1x8x512xbf16> to vector<8x512xbf16>
    %50 = arith.extf %49 : vector<8x512xbf16> to vector<8x512xf32>
    %51 = arith.truncf %37 : vector<8x128xf32> to vector<8x128xbf16>
    %cst_17 = arith.constant dense<0.000000e+00> : vector<8x512xf32>
    %52 = tpu.matmul %51, %3, %cst_17 {dimension_numbers = #tpu.dot_dimension_numbers<[1], [0], [0], [1], [0, 0, 1, 1], [], []>} : vector<8x128xbf16>, vector<128x512xbf16>, vector<8x512xf32> -> vector<8x512xf32>
    %53 = arith.addf %50, %52 : vector<8x512xf32>
    %54 = vector.extract_strided_slice %53 {offsets = [0, 0], sizes = [8, 128], strides = [1, 1]} : vector<8x512xf32> to vector<8x128xf32>
    %55 = arith.negf %54 : vector<8x128xf32>
    %56 = math.exp %55 : vector<8x128xf32>
    %cst_18 = arith.constant 1.000000e+00 : f32
    %57 = vector.broadcast %cst_18 : f32 to vector<8x128xf32>
    %58 = arith.addf %57, %56 : vector<8x128xf32>
    %59 = arith.divf %57, %58 : vector<8x128xf32>
    %60 = vector.extract_strided_slice %53 {offsets = [0, 128], sizes = [8, 128], strides = [1, 1]} : vector<8x512xf32> to vector<8x128xf32>
    %61 = arith.negf %60 : vector<8x128xf32>
    %62 = math.exp %61 : vector<8x128xf32>
    %cst_19 = arith.constant 1.000000e+00 : f32
    %63 = vector.broadcast %cst_19 : f32 to vector<8x128xf32>
    %64 = arith.addf %63, %62 : vector<8x128xf32>
    %65 = arith.divf %63, %64 : vector<8x128xf32>
    %66 = vector.extract_strided_slice %53 {offsets = [0, 256], sizes = [8, 128], strides = [1, 1]} : vector<8x512xf32> to vector<8x128xf32>
    %67 = math.tanh %66 : vector<8x128xf32>
    %68 = vector.extract_strided_slice %53 {offsets = [0, 384], sizes = [8, 128], strides = [1, 1]} : vector<8x512xf32> to vector<8x128xf32>
    %69 = arith.negf %68 : vector<8x128xf32>
    %70 = math.exp %69 : vector<8x128xf32>
    %cst_20 = arith.constant 1.000000e+00 : f32
    %71 = vector.broadcast %cst_20 : f32 to vector<8x128xf32>
    %72 = arith.addf %71, %70 : vector<8x128xf32>
    %73 = arith.divf %71, %72 : vector<8x128xf32>
    %74 = arith.mulf %65, %35 : vector<8x128xf32>
    %75 = arith.mulf %59, %67 : vector<8x128xf32>
    %76 = arith.addf %74, %75 : vector<8x128xf32>
    %77 = math.tanh %76 : vector<8x128xf32>
    %78 = arith.mulf %73, %77 : vector<8x128xf32>
    %79 = arith.index_cast %c1_i32 : i32 to index
    %c0_21 = arith.constant 0 : index
    %c0_22 = arith.constant 0 : index
    %80 = vector.load %arg6[%79, %c0_21, %c0_22] : memref<8x8x128xf32, #tpu.memory_space<vmem>>, vector<1x8x128xf32>
    %81 = vector.shape_cast %80 : vector<1x8x128xf32> to vector<8x128xf32>
    %82 = vector.shape_cast %78 : vector<8x128xf32> to vector<1x8x128xf32>
    tpu.vector_store %arg6[%79, %c0_21, %c0_22], %82 {strides = array<i32>} : memref<8x8x128xf32, #tpu.memory_space<vmem>>, vector<1x8x128xf32>,
    %c8_i32_23 = arith.constant 8 : i32
    %83 = arith.muli %arg1, %c8_i32_23 : i32
    %84 = arith.addi %83, %c1_i32 : i32
    %c7_i32_24 = arith.constant 7 : i32
    %85 = arith.cmpi eq, %84, %c7_i32_24 : i32
    %86 = arith.extui %85 : i1 to i32
    %c0_i32_25 = arith.constant 0 : i32
    %87 = arith.cmpi ne, %86, %c0_i32_25 : i32
    scf.if %87 {
      %c0_98 = arith.constant 0 : index
      %c0_99 = arith.constant 0 : index
      %336 = vector.load %arg7[%c0_98, %c0_99] : memref<8x128xf32, #tpu.memory_space<vmem>>, vector<8x128xf32>
      tpu.vector_store %arg7[%c0_98, %c0_99], %78 {strides = array<i32>} : memref<8x128xf32, #tpu.memory_space<vmem>>, vector<8x128xf32>,
      %c0_100 = arith.constant 0 : index
      %c0_101 = arith.constant 0 : index
      %337 = vector.load %arg8[%c0_100, %c0_101] : memref<8x128xf32, #tpu.memory_space<vmem>>, vector<8x128xf32>
      tpu.vector_store %arg8[%c0_100, %c0_101], %76 {strides = array<i32>} : memref<8x128xf32, #tpu.memory_space<vmem>>, vector<8x128xf32>,
    } else {
    }
    %c2_i32 = arith.constant 2 : i32
    %88 = arith.index_cast %c2_i32 : i32 to index
    %c0_26 = arith.constant 0 : index
    %c0_27 = arith.constant 0 : index
    %89 = vector.load %arg2[%88, %c0_26, %c0_27] : memref<8x8x512xbf16, #tpu.memory_space<vmem>>, vector<1x8x512xbf16>
    %90 = vector.shape_cast %89 : vector<1x8x512xbf16> to vector<8x512xbf16>
    %91 = arith.extf %90 : vector<8x512xbf16> to vector<8x512xf32>
    %92 = arith.truncf %78 : vector<8x128xf32> to vector<8x128xbf16>
    %cst_28 = arith.constant dense<0.000000e+00> : vector<8x512xf32>
    %93 = tpu.matmul %92, %3, %cst_28 {dimension_numbers = #tpu.dot_dimension_numbers<[1], [0], [0], [1], [0, 0, 1, 1], [], []>} : vector<8x128xbf16>, vector<128x512xbf16>, vector<8x512xf32> -> vector<8x512xf32>
    %94 = arith.addf %91, %93 : vector<8x512xf32>
    %95 = vector.extract_strided_slice %94 {offsets = [0, 0], sizes = [8, 128], strides = [1, 1]} : vector<8x512xf32> to vector<8x128xf32>
    %96 = arith.negf %95 : vector<8x128xf32>
    %97 = math.exp %96 : vector<8x128xf32>
    %cst_29 = arith.constant 1.000000e+00 : f32
    %98 = vector.broadcast %cst_29 : f32 to vector<8x128xf32>
    %99 = arith.addf %98, %97 : vector<8x128xf32>
    %100 = arith.divf %98, %99 : vector<8x128xf32>
    %101 = vector.extract_strided_slice %94 {offsets = [0, 128], sizes = [8, 128], strides = [1, 1]} : vector<8x512xf32> to vector<8x128xf32>
    %102 = arith.negf %101 : vector<8x128xf32>
    %103 = math.exp %102 : vector<8x128xf32>
    %cst_30 = arith.constant 1.000000e+00 : f32
    %104 = vector.broadcast %cst_30 : f32 to vector<8x128xf32>
    %105 = arith.addf %104, %103 : vector<8x128xf32>
    %106 = arith.divf %104, %105 : vector<8x128xf32>
    %107 = vector.extract_strided_slice %94 {offsets = [0, 256], sizes = [8, 128], strides = [1, 1]} : vector<8x512xf32> to vector<8x128xf32>
    %108 = math.tanh %107 : vector<8x128xf32>
    %109 = vector.extract_strided_slice %94 {offsets = [0, 384], sizes = [8, 128], strides = [1, 1]} : vector<8x512xf32> to vector<8x128xf32>
    %110 = arith.negf %109 : vector<8x128xf32>
    %111 = math.exp %110 : vector<8x128xf32>
    %cst_31 = arith.constant 1.000000e+00 : f32
    %112 = vector.broadcast %cst_31 : f32 to vector<8x128xf32>
    %113 = arith.addf %112, %111 : vector<8x128xf32>
    %114 = arith.divf %112, %113 : vector<8x128xf32>
    %115 = arith.mulf %106, %76 : vector<8x128xf32>
    %116 = arith.mulf %100, %108 : vector<8x128xf32>
    %117 = arith.addf %115, %116 : vector<8x128xf32>
    %118 = math.tanh %117 : vector<8x128xf32>
    %119 = arith.mulf %114, %118 : vector<8x128xf32>
    %120 = arith.index_cast %c2_i32 : i32 to index
    %c0_32 = arith.constant 0 : index
    %c0_33 = arith.constant 0 : index
    %121 = vector.load %arg6[%120, %c0_32, %c0_33] : memref<8x8x128xf32, #tpu.memory_space<vmem>>, vector<1x8x128xf32>
    %122 = vector.shape_cast %121 : vector<1x8x128xf32> to vector<8x128xf32>
    %123 = vector.shape_cast %119 : vector<8x128xf32> to vector<1x8x128xf32>
    tpu.vector_store %arg6[%120, %c0_32, %c0_33], %123 {strides = array<i32>} : memref<8x8x128xf32, #tpu.memory_space<vmem>>, vector<1x8x128xf32>,
    %c8_i32_34 = arith.constant 8 : i32
    %124 = arith.muli %arg1, %c8_i32_34 : i32
    %125 = arith.addi %124, %c2_i32 : i32
    %c7_i32_35 = arith.constant 7 : i32
    %126 = arith.cmpi eq, %125, %c7_i32_35 : i32
    %127 = arith.extui %126 : i1 to i32
    %c0_i32_36 = arith.constant 0 : i32
    %128 = arith.cmpi ne, %127, %c0_i32_36 : i32
    scf.if %128 {
      %c0_98 = arith.constant 0 : index
      %c0_99 = arith.constant 0 : index
      %336 = vector.load %arg7[%c0_98, %c0_99] : memref<8x128xf32, #tpu.memory_space<vmem>>, vector<8x128xf32>
      tpu.vector_store %arg7[%c0_98, %c0_99], %119 {strides = array<i32>} : memref<8x128xf32, #tpu.memory_space<vmem>>, vector<8x128xf32>,
      %c0_100 = arith.constant 0 : index
      %c0_101 = arith.constant 0 : index
      %337 = vector.load %arg8[%c0_100, %c0_101] : memref<8x128xf32, #tpu.memory_space<vmem>>, vector<8x128xf32>
      tpu.vector_store %arg8[%c0_100, %c0_101], %117 {strides = array<i32>} : memref<8x128xf32, #tpu.memory_space<vmem>>, vector<8x128xf32>,
    } else {
    }
    %c3_i32 = arith.constant 3 : i32
    %129 = arith.index_cast %c3_i32 : i32 to index
    %c0_37 = arith.constant 0 : index
    %c0_38 = arith.constant 0 : index
    %130 = vector.load %arg2[%129, %c0_37, %c0_38] : memref<8x8x512xbf16, #tpu.memory_space<vmem>>, vector<1x8x512xbf16>
    %131 = vector.shape_cast %130 : vector<1x8x512xbf16> to vector<8x512xbf16>
    %132 = arith.extf %131 : vector<8x512xbf16> to vector<8x512xf32>
    %133 = arith.truncf %119 : vector<8x128xf32> to vector<8x128xbf16>
    %cst_39 = arith.constant dense<0.000000e+00> : vector<8x512xf32>
    %134 = tpu.matmul %133, %3, %cst_39 {dimension_numbers = #tpu.dot_dimension_numbers<[1], [0], [0], [1], [0, 0, 1, 1], [], []>} : vector<8x128xbf16>, vector<128x512xbf16>, vector<8x512xf32> -> vector<8x512xf32>
    %135 = arith.addf %132, %134 : vector<8x512xf32>
    %136 = vector.extract_strided_slice %135 {offsets = [0, 0], sizes = [8, 128], strides = [1, 1]} : vector<8x512xf32> to vector<8x128xf32>
    %137 = arith.negf %136 : vector<8x128xf32>
    %138 = math.exp %137 : vector<8x128xf32>
    %cst_40 = arith.constant 1.000000e+00 : f32
    %139 = vector.broadcast %cst_40 : f32 to vector<8x128xf32>
    %140 = arith.addf %139, %138 : vector<8x128xf32>
    %141 = arith.divf %139, %140 : vector<8x128xf32>
    %142 = vector.extract_strided_slice %135 {offsets = [0, 128], sizes = [8, 128], strides = [1, 1]} : vector<8x512xf32> to vector<8x128xf32>
    %143 = arith.negf %142 : vector<8x128xf32>
    %144 = math.exp %143 : vector<8x128xf32>
    %cst_41 = arith.constant 1.000000e+00 : f32
    %145 = vector.broadcast %cst_41 : f32 to vector<8x128xf32>
    %146 = arith.addf %145, %144 : vector<8x128xf32>
    %147 = arith.divf %145, %146 : vector<8x128xf32>
    %148 = vector.extract_strided_slice %135 {offsets = [0, 256], sizes = [8, 128], strides = [1, 1]} : vector<8x512xf32> to vector<8x128xf32>
    %149 = math.tanh %148 : vector<8x128xf32>
    %150 = vector.extract_strided_slice %135 {offsets = [0, 384], sizes = [8, 128], strides = [1, 1]} : vector<8x512xf32> to vector<8x128xf32>
    %151 = arith.negf %150 : vector<8x128xf32>
    %152 = math.exp %151 : vector<8x128xf32>
    %cst_42 = arith.constant 1.000000e+00 : f32
    %153 = vector.broadcast %cst_42 : f32 to vector<8x128xf32>
    %154 = arith.addf %153, %152 : vector<8x128xf32>
    %155 = arith.divf %153, %154 : vector<8x128xf32>
    %156 = arith.mulf %147, %117 : vector<8x128xf32>
    %157 = arith.mulf %141, %149 : vector<8x128xf32>
    %158 = arith.addf %156, %157 : vector<8x128xf32>
    %159 = math.tanh %158 : vector<8x128xf32>
    %160 = arith.mulf %155, %159 : vector<8x128xf32>
    %161 = arith.index_cast %c3_i32 : i32 to index
    %c0_43 = arith.constant 0 : index
    %c0_44 = arith.constant 0 : index
    %162 = vector.load %arg6[%161, %c0_43, %c0_44] : memref<8x8x128xf32, #tpu.memory_space<vmem>>, vector<1x8x128xf32>
    %163 = vector.shape_cast %162 : vector<1x8x128xf32> to vector<8x128xf32>
    %164 = vector.shape_cast %160 : vector<8x128xf32> to vector<1x8x128xf32>
    tpu.vector_store %arg6[%161, %c0_43, %c0_44], %164 {strides = array<i32>} : memref<8x8x128xf32, #tpu.memory_space<vmem>>, vector<1x8x128xf32>,
    %c8_i32_45 = arith.constant 8 : i32
    %165 = arith.muli %arg1, %c8_i32_45 : i32
    %166 = arith.addi %165, %c3_i32 : i32
    %c7_i32_46 = arith.constant 7 : i32
    %167 = arith.cmpi eq, %166, %c7_i32_46 : i32
    %168 = arith.extui %167 : i1 to i32
    %c0_i32_47 = arith.constant 0 : i32
    %169 = arith.cmpi ne, %168, %c0_i32_47 : i32
    scf.if %169 {
      %c0_98 = arith.constant 0 : index
      %c0_99 = arith.constant 0 : index
      %336 = vector.load %arg7[%c0_98, %c0_99] : memref<8x128xf32, #tpu.memory_space<vmem>>, vector<8x128xf32>
      tpu.vector_store %arg7[%c0_98, %c0_99], %160 {strides = array<i32>} : memref<8x128xf32, #tpu.memory_space<vmem>>, vector<8x128xf32>,
      %c0_100 = arith.constant 0 : index
      %c0_101 = arith.constant 0 : index
      %337 = vector.load %arg8[%c0_100, %c0_101] : memref<8x128xf32, #tpu.memory_space<vmem>>, vector<8x128xf32>
      tpu.vector_store %arg8[%c0_100, %c0_101], %158 {strides = array<i32>} : memref<8x128xf32, #tpu.memory_space<vmem>>, vector<8x128xf32>,
    } else {
    }
    %c4_i32 = arith.constant 4 : i32
    %170 = arith.index_cast %c4_i32 : i32 to index
    %c0_48 = arith.constant 0 : index
    %c0_49 = arith.constant 0 : index
    %171 = vector.load %arg2[%170, %c0_48, %c0_49] : memref<8x8x512xbf16, #tpu.memory_space<vmem>>, vector<1x8x512xbf16>
    %172 = vector.shape_cast %171 : vector<1x8x512xbf16> to vector<8x512xbf16>
    %173 = arith.extf %172 : vector<8x512xbf16> to vector<8x512xf32>
    %174 = arith.truncf %160 : vector<8x128xf32> to vector<8x128xbf16>
    %cst_50 = arith.constant dense<0.000000e+00> : vector<8x512xf32>
    %175 = tpu.matmul %174, %3, %cst_50 {dimension_numbers = #tpu.dot_dimension_numbers<[1], [0], [0], [1], [0, 0, 1, 1], [], []>} : vector<8x128xbf16>, vector<128x512xbf16>, vector<8x512xf32> -> vector<8x512xf32>
    %176 = arith.addf %173, %175 : vector<8x512xf32>
    %177 = vector.extract_strided_slice %176 {offsets = [0, 0], sizes = [8, 128], strides = [1, 1]} : vector<8x512xf32> to vector<8x128xf32>
    %178 = arith.negf %177 : vector<8x128xf32>
    %179 = math.exp %178 : vector<8x128xf32>
    %cst_51 = arith.constant 1.000000e+00 : f32
    %180 = vector.broadcast %cst_51 : f32 to vector<8x128xf32>
    %181 = arith.addf %180, %179 : vector<8x128xf32>
    %182 = arith.divf %180, %181 : vector<8x128xf32>
    %183 = vector.extract_strided_slice %176 {offsets = [0, 128], sizes = [8, 128], strides = [1, 1]} : vector<8x512xf32> to vector<8x128xf32>
    %184 = arith.negf %183 : vector<8x128xf32>
    %185 = math.exp %184 : vector<8x128xf32>
    %cst_52 = arith.constant 1.000000e+00 : f32
    %186 = vector.broadcast %cst_52 : f32 to vector<8x128xf32>
    %187 = arith.addf %186, %185 : vector<8x128xf32>
    %188 = arith.divf %186, %187 : vector<8x128xf32>
    %189 = vector.extract_strided_slice %176 {offsets = [0, 256], sizes = [8, 128], strides = [1, 1]} : vector<8x512xf32> to vector<8x128xf32>
    %190 = math.tanh %189 : vector<8x128xf32>
    %191 = vector.extract_strided_slice %176 {offsets = [0, 384], sizes = [8, 128], strides = [1, 1]} : vector<8x512xf32> to vector<8x128xf32>
    %192 = arith.negf %191 : vector<8x128xf32>
    %193 = math.exp %192 : vector<8x128xf32>
    %cst_53 = arith.constant 1.000000e+00 : f32
    %194 = vector.broadcast %cst_53 : f32 to vector<8x128xf32>
    %195 = arith.addf %194, %193 : vector<8x128xf32>
    %196 = arith.divf %194, %195 : vector<8x128xf32>
    %197 = arith.mulf %188, %158 : vector<8x128xf32>
    %198 = arith.mulf %182, %190 : vector<8x128xf32>
    %199 = arith.addf %197, %198 : vector<8x128xf32>
    %200 = math.tanh %199 : vector<8x128xf32>
    %201 = arith.mulf %196, %200 : vector<8x128xf32>
    %202 = arith.index_cast %c4_i32 : i32 to index
    %c0_54 = arith.constant 0 : index
    %c0_55 = arith.constant 0 : index
    %203 = vector.load %arg6[%202, %c0_54, %c0_55] : memref<8x8x128xf32, #tpu.memory_space<vmem>>, vector<1x8x128xf32>
    %204 = vector.shape_cast %203 : vector<1x8x128xf32> to vector<8x128xf32>
    %205 = vector.shape_cast %201 : vector<8x128xf32> to vector<1x8x128xf32>
    tpu.vector_store %arg6[%202, %c0_54, %c0_55], %205 {strides = array<i32>} : memref<8x8x128xf32, #tpu.memory_space<vmem>>, vector<1x8x128xf32>,
    %c8_i32_56 = arith.constant 8 : i32
    %206 = arith.muli %arg1, %c8_i32_56 : i32
    %207 = arith.addi %206, %c4_i32 : i32
    %c7_i32_57 = arith.constant 7 : i32
    %208 = arith.cmpi eq, %207, %c7_i32_57 : i32
    %209 = arith.extui %208 : i1 to i32
    %c0_i32_58 = arith.constant 0 : i32
    %210 = arith.cmpi ne, %209, %c0_i32_58 : i32
    scf.if %210 {
      %c0_98 = arith.constant 0 : index
      %c0_99 = arith.constant 0 : index
      %336 = vector.load %arg7[%c0_98, %c0_99] : memref<8x128xf32, #tpu.memory_space<vmem>>, vector<8x128xf32>
      tpu.vector_store %arg7[%c0_98, %c0_99], %201 {strides = array<i32>} : memref<8x128xf32, #tpu.memory_space<vmem>>, vector<8x128xf32>,
      %c0_100 = arith.constant 0 : index
      %c0_101 = arith.constant 0 : index
      %337 = vector.load %arg8[%c0_100, %c0_101] : memref<8x128xf32, #tpu.memory_space<vmem>>, vector<8x128xf32>
      tpu.vector_store %arg8[%c0_100, %c0_101], %199 {strides = array<i32>} : memref<8x128xf32, #tpu.memory_space<vmem>>, vector<8x128xf32>,
    } else {
    }
    %c5_i32 = arith.constant 5 : i32
    %211 = arith.index_cast %c5_i32 : i32 to index
    %c0_59 = arith.constant 0 : index
    %c0_60 = arith.constant 0 : index
    %212 = vector.load %arg2[%211, %c0_59, %c0_60] : memref<8x8x512xbf16, #tpu.memory_space<vmem>>, vector<1x8x512xbf16>
    %213 = vector.shape_cast %212 : vector<1x8x512xbf16> to vector<8x512xbf16>
    %214 = arith.extf %213 : vector<8x512xbf16> to vector<8x512xf32>
    %215 = arith.truncf %201 : vector<8x128xf32> to vector<8x128xbf16>
    %cst_61 = arith.constant dense<0.000000e+00> : vector<8x512xf32>
    %216 = tpu.matmul %215, %3, %cst_61 {dimension_numbers = #tpu.dot_dimension_numbers<[1], [0], [0], [1], [0, 0, 1, 1], [], []>} : vector<8x128xbf16>, vector<128x512xbf16>, vector<8x512xf32> -> vector<8x512xf32>
    %217 = arith.addf %214, %216 : vector<8x512xf32>
    %218 = vector.extract_strided_slice %217 {offsets = [0, 0], sizes = [8, 128], strides = [1, 1]} : vector<8x512xf32> to vector<8x128xf32>
    %219 = arith.negf %218 : vector<8x128xf32>
    %220 = math.exp %219 : vector<8x128xf32>
    %cst_62 = arith.constant 1.000000e+00 : f32
    %221 = vector.broadcast %cst_62 : f32 to vector<8x128xf32>
    %222 = arith.addf %221, %220 : vector<8x128xf32>
    %223 = arith.divf %221, %222 : vector<8x128xf32>
    %224 = vector.extract_strided_slice %217 {offsets = [0, 128], sizes = [8, 128], strides = [1, 1]} : vector<8x512xf32> to vector<8x128xf32>
    %225 = arith.negf %224 : vector<8x128xf32>
    %226 = math.exp %225 : vector<8x128xf32>
    %cst_63 = arith.constant 1.000000e+00 : f32
    %227 = vector.broadcast %cst_63 : f32 to vector<8x128xf32>
    %228 = arith.addf %227, %226 : vector<8x128xf32>
    %229 = arith.divf %227, %228 : vector<8x128xf32>
    %230 = vector.extract_strided_slice %217 {offsets = [0, 256], sizes = [8, 128], strides = [1, 1]} : vector<8x512xf32> to vector<8x128xf32>
    %231 = math.tanh %230 : vector<8x128xf32>
    %232 = vector.extract_strided_slice %217 {offsets = [0, 384], sizes = [8, 128], strides = [1, 1]} : vector<8x512xf32> to vector<8x128xf32>
    %233 = arith.negf %232 : vector<8x128xf32>
    %234 = math.exp %233 : vector<8x128xf32>
    %cst_64 = arith.constant 1.000000e+00 : f32
    %235 = vector.broadcast %cst_64 : f32 to vector<8x128xf32>
    %236 = arith.addf %235, %234 : vector<8x128xf32>
    %237 = arith.divf %235, %236 : vector<8x128xf32>
    %238 = arith.mulf %229, %199 : vector<8x128xf32>
    %239 = arith.mulf %223, %231 : vector<8x128xf32>
    %240 = arith.addf %238, %239 : vector<8x128xf32>
    %241 = math.tanh %240 : vector<8x128xf32>
    %242 = arith.mulf %237, %241 : vector<8x128xf32>
    %243 = arith.index_cast %c5_i32 : i32 to index
    %c0_65 = arith.constant 0 : index
    %c0_66 = arith.constant 0 : index
    %244 = vector.load %arg6[%243, %c0_65, %c0_66] : memref<8x8x128xf32, #tpu.memory_space<vmem>>, vector<1x8x128xf32>
    %245 = vector.shape_cast %244 : vector<1x8x128xf32> to vector<8x128xf32>
    %246 = vector.shape_cast %242 : vector<8x128xf32> to vector<1x8x128xf32>
    tpu.vector_store %arg6[%243, %c0_65, %c0_66], %246 {strides = array<i32>} : memref<8x8x128xf32, #tpu.memory_space<vmem>>, vector<1x8x128xf32>,
    %c8_i32_67 = arith.constant 8 : i32
    %247 = arith.muli %arg1, %c8_i32_67 : i32
    %248 = arith.addi %247, %c5_i32 : i32
    %c7_i32_68 = arith.constant 7 : i32
    %249 = arith.cmpi eq, %248, %c7_i32_68 : i32
    %250 = arith.extui %249 : i1 to i32
    %c0_i32_69 = arith.constant 0 : i32
    %251 = arith.cmpi ne, %250, %c0_i32_69 : i32
    scf.if %251 {
      %c0_98 = arith.constant 0 : index
      %c0_99 = arith.constant 0 : index
      %336 = vector.load %arg7[%c0_98, %c0_99] : memref<8x128xf32, #tpu.memory_space<vmem>>, vector<8x128xf32>
      tpu.vector_store %arg7[%c0_98, %c0_99], %242 {strides = array<i32>} : memref<8x128xf32, #tpu.memory_space<vmem>>, vector<8x128xf32>,
      %c0_100 = arith.constant 0 : index
      %c0_101 = arith.constant 0 : index
      %337 = vector.load %arg8[%c0_100, %c0_101] : memref<8x128xf32, #tpu.memory_space<vmem>>, vector<8x128xf32>
      tpu.vector_store %arg8[%c0_100, %c0_101], %240 {strides = array<i32>} : memref<8x128xf32, #tpu.memory_space<vmem>>, vector<8x128xf32>,
    } else {
    }
    %c6_i32 = arith.constant 6 : i32
    %252 = arith.index_cast %c6_i32 : i32 to index
    %c0_70 = arith.constant 0 : index
    %c0_71 = arith.constant 0 : index
    %253 = vector.load %arg2[%252, %c0_70, %c0_71] : memref<8x8x512xbf16, #tpu.memory_space<vmem>>, vector<1x8x512xbf16>
    %254 = vector.shape_cast %253 : vector<1x8x512xbf16> to vector<8x512xbf16>
    %255 = arith.extf %254 : vector<8x512xbf16> to vector<8x512xf32>
    %256 = arith.truncf %242 : vector<8x128xf32> to vector<8x128xbf16>
    %cst_72 = arith.constant dense<0.000000e+00> : vector<8x512xf32>
    %257 = tpu.matmul %256, %3, %cst_72 {dimension_numbers = #tpu.dot_dimension_numbers<[1], [0], [0], [1], [0, 0, 1, 1], [], []>} : vector<8x128xbf16>, vector<128x512xbf16>, vector<8x512xf32> -> vector<8x512xf32>
    %258 = arith.addf %255, %257 : vector<8x512xf32>
    %259 = vector.extract_strided_slice %258 {offsets = [0, 0], sizes = [8, 128], strides = [1, 1]} : vector<8x512xf32> to vector<8x128xf32>
    %260 = arith.negf %259 : vector<8x128xf32>
    %261 = math.exp %260 : vector<8x128xf32>
    %cst_73 = arith.constant 1.000000e+00 : f32
    %262 = vector.broadcast %cst_73 : f32 to vector<8x128xf32>
    %263 = arith.addf %262, %261 : vector<8x128xf32>
    %264 = arith.divf %262, %263 : vector<8x128xf32>
    %265 = vector.extract_strided_slice %258 {offsets = [0, 128], sizes = [8, 128], strides = [1, 1]} : vector<8x512xf32> to vector<8x128xf32>
    %266 = arith.negf %265 : vector<8x128xf32>
    %267 = math.exp %266 : vector<8x128xf32>
    %cst_74 = arith.constant 1.000000e+00 : f32
    %268 = vector.broadcast %cst_74 : f32 to vector<8x128xf32>
    %269 = arith.addf %268, %267 : vector<8x128xf32>
    %270 = arith.divf %268, %269 : vector<8x128xf32>
    %271 = vector.extract_strided_slice %258 {offsets = [0, 256], sizes = [8, 128], strides = [1, 1]} : vector<8x512xf32> to vector<8x128xf32>
    %272 = math.tanh %271 : vector<8x128xf32>
    %273 = vector.extract_strided_slice %258 {offsets = [0, 384], sizes = [8, 128], strides = [1, 1]} : vector<8x512xf32> to vector<8x128xf32>
    %274 = arith.negf %273 : vector<8x128xf32>
    %275 = math.exp %274 : vector<8x128xf32>
    %cst_75 = arith.constant 1.000000e+00 : f32
    %276 = vector.broadcast %cst_75 : f32 to vector<8x128xf32>
    %277 = arith.addf %276, %275 : vector<8x128xf32>
    %278 = arith.divf %276, %277 : vector<8x128xf32>
    %279 = arith.mulf %270, %240 : vector<8x128xf32>
    %280 = arith.mulf %264, %272 : vector<8x128xf32>
    %281 = arith.addf %279, %280 : vector<8x128xf32>
    %282 = math.tanh %281 : vector<8x128xf32>
    %283 = arith.mulf %278, %282 : vector<8x128xf32>
    %284 = arith.index_cast %c6_i32 : i32 to index
    %c0_76 = arith.constant 0 : index
    %c0_77 = arith.constant 0 : index
    %285 = vector.load %arg6[%284, %c0_76, %c0_77] : memref<8x8x128xf32, #tpu.memory_space<vmem>>, vector<1x8x128xf32>
    %286 = vector.shape_cast %285 : vector<1x8x128xf32> to vector<8x128xf32>
    %287 = vector.shape_cast %283 : vector<8x128xf32> to vector<1x8x128xf32>
    tpu.vector_store %arg6[%284, %c0_76, %c0_77], %287 {strides = array<i32>} : memref<8x8x128xf32, #tpu.memory_space<vmem>>, vector<1x8x128xf32>,
    %c8_i32_78 = arith.constant 8 : i32
    %288 = arith.muli %arg1, %c8_i32_78 : i32
    %289 = arith.addi %288, %c6_i32 : i32
    %c7_i32_79 = arith.constant 7 : i32
    %290 = arith.cmpi eq, %289, %c7_i32_79 : i32
    %291 = arith.extui %290 : i1 to i32
    %c0_i32_80 = arith.constant 0 : i32
    %292 = arith.cmpi ne, %291, %c0_i32_80 : i32
    scf.if %292 {
      %c0_98 = arith.constant 0 : index
      %c0_99 = arith.constant 0 : index
      %336 = vector.load %arg7[%c0_98, %c0_99] : memref<8x128xf32, #tpu.memory_space<vmem>>, vector<8x128xf32>
      tpu.vector_store %arg7[%c0_98, %c0_99], %283 {strides = array<i32>} : memref<8x128xf32, #tpu.memory_space<vmem>>, vector<8x128xf32>,
      %c0_100 = arith.constant 0 : index
      %c0_101 = arith.constant 0 : index
      %337 = vector.load %arg8[%c0_100, %c0_101] : memref<8x128xf32, #tpu.memory_space<vmem>>, vector<8x128xf32>
      tpu.vector_store %arg8[%c0_100, %c0_101], %281 {strides = array<i32>} : memref<8x128xf32, #tpu.memory_space<vmem>>, vector<8x128xf32>,
    } else {
    }
    %c7_i32_81 = arith.constant 7 : i32
    %293 = arith.index_cast %c7_i32_81 : i32 to index
    %c0_82 = arith.constant 0 : index
    %c0_83 = arith.constant 0 : index
    %294 = vector.load %arg2[%293, %c0_82, %c0_83] : memref<8x8x512xbf16, #tpu.memory_space<vmem>>, vector<1x8x512xbf16>
    %295 = vector.shape_cast %294 : vector<1x8x512xbf16> to vector<8x512xbf16>
    %296 = arith.extf %295 : vector<8x512xbf16> to vector<8x512xf32>
    %297 = arith.truncf %283 : vector<8x128xf32> to vector<8x128xbf16>
    %cst_84 = arith.constant dense<0.000000e+00> : vector<8x512xf32>
    %298 = tpu.matmul %297, %3, %cst_84 {dimension_numbers = #tpu.dot_dimension_numbers<[1], [0], [0], [1], [0, 0, 1, 1], [], []>} : vector<8x128xbf16>, vector<128x512xbf16>, vector<8x512xf32> -> vector<8x512xf32>
    %299 = arith.addf %296, %298 : vector<8x512xf32>
    %300 = vector.extract_strided_slice %299 {offsets = [0, 0], sizes = [8, 128], strides = [1, 1]} : vector<8x512xf32> to vector<8x128xf32>
    %301 = arith.negf %300 : vector<8x128xf32>
    %302 = math.exp %301 : vector<8x128xf32>
    %cst_85 = arith.constant 1.000000e+00 : f32
    %303 = vector.broadcast %cst_85 : f32 to vector<8x128xf32>
    %304 = arith.addf %303, %302 : vector<8x128xf32>
    %305 = arith.divf %303, %304 : vector<8x128xf32>
    %306 = vector.extract_strided_slice %299 {offsets = [0, 128], sizes = [8, 128], strides = [1, 1]} : vector<8x512xf32> to vector<8x128xf32>
    %307 = arith.negf %306 : vector<8x128xf32>
    %308 = math.exp %307 : vector<8x128xf32>
    %cst_86 = arith.constant 1.000000e+00 : f32
    %309 = vector.broadcast %cst_86 : f32 to vector<8x128xf32>
    %310 = arith.addf %309, %308 : vector<8x128xf32>
    %311 = arith.divf %309, %310 : vector<8x128xf32>
    %312 = vector.extract_strided_slice %299 {offsets = [0, 256], sizes = [8, 128], strides = [1, 1]} : vector<8x512xf32> to vector<8x128xf32>
    %313 = math.tanh %312 : vector<8x128xf32>
    %314 = vector.extract_strided_slice %299 {offsets = [0, 384], sizes = [8, 128], strides = [1, 1]} : vector<8x512xf32> to vector<8x128xf32>
    %315 = arith.negf %314 : vector<8x128xf32>
    %316 = math.exp %315 : vector<8x128xf32>
    %cst_87 = arith.constant 1.000000e+00 : f32
    %317 = vector.broadcast %cst_87 : f32 to vector<8x128xf32>
    %318 = arith.addf %317, %316 : vector<8x128xf32>
    %319 = arith.divf %317, %318 : vector<8x128xf32>
    %320 = arith.mulf %311, %281 : vector<8x128xf32>
    %321 = arith.mulf %305, %313 : vector<8x128xf32>
    %322 = arith.addf %320, %321 : vector<8x128xf32>
    %323 = math.tanh %322 : vector<8x128xf32>
    %324 = arith.mulf %319, %323 : vector<8x128xf32>
    %325 = arith.index_cast %c7_i32_81 : i32 to index
    %c0_88 = arith.constant 0 : index
    %c0_89 = arith.constant 0 : index
    %326 = vector.load %arg6[%325, %c0_88, %c0_89] : memref<8x8x128xf32, #tpu.memory_space<vmem>>, vector<1x8x128xf32>
    %327 = vector.shape_cast %326 : vector<1x8x128xf32> to vector<8x128xf32>
    %328 = vector.shape_cast %324 : vector<8x128xf32> to vector<1x8x128xf32>
    tpu.vector_store %arg6[%325, %c0_88, %c0_89], %328 {strides = array<i32>} : memref<8x8x128xf32, #tpu.memory_space<vmem>>, vector<1x8x128xf32>,
    %c8_i32_90 = arith.constant 8 : i32
    %329 = arith.muli %arg1, %c8_i32_90 : i32
    %330 = arith.addi %329, %c7_i32_81 : i32
    %c7_i32_91 = arith.constant 7 : i32
    %331 = arith.cmpi eq, %330, %c7_i32_91 : i32
    %332 = arith.extui %331 : i1 to i32
    %c0_i32_92 = arith.constant 0 : i32
    %333 = arith.cmpi ne, %332, %c0_i32_92 : i32
    scf.if %333 {
      %c0_98 = arith.constant 0 : index
      %c0_99 = arith.constant 0 : index
      %336 = vector.load %arg7[%c0_98, %c0_99] : memref<8x128xf32, #tpu.memory_space<vmem>>, vector<8x128xf32>
      tpu.vector_store %arg7[%c0_98, %c0_99], %324 {strides = array<i32>} : memref<8x128xf32, #tpu.memory_space<vmem>>, vector<8x128xf32>,
      %c0_100 = arith.constant 0 : index
      %c0_101 = arith.constant 0 : index
      %337 = vector.load %arg8[%c0_100, %c0_101] : memref<8x128xf32, #tpu.memory_space<vmem>>, vector<8x128xf32>
      tpu.vector_store %arg8[%c0_100, %c0_101], %322 {strides = array<i32>} : memref<8x128xf32, #tpu.memory_space<vmem>>, vector<8x128xf32>,
    } else {
    }
    %c8_i32_93 = arith.constant 8 : i32
    %c0_94 = arith.constant 0 : index
    %c0_95 = arith.constant 0 : index
    %334 = vector.load %arg10[%c0_94, %c0_95] : memref<8x128xf32, #tpu.memory_space<vmem>>, vector<8x128xf32>
    tpu.vector_store %arg10[%c0_94, %c0_95], %324 {strides = array<i32>} : memref<8x128xf32, #tpu.memory_space<vmem>>, vector<8x128xf32>,
    %c0_96 = arith.constant 0 : index
    %c0_97 = arith.constant 0 : index
    %335 = vector.load %arg11[%c0_96, %c0_97] : memref<8x128xf32, #tpu.memory_space<vmem>>, vector<8x128xf32>
    tpu.vector_store %arg11[%c0_96, %c0_97], %322 {strides = array<i32>} : memref<8x128xf32, #tpu.memory_space<vmem>>, vector<8x128xf32>,
    return
  }
  func.func @transform_0(%arg0: i32, %arg1: i32) -> (i32, i32, i32) {
    %c0_i32 = arith.constant 0 : i32
    %c0_i32_0 = arith.constant 0 : i32
    return %arg1, %arg0, %c0_i32 : i32, i32, i32
  }
  func.func @transform_1(%arg0: i32, %arg1: i32) -> (i32, i32) {
    %c0_i32 = arith.constant 0 : i32
    %c0_i32_0 = arith.constant 0 : i32
    return %arg0, %c0_i32 : i32, i32
  }
  func.func @transform_2(%arg0: i32, %arg1: i32) -> (i32, i32) {
    %c0_i32 = arith.constant 0 : i32
    %c0_i32_0 = arith.constant 0 : i32
    return %arg0, %c0_i32 : i32, i32
  }
  func.func @transform_4(%arg0: i32, %arg1: i32) -> (i32, i32, i32) {
    %c0_i32 = arith.constant 0 : i32
    %c0_i32_0 = arith.constant 0 : i32
    return %arg1, %arg0, %c0_i32 : i32, i32, i32
  }
  func.func @transform_5(%arg0: i32, %arg1: i32) -> (i32, i32) {
    %c0_i32 = arith.constant 0 : i32
    %c0_i32_0 = arith.constant 0 : i32
    return %arg0, %c0_i32 : i32, i32
  }
  func.func @transform_6(%arg0: i32, %arg1: i32) -> (i32, i32) {
    %c0_i32 = arith.constant 0 : i32
    %c0_i32_0 = arith.constant 0 : i32
    return %arg0, %c0_i32 : i32, i32
  }
}

module attributes {stable_mosaic.version = 11 : i64} {
  func.func @_lstm_chunk_kernel(%arg0: i32, %arg1: i32, %arg2: memref<8x8x512xbf16, #tpu.memory_space<vmem>>, %arg3: memref<8x128xf32, #tpu.memory_space<vmem>>, %arg4: memref<8x128xf32, #tpu.memory_space<vmem>>, %arg5: memref<128x512xbf16, #tpu.memory_space<any>>, %arg6: memref<8x8x128xbf16, #tpu.memory_space<vmem>>, %arg7: memref<8x128xf32, #tpu.memory_space<vmem>>, %arg8: memref<8x128xf32, #tpu.memory_space<vmem>>, %arg9: memref<128x512xbf16, #tpu.memory_space<vmem>>, %arg10: memref<8x128xf32, #tpu.memory_space<vmem>>, %arg11: memref<8x128xf32, #tpu.memory_space<vmem>>, %arg12: memref<!tpu.dma_semaphore, #tpu.memory_space<semaphore_mem>>) attributes {dimension_semantics = [#tpu.dimension_semantics<parallel>, #tpu.dimension_semantics<arbitrary>], iteration_bounds = array<i64: 1, 1>, scalar_prefetch = 0 : i64, scratch_operands = 4 : i64, tpu.core_type = #tpu.core_type<tc>, window_params = [{transform_indices = @transform_0, window_bounds = array<i64: 8, 8, 512>}, {transform_indices = @transform_1, window_bounds = array<i64: 8, 128>}, {transform_indices = @transform_2, window_bounds = array<i64: 8, 128>}, {}, {transform_indices = @transform_4, window_bounds = array<i64: 8, 8, 128>}, {transform_indices = @transform_5, window_bounds = array<i64: 8, 128>}, {transform_indices = @transform_6, window_bounds = array<i64: 8, 128>}]} {
    %c0_i32 = arith.constant 0 : i32
    %0 = arith.cmpi eq, %arg1, %c0_i32 : i32
    %1 = arith.extui %0 : i1 to i32
    %c0_i32_0 = arith.constant 0 : i32
    %2 = arith.cmpi ne, %1, %c0_i32_0 : i32
    scf.if %2 {
      tpu.enqueue_dma source(%arg5 : memref<128x512xbf16, #tpu.memory_space<any>>) target(%arg9 : memref<128x512xbf16, #tpu.memory_space<vmem>>) target_semaphore(%arg12 : memref<!tpu.dma_semaphore, #tpu.memory_space<semaphore_mem>>)
      tpu.wait_dma2 semaphore(%arg12 : memref<!tpu.dma_semaphore, #tpu.memory_space<semaphore_mem>>) src(%arg5 : memref<128x512xbf16, #tpu.memory_space<any>>) dst(%arg9 : memref<128x512xbf16, #tpu.memory_space<vmem>>)
      %c0_98 = arith.constant 0 : index
      %c0_99 = arith.constant 0 : index
      %344 = vector.load %arg3[%c0_98, %c0_99] : memref<8x128xf32, #tpu.memory_space<vmem>>, vector<8x128xf32>
      %c0_100 = arith.constant 0 : index
      %c0_101 = arith.constant 0 : index
      %345 = vector.load %arg10[%c0_100, %c0_101] : memref<8x128xf32, #tpu.memory_space<vmem>>, vector<8x128xf32>
      tpu.vector_store %arg10[%c0_100, %c0_101], %344 {strides = array<i32>} : memref<8x128xf32, #tpu.memory_space<vmem>>, vector<8x128xf32>,
      %c0_102 = arith.constant 0 : index
      %c0_103 = arith.constant 0 : index
      %346 = vector.load %arg4[%c0_102, %c0_103] : memref<8x128xf32, #tpu.memory_space<vmem>>, vector<8x128xf32>
      %c0_104 = arith.constant 0 : index
      %c0_105 = arith.constant 0 : index
      %347 = vector.load %arg11[%c0_104, %c0_105] : memref<8x128xf32, #tpu.memory_space<vmem>>, vector<8x128xf32>
      tpu.vector_store %arg11[%c0_104, %c0_105], %346 {strides = array<i32>} : memref<8x128xf32, #tpu.memory_space<vmem>>, vector<8x128xf32>,
    } else {
    }
    %c0 = arith.constant 0 : index
    %c0_1 = arith.constant 0 : index
    %3 = vector.load %arg9[%c0, %c0_1] : memref<128x512xbf16, #tpu.memory_space<vmem>>, vector<128x512xbf16>
    %c0_2 = arith.constant 0 : index
    %c0_3 = arith.constant 0 : index
    %4 = vector.load %arg10[%c0_2, %c0_3] : memref<8x128xf32, #tpu.memory_space<vmem>>, vector<8x128xf32>
    %c0_4 = arith.constant 0 : index
    %c0_5 = arith.constant 0 : index
    %5 = vector.load %arg11[%c0_4, %c0_5] : memref<8x128xf32, #tpu.memory_space<vmem>>, vector<8x128xf32>
    %c0_i32_6 = arith.constant 0 : i32
    %6 = arith.index_cast %c0_i32_6 : i32 to index
    %c0_7 = arith.constant 0 : index
    %c0_8 = arith.constant 0 : index
    %7 = vector.load %arg2[%6, %c0_7, %c0_8] : memref<8x8x512xbf16, #tpu.memory_space<vmem>>, vector<1x8x512xbf16>
    %8 = vector.shape_cast %7 : vector<1x8x512xbf16> to vector<8x512xbf16>
    %9 = arith.extf %8 : vector<8x512xbf16> to vector<8x512xf32>
    %10 = arith.truncf %4 : vector<8x128xf32> to vector<8x128xbf16>
    %cst = arith.constant dense<0.000000e+00> : vector<8x512xf32>
    %11 = tpu.matmul %10, %3, %cst {dimension_numbers = #tpu.dot_dimension_numbers<[1], [0], [0], [1], [0, 0, 1, 1], [], []>} : vector<8x128xbf16>, vector<128x512xbf16>, vector<8x512xf32> -> vector<8x512xf32>
    %12 = arith.addf %9, %11 : vector<8x512xf32>
    %13 = vector.extract_strided_slice %12 {offsets = [0, 0], sizes = [8, 128], strides = [1, 1]} : vector<8x512xf32> to vector<8x128xf32>
    %14 = arith.negf %13 : vector<8x128xf32>
    %15 = math.exp %14 : vector<8x128xf32>
    %cst_9 = arith.constant 1.000000e+00 : f32
    %16 = vector.broadcast %cst_9 : f32 to vector<8x128xf32>
    %17 = arith.addf %16, %15 : vector<8x128xf32>
    %18 = arith.divf %16, %17 : vector<8x128xf32>
    %19 = vector.extract_strided_slice %12 {offsets = [0, 128], sizes = [8, 128], strides = [1, 1]} : vector<8x512xf32> to vector<8x128xf32>
    %20 = arith.negf %19 : vector<8x128xf32>
    %21 = math.exp %20 : vector<8x128xf32>
    %cst_10 = arith.constant 1.000000e+00 : f32
    %22 = vector.broadcast %cst_10 : f32 to vector<8x128xf32>
    %23 = arith.addf %22, %21 : vector<8x128xf32>
    %24 = arith.divf %22, %23 : vector<8x128xf32>
    %25 = vector.extract_strided_slice %12 {offsets = [0, 256], sizes = [8, 128], strides = [1, 1]} : vector<8x512xf32> to vector<8x128xf32>
    %26 = math.tanh %25 : vector<8x128xf32>
    %27 = vector.extract_strided_slice %12 {offsets = [0, 384], sizes = [8, 128], strides = [1, 1]} : vector<8x512xf32> to vector<8x128xf32>
    %28 = arith.negf %27 : vector<8x128xf32>
    %29 = math.exp %28 : vector<8x128xf32>
    %cst_11 = arith.constant 1.000000e+00 : f32
    %30 = vector.broadcast %cst_11 : f32 to vector<8x128xf32>
    %31 = arith.addf %30, %29 : vector<8x128xf32>
    %32 = arith.divf %30, %31 : vector<8x128xf32>
    %33 = arith.mulf %24, %5 : vector<8x128xf32>
    %34 = arith.mulf %18, %26 : vector<8x128xf32>
    %35 = arith.addf %33, %34 : vector<8x128xf32>
    %36 = math.tanh %35 : vector<8x128xf32>
    %37 = arith.mulf %32, %36 : vector<8x128xf32>
    %38 = arith.truncf %37 : vector<8x128xf32> to vector<8x128xbf16>
    %39 = arith.index_cast %c0_i32_6 : i32 to index
    %c0_12 = arith.constant 0 : index
    %c0_13 = arith.constant 0 : index
    %40 = vector.load %arg6[%39, %c0_12, %c0_13] : memref<8x8x128xbf16, #tpu.memory_space<vmem>>, vector<1x8x128xbf16>
    %41 = vector.shape_cast %40 : vector<1x8x128xbf16> to vector<8x128xbf16>
    %42 = vector.shape_cast %38 : vector<8x128xbf16> to vector<1x8x128xbf16>
    tpu.vector_store %arg6[%39, %c0_12, %c0_13], %42 {strides = array<i32>} : memref<8x8x128xbf16, #tpu.memory_space<vmem>>, vector<1x8x128xbf16>,
    %c8_i32 = arith.constant 8 : i32
    %43 = arith.muli %arg1, %c8_i32 : i32
    %44 = arith.addi %43, %c0_i32_6 : i32
    %c7_i32 = arith.constant 7 : i32
    %45 = arith.cmpi eq, %44, %c7_i32 : i32
    %46 = arith.extui %45 : i1 to i32
    %c0_i32_14 = arith.constant 0 : i32
    %47 = arith.cmpi ne, %46, %c0_i32_14 : i32
    scf.if %47 {
      %c0_98 = arith.constant 0 : index
      %c0_99 = arith.constant 0 : index
      %344 = vector.load %arg7[%c0_98, %c0_99] : memref<8x128xf32, #tpu.memory_space<vmem>>, vector<8x128xf32>
      tpu.vector_store %arg7[%c0_98, %c0_99], %37 {strides = array<i32>} : memref<8x128xf32, #tpu.memory_space<vmem>>, vector<8x128xf32>,
      %c0_100 = arith.constant 0 : index
      %c0_101 = arith.constant 0 : index
      %345 = vector.load %arg8[%c0_100, %c0_101] : memref<8x128xf32, #tpu.memory_space<vmem>>, vector<8x128xf32>
      tpu.vector_store %arg8[%c0_100, %c0_101], %35 {strides = array<i32>} : memref<8x128xf32, #tpu.memory_space<vmem>>, vector<8x128xf32>,
    } else {
    }
    %c1_i32 = arith.constant 1 : i32
    %48 = arith.index_cast %c1_i32 : i32 to index
    %c0_15 = arith.constant 0 : index
    %c0_16 = arith.constant 0 : index
    %49 = vector.load %arg2[%48, %c0_15, %c0_16] : memref<8x8x512xbf16, #tpu.memory_space<vmem>>, vector<1x8x512xbf16>
    %50 = vector.shape_cast %49 : vector<1x8x512xbf16> to vector<8x512xbf16>
    %51 = arith.extf %50 : vector<8x512xbf16> to vector<8x512xf32>
    %52 = arith.truncf %37 : vector<8x128xf32> to vector<8x128xbf16>
    %cst_17 = arith.constant dense<0.000000e+00> : vector<8x512xf32>
    %53 = tpu.matmul %52, %3, %cst_17 {dimension_numbers = #tpu.dot_dimension_numbers<[1], [0], [0], [1], [0, 0, 1, 1], [], []>} : vector<8x128xbf16>, vector<128x512xbf16>, vector<8x512xf32> -> vector<8x512xf32>
    %54 = arith.addf %51, %53 : vector<8x512xf32>
    %55 = vector.extract_strided_slice %54 {offsets = [0, 0], sizes = [8, 128], strides = [1, 1]} : vector<8x512xf32> to vector<8x128xf32>
    %56 = arith.negf %55 : vector<8x128xf32>
    %57 = math.exp %56 : vector<8x128xf32>
    %cst_18 = arith.constant 1.000000e+00 : f32
    %58 = vector.broadcast %cst_18 : f32 to vector<8x128xf32>
    %59 = arith.addf %58, %57 : vector<8x128xf32>
    %60 = arith.divf %58, %59 : vector<8x128xf32>
    %61 = vector.extract_strided_slice %54 {offsets = [0, 128], sizes = [8, 128], strides = [1, 1]} : vector<8x512xf32> to vector<8x128xf32>
    %62 = arith.negf %61 : vector<8x128xf32>
    %63 = math.exp %62 : vector<8x128xf32>
    %cst_19 = arith.constant 1.000000e+00 : f32
    %64 = vector.broadcast %cst_19 : f32 to vector<8x128xf32>
    %65 = arith.addf %64, %63 : vector<8x128xf32>
    %66 = arith.divf %64, %65 : vector<8x128xf32>
    %67 = vector.extract_strided_slice %54 {offsets = [0, 256], sizes = [8, 128], strides = [1, 1]} : vector<8x512xf32> to vector<8x128xf32>
    %68 = math.tanh %67 : vector<8x128xf32>
    %69 = vector.extract_strided_slice %54 {offsets = [0, 384], sizes = [8, 128], strides = [1, 1]} : vector<8x512xf32> to vector<8x128xf32>
    %70 = arith.negf %69 : vector<8x128xf32>
    %71 = math.exp %70 : vector<8x128xf32>
    %cst_20 = arith.constant 1.000000e+00 : f32
    %72 = vector.broadcast %cst_20 : f32 to vector<8x128xf32>
    %73 = arith.addf %72, %71 : vector<8x128xf32>
    %74 = arith.divf %72, %73 : vector<8x128xf32>
    %75 = arith.mulf %66, %35 : vector<8x128xf32>
    %76 = arith.mulf %60, %68 : vector<8x128xf32>
    %77 = arith.addf %75, %76 : vector<8x128xf32>
    %78 = math.tanh %77 : vector<8x128xf32>
    %79 = arith.mulf %74, %78 : vector<8x128xf32>
    %80 = arith.truncf %79 : vector<8x128xf32> to vector<8x128xbf16>
    %81 = arith.index_cast %c1_i32 : i32 to index
    %c0_21 = arith.constant 0 : index
    %c0_22 = arith.constant 0 : index
    %82 = vector.load %arg6[%81, %c0_21, %c0_22] : memref<8x8x128xbf16, #tpu.memory_space<vmem>>, vector<1x8x128xbf16>
    %83 = vector.shape_cast %82 : vector<1x8x128xbf16> to vector<8x128xbf16>
    %84 = vector.shape_cast %80 : vector<8x128xbf16> to vector<1x8x128xbf16>
    tpu.vector_store %arg6[%81, %c0_21, %c0_22], %84 {strides = array<i32>} : memref<8x8x128xbf16, #tpu.memory_space<vmem>>, vector<1x8x128xbf16>,
    %c8_i32_23 = arith.constant 8 : i32
    %85 = arith.muli %arg1, %c8_i32_23 : i32
    %86 = arith.addi %85, %c1_i32 : i32
    %c7_i32_24 = arith.constant 7 : i32
    %87 = arith.cmpi eq, %86, %c7_i32_24 : i32
    %88 = arith.extui %87 : i1 to i32
    %c0_i32_25 = arith.constant 0 : i32
    %89 = arith.cmpi ne, %88, %c0_i32_25 : i32
    scf.if %89 {
      %c0_98 = arith.constant 0 : index
      %c0_99 = arith.constant 0 : index
      %344 = vector.load %arg7[%c0_98, %c0_99] : memref<8x128xf32, #tpu.memory_space<vmem>>, vector<8x128xf32>
      tpu.vector_store %arg7[%c0_98, %c0_99], %79 {strides = array<i32>} : memref<8x128xf32, #tpu.memory_space<vmem>>, vector<8x128xf32>,
      %c0_100 = arith.constant 0 : index
      %c0_101 = arith.constant 0 : index
      %345 = vector.load %arg8[%c0_100, %c0_101] : memref<8x128xf32, #tpu.memory_space<vmem>>, vector<8x128xf32>
      tpu.vector_store %arg8[%c0_100, %c0_101], %77 {strides = array<i32>} : memref<8x128xf32, #tpu.memory_space<vmem>>, vector<8x128xf32>,
    } else {
    }
    %c2_i32 = arith.constant 2 : i32
    %90 = arith.index_cast %c2_i32 : i32 to index
    %c0_26 = arith.constant 0 : index
    %c0_27 = arith.constant 0 : index
    %91 = vector.load %arg2[%90, %c0_26, %c0_27] : memref<8x8x512xbf16, #tpu.memory_space<vmem>>, vector<1x8x512xbf16>
    %92 = vector.shape_cast %91 : vector<1x8x512xbf16> to vector<8x512xbf16>
    %93 = arith.extf %92 : vector<8x512xbf16> to vector<8x512xf32>
    %94 = arith.truncf %79 : vector<8x128xf32> to vector<8x128xbf16>
    %cst_28 = arith.constant dense<0.000000e+00> : vector<8x512xf32>
    %95 = tpu.matmul %94, %3, %cst_28 {dimension_numbers = #tpu.dot_dimension_numbers<[1], [0], [0], [1], [0, 0, 1, 1], [], []>} : vector<8x128xbf16>, vector<128x512xbf16>, vector<8x512xf32> -> vector<8x512xf32>
    %96 = arith.addf %93, %95 : vector<8x512xf32>
    %97 = vector.extract_strided_slice %96 {offsets = [0, 0], sizes = [8, 128], strides = [1, 1]} : vector<8x512xf32> to vector<8x128xf32>
    %98 = arith.negf %97 : vector<8x128xf32>
    %99 = math.exp %98 : vector<8x128xf32>
    %cst_29 = arith.constant 1.000000e+00 : f32
    %100 = vector.broadcast %cst_29 : f32 to vector<8x128xf32>
    %101 = arith.addf %100, %99 : vector<8x128xf32>
    %102 = arith.divf %100, %101 : vector<8x128xf32>
    %103 = vector.extract_strided_slice %96 {offsets = [0, 128], sizes = [8, 128], strides = [1, 1]} : vector<8x512xf32> to vector<8x128xf32>
    %104 = arith.negf %103 : vector<8x128xf32>
    %105 = math.exp %104 : vector<8x128xf32>
    %cst_30 = arith.constant 1.000000e+00 : f32
    %106 = vector.broadcast %cst_30 : f32 to vector<8x128xf32>
    %107 = arith.addf %106, %105 : vector<8x128xf32>
    %108 = arith.divf %106, %107 : vector<8x128xf32>
    %109 = vector.extract_strided_slice %96 {offsets = [0, 256], sizes = [8, 128], strides = [1, 1]} : vector<8x512xf32> to vector<8x128xf32>
    %110 = math.tanh %109 : vector<8x128xf32>
    %111 = vector.extract_strided_slice %96 {offsets = [0, 384], sizes = [8, 128], strides = [1, 1]} : vector<8x512xf32> to vector<8x128xf32>
    %112 = arith.negf %111 : vector<8x128xf32>
    %113 = math.exp %112 : vector<8x128xf32>
    %cst_31 = arith.constant 1.000000e+00 : f32
    %114 = vector.broadcast %cst_31 : f32 to vector<8x128xf32>
    %115 = arith.addf %114, %113 : vector<8x128xf32>
    %116 = arith.divf %114, %115 : vector<8x128xf32>
    %117 = arith.mulf %108, %77 : vector<8x128xf32>
    %118 = arith.mulf %102, %110 : vector<8x128xf32>
    %119 = arith.addf %117, %118 : vector<8x128xf32>
    %120 = math.tanh %119 : vector<8x128xf32>
    %121 = arith.mulf %116, %120 : vector<8x128xf32>
    %122 = arith.truncf %121 : vector<8x128xf32> to vector<8x128xbf16>
    %123 = arith.index_cast %c2_i32 : i32 to index
    %c0_32 = arith.constant 0 : index
    %c0_33 = arith.constant 0 : index
    %124 = vector.load %arg6[%123, %c0_32, %c0_33] : memref<8x8x128xbf16, #tpu.memory_space<vmem>>, vector<1x8x128xbf16>
    %125 = vector.shape_cast %124 : vector<1x8x128xbf16> to vector<8x128xbf16>
    %126 = vector.shape_cast %122 : vector<8x128xbf16> to vector<1x8x128xbf16>
    tpu.vector_store %arg6[%123, %c0_32, %c0_33], %126 {strides = array<i32>} : memref<8x8x128xbf16, #tpu.memory_space<vmem>>, vector<1x8x128xbf16>,
    %c8_i32_34 = arith.constant 8 : i32
    %127 = arith.muli %arg1, %c8_i32_34 : i32
    %128 = arith.addi %127, %c2_i32 : i32
    %c7_i32_35 = arith.constant 7 : i32
    %129 = arith.cmpi eq, %128, %c7_i32_35 : i32
    %130 = arith.extui %129 : i1 to i32
    %c0_i32_36 = arith.constant 0 : i32
    %131 = arith.cmpi ne, %130, %c0_i32_36 : i32
    scf.if %131 {
      %c0_98 = arith.constant 0 : index
      %c0_99 = arith.constant 0 : index
      %344 = vector.load %arg7[%c0_98, %c0_99] : memref<8x128xf32, #tpu.memory_space<vmem>>, vector<8x128xf32>
      tpu.vector_store %arg7[%c0_98, %c0_99], %121 {strides = array<i32>} : memref<8x128xf32, #tpu.memory_space<vmem>>, vector<8x128xf32>,
      %c0_100 = arith.constant 0 : index
      %c0_101 = arith.constant 0 : index
      %345 = vector.load %arg8[%c0_100, %c0_101] : memref<8x128xf32, #tpu.memory_space<vmem>>, vector<8x128xf32>
      tpu.vector_store %arg8[%c0_100, %c0_101], %119 {strides = array<i32>} : memref<8x128xf32, #tpu.memory_space<vmem>>, vector<8x128xf32>,
    } else {
    }
    %c3_i32 = arith.constant 3 : i32
    %132 = arith.index_cast %c3_i32 : i32 to index
    %c0_37 = arith.constant 0 : index
    %c0_38 = arith.constant 0 : index
    %133 = vector.load %arg2[%132, %c0_37, %c0_38] : memref<8x8x512xbf16, #tpu.memory_space<vmem>>, vector<1x8x512xbf16>
    %134 = vector.shape_cast %133 : vector<1x8x512xbf16> to vector<8x512xbf16>
    %135 = arith.extf %134 : vector<8x512xbf16> to vector<8x512xf32>
    %136 = arith.truncf %121 : vector<8x128xf32> to vector<8x128xbf16>
    %cst_39 = arith.constant dense<0.000000e+00> : vector<8x512xf32>
    %137 = tpu.matmul %136, %3, %cst_39 {dimension_numbers = #tpu.dot_dimension_numbers<[1], [0], [0], [1], [0, 0, 1, 1], [], []>} : vector<8x128xbf16>, vector<128x512xbf16>, vector<8x512xf32> -> vector<8x512xf32>
    %138 = arith.addf %135, %137 : vector<8x512xf32>
    %139 = vector.extract_strided_slice %138 {offsets = [0, 0], sizes = [8, 128], strides = [1, 1]} : vector<8x512xf32> to vector<8x128xf32>
    %140 = arith.negf %139 : vector<8x128xf32>
    %141 = math.exp %140 : vector<8x128xf32>
    %cst_40 = arith.constant 1.000000e+00 : f32
    %142 = vector.broadcast %cst_40 : f32 to vector<8x128xf32>
    %143 = arith.addf %142, %141 : vector<8x128xf32>
    %144 = arith.divf %142, %143 : vector<8x128xf32>
    %145 = vector.extract_strided_slice %138 {offsets = [0, 128], sizes = [8, 128], strides = [1, 1]} : vector<8x512xf32> to vector<8x128xf32>
    %146 = arith.negf %145 : vector<8x128xf32>
    %147 = math.exp %146 : vector<8x128xf32>
    %cst_41 = arith.constant 1.000000e+00 : f32
    %148 = vector.broadcast %cst_41 : f32 to vector<8x128xf32>
    %149 = arith.addf %148, %147 : vector<8x128xf32>
    %150 = arith.divf %148, %149 : vector<8x128xf32>
    %151 = vector.extract_strided_slice %138 {offsets = [0, 256], sizes = [8, 128], strides = [1, 1]} : vector<8x512xf32> to vector<8x128xf32>
    %152 = math.tanh %151 : vector<8x128xf32>
    %153 = vector.extract_strided_slice %138 {offsets = [0, 384], sizes = [8, 128], strides = [1, 1]} : vector<8x512xf32> to vector<8x128xf32>
    %154 = arith.negf %153 : vector<8x128xf32>
    %155 = math.exp %154 : vector<8x128xf32>
    %cst_42 = arith.constant 1.000000e+00 : f32
    %156 = vector.broadcast %cst_42 : f32 to vector<8x128xf32>
    %157 = arith.addf %156, %155 : vector<8x128xf32>
    %158 = arith.divf %156, %157 : vector<8x128xf32>
    %159 = arith.mulf %150, %119 : vector<8x128xf32>
    %160 = arith.mulf %144, %152 : vector<8x128xf32>
    %161 = arith.addf %159, %160 : vector<8x128xf32>
    %162 = math.tanh %161 : vector<8x128xf32>
    %163 = arith.mulf %158, %162 : vector<8x128xf32>
    %164 = arith.truncf %163 : vector<8x128xf32> to vector<8x128xbf16>
    %165 = arith.index_cast %c3_i32 : i32 to index
    %c0_43 = arith.constant 0 : index
    %c0_44 = arith.constant 0 : index
    %166 = vector.load %arg6[%165, %c0_43, %c0_44] : memref<8x8x128xbf16, #tpu.memory_space<vmem>>, vector<1x8x128xbf16>
    %167 = vector.shape_cast %166 : vector<1x8x128xbf16> to vector<8x128xbf16>
    %168 = vector.shape_cast %164 : vector<8x128xbf16> to vector<1x8x128xbf16>
    tpu.vector_store %arg6[%165, %c0_43, %c0_44], %168 {strides = array<i32>} : memref<8x8x128xbf16, #tpu.memory_space<vmem>>, vector<1x8x128xbf16>,
    %c8_i32_45 = arith.constant 8 : i32
    %169 = arith.muli %arg1, %c8_i32_45 : i32
    %170 = arith.addi %169, %c3_i32 : i32
    %c7_i32_46 = arith.constant 7 : i32
    %171 = arith.cmpi eq, %170, %c7_i32_46 : i32
    %172 = arith.extui %171 : i1 to i32
    %c0_i32_47 = arith.constant 0 : i32
    %173 = arith.cmpi ne, %172, %c0_i32_47 : i32
    scf.if %173 {
      %c0_98 = arith.constant 0 : index
      %c0_99 = arith.constant 0 : index
      %344 = vector.load %arg7[%c0_98, %c0_99] : memref<8x128xf32, #tpu.memory_space<vmem>>, vector<8x128xf32>
      tpu.vector_store %arg7[%c0_98, %c0_99], %163 {strides = array<i32>} : memref<8x128xf32, #tpu.memory_space<vmem>>, vector<8x128xf32>,
      %c0_100 = arith.constant 0 : index
      %c0_101 = arith.constant 0 : index
      %345 = vector.load %arg8[%c0_100, %c0_101] : memref<8x128xf32, #tpu.memory_space<vmem>>, vector<8x128xf32>
      tpu.vector_store %arg8[%c0_100, %c0_101], %161 {strides = array<i32>} : memref<8x128xf32, #tpu.memory_space<vmem>>, vector<8x128xf32>,
    } else {
    }
    %c4_i32 = arith.constant 4 : i32
    %174 = arith.index_cast %c4_i32 : i32 to index
    %c0_48 = arith.constant 0 : index
    %c0_49 = arith.constant 0 : index
    %175 = vector.load %arg2[%174, %c0_48, %c0_49] : memref<8x8x512xbf16, #tpu.memory_space<vmem>>, vector<1x8x512xbf16>
    %176 = vector.shape_cast %175 : vector<1x8x512xbf16> to vector<8x512xbf16>
    %177 = arith.extf %176 : vector<8x512xbf16> to vector<8x512xf32>
    %178 = arith.truncf %163 : vector<8x128xf32> to vector<8x128xbf16>
    %cst_50 = arith.constant dense<0.000000e+00> : vector<8x512xf32>
    %179 = tpu.matmul %178, %3, %cst_50 {dimension_numbers = #tpu.dot_dimension_numbers<[1], [0], [0], [1], [0, 0, 1, 1], [], []>} : vector<8x128xbf16>, vector<128x512xbf16>, vector<8x512xf32> -> vector<8x512xf32>
    %180 = arith.addf %177, %179 : vector<8x512xf32>
    %181 = vector.extract_strided_slice %180 {offsets = [0, 0], sizes = [8, 128], strides = [1, 1]} : vector<8x512xf32> to vector<8x128xf32>
    %182 = arith.negf %181 : vector<8x128xf32>
    %183 = math.exp %182 : vector<8x128xf32>
    %cst_51 = arith.constant 1.000000e+00 : f32
    %184 = vector.broadcast %cst_51 : f32 to vector<8x128xf32>
    %185 = arith.addf %184, %183 : vector<8x128xf32>
    %186 = arith.divf %184, %185 : vector<8x128xf32>
    %187 = vector.extract_strided_slice %180 {offsets = [0, 128], sizes = [8, 128], strides = [1, 1]} : vector<8x512xf32> to vector<8x128xf32>
    %188 = arith.negf %187 : vector<8x128xf32>
    %189 = math.exp %188 : vector<8x128xf32>
    %cst_52 = arith.constant 1.000000e+00 : f32
    %190 = vector.broadcast %cst_52 : f32 to vector<8x128xf32>
    %191 = arith.addf %190, %189 : vector<8x128xf32>
    %192 = arith.divf %190, %191 : vector<8x128xf32>
    %193 = vector.extract_strided_slice %180 {offsets = [0, 256], sizes = [8, 128], strides = [1, 1]} : vector<8x512xf32> to vector<8x128xf32>
    %194 = math.tanh %193 : vector<8x128xf32>
    %195 = vector.extract_strided_slice %180 {offsets = [0, 384], sizes = [8, 128], strides = [1, 1]} : vector<8x512xf32> to vector<8x128xf32>
    %196 = arith.negf %195 : vector<8x128xf32>
    %197 = math.exp %196 : vector<8x128xf32>
    %cst_53 = arith.constant 1.000000e+00 : f32
    %198 = vector.broadcast %cst_53 : f32 to vector<8x128xf32>
    %199 = arith.addf %198, %197 : vector<8x128xf32>
    %200 = arith.divf %198, %199 : vector<8x128xf32>
    %201 = arith.mulf %192, %161 : vector<8x128xf32>
    %202 = arith.mulf %186, %194 : vector<8x128xf32>
    %203 = arith.addf %201, %202 : vector<8x128xf32>
    %204 = math.tanh %203 : vector<8x128xf32>
    %205 = arith.mulf %200, %204 : vector<8x128xf32>
    %206 = arith.truncf %205 : vector<8x128xf32> to vector<8x128xbf16>
    %207 = arith.index_cast %c4_i32 : i32 to index
    %c0_54 = arith.constant 0 : index
    %c0_55 = arith.constant 0 : index
    %208 = vector.load %arg6[%207, %c0_54, %c0_55] : memref<8x8x128xbf16, #tpu.memory_space<vmem>>, vector<1x8x128xbf16>
    %209 = vector.shape_cast %208 : vector<1x8x128xbf16> to vector<8x128xbf16>
    %210 = vector.shape_cast %206 : vector<8x128xbf16> to vector<1x8x128xbf16>
    tpu.vector_store %arg6[%207, %c0_54, %c0_55], %210 {strides = array<i32>} : memref<8x8x128xbf16, #tpu.memory_space<vmem>>, vector<1x8x128xbf16>,
    %c8_i32_56 = arith.constant 8 : i32
    %211 = arith.muli %arg1, %c8_i32_56 : i32
    %212 = arith.addi %211, %c4_i32 : i32
    %c7_i32_57 = arith.constant 7 : i32
    %213 = arith.cmpi eq, %212, %c7_i32_57 : i32
    %214 = arith.extui %213 : i1 to i32
    %c0_i32_58 = arith.constant 0 : i32
    %215 = arith.cmpi ne, %214, %c0_i32_58 : i32
    scf.if %215 {
      %c0_98 = arith.constant 0 : index
      %c0_99 = arith.constant 0 : index
      %344 = vector.load %arg7[%c0_98, %c0_99] : memref<8x128xf32, #tpu.memory_space<vmem>>, vector<8x128xf32>
      tpu.vector_store %arg7[%c0_98, %c0_99], %205 {strides = array<i32>} : memref<8x128xf32, #tpu.memory_space<vmem>>, vector<8x128xf32>,
      %c0_100 = arith.constant 0 : index
      %c0_101 = arith.constant 0 : index
      %345 = vector.load %arg8[%c0_100, %c0_101] : memref<8x128xf32, #tpu.memory_space<vmem>>, vector<8x128xf32>
      tpu.vector_store %arg8[%c0_100, %c0_101], %203 {strides = array<i32>} : memref<8x128xf32, #tpu.memory_space<vmem>>, vector<8x128xf32>,
    } else {
    }
    %c5_i32 = arith.constant 5 : i32
    %216 = arith.index_cast %c5_i32 : i32 to index
    %c0_59 = arith.constant 0 : index
    %c0_60 = arith.constant 0 : index
    %217 = vector.load %arg2[%216, %c0_59, %c0_60] : memref<8x8x512xbf16, #tpu.memory_space<vmem>>, vector<1x8x512xbf16>
    %218 = vector.shape_cast %217 : vector<1x8x512xbf16> to vector<8x512xbf16>
    %219 = arith.extf %218 : vector<8x512xbf16> to vector<8x512xf32>
    %220 = arith.truncf %205 : vector<8x128xf32> to vector<8x128xbf16>
    %cst_61 = arith.constant dense<0.000000e+00> : vector<8x512xf32>
    %221 = tpu.matmul %220, %3, %cst_61 {dimension_numbers = #tpu.dot_dimension_numbers<[1], [0], [0], [1], [0, 0, 1, 1], [], []>} : vector<8x128xbf16>, vector<128x512xbf16>, vector<8x512xf32> -> vector<8x512xf32>
    %222 = arith.addf %219, %221 : vector<8x512xf32>
    %223 = vector.extract_strided_slice %222 {offsets = [0, 0], sizes = [8, 128], strides = [1, 1]} : vector<8x512xf32> to vector<8x128xf32>
    %224 = arith.negf %223 : vector<8x128xf32>
    %225 = math.exp %224 : vector<8x128xf32>
    %cst_62 = arith.constant 1.000000e+00 : f32
    %226 = vector.broadcast %cst_62 : f32 to vector<8x128xf32>
    %227 = arith.addf %226, %225 : vector<8x128xf32>
    %228 = arith.divf %226, %227 : vector<8x128xf32>
    %229 = vector.extract_strided_slice %222 {offsets = [0, 128], sizes = [8, 128], strides = [1, 1]} : vector<8x512xf32> to vector<8x128xf32>
    %230 = arith.negf %229 : vector<8x128xf32>
    %231 = math.exp %230 : vector<8x128xf32>
    %cst_63 = arith.constant 1.000000e+00 : f32
    %232 = vector.broadcast %cst_63 : f32 to vector<8x128xf32>
    %233 = arith.addf %232, %231 : vector<8x128xf32>
    %234 = arith.divf %232, %233 : vector<8x128xf32>
    %235 = vector.extract_strided_slice %222 {offsets = [0, 256], sizes = [8, 128], strides = [1, 1]} : vector<8x512xf32> to vector<8x128xf32>
    %236 = math.tanh %235 : vector<8x128xf32>
    %237 = vector.extract_strided_slice %222 {offsets = [0, 384], sizes = [8, 128], strides = [1, 1]} : vector<8x512xf32> to vector<8x128xf32>
    %238 = arith.negf %237 : vector<8x128xf32>
    %239 = math.exp %238 : vector<8x128xf32>
    %cst_64 = arith.constant 1.000000e+00 : f32
    %240 = vector.broadcast %cst_64 : f32 to vector<8x128xf32>
    %241 = arith.addf %240, %239 : vector<8x128xf32>
    %242 = arith.divf %240, %241 : vector<8x128xf32>
    %243 = arith.mulf %234, %203 : vector<8x128xf32>
    %244 = arith.mulf %228, %236 : vector<8x128xf32>
    %245 = arith.addf %243, %244 : vector<8x128xf32>
    %246 = math.tanh %245 : vector<8x128xf32>
    %247 = arith.mulf %242, %246 : vector<8x128xf32>
    %248 = arith.truncf %247 : vector<8x128xf32> to vector<8x128xbf16>
    %249 = arith.index_cast %c5_i32 : i32 to index
    %c0_65 = arith.constant 0 : index
    %c0_66 = arith.constant 0 : index
    %250 = vector.load %arg6[%249, %c0_65, %c0_66] : memref<8x8x128xbf16, #tpu.memory_space<vmem>>, vector<1x8x128xbf16>
    %251 = vector.shape_cast %250 : vector<1x8x128xbf16> to vector<8x128xbf16>
    %252 = vector.shape_cast %248 : vector<8x128xbf16> to vector<1x8x128xbf16>
    tpu.vector_store %arg6[%249, %c0_65, %c0_66], %252 {strides = array<i32>} : memref<8x8x128xbf16, #tpu.memory_space<vmem>>, vector<1x8x128xbf16>,
    %c8_i32_67 = arith.constant 8 : i32
    %253 = arith.muli %arg1, %c8_i32_67 : i32
    %254 = arith.addi %253, %c5_i32 : i32
    %c7_i32_68 = arith.constant 7 : i32
    %255 = arith.cmpi eq, %254, %c7_i32_68 : i32
    %256 = arith.extui %255 : i1 to i32
    %c0_i32_69 = arith.constant 0 : i32
    %257 = arith.cmpi ne, %256, %c0_i32_69 : i32
    scf.if %257 {
      %c0_98 = arith.constant 0 : index
      %c0_99 = arith.constant 0 : index
      %344 = vector.load %arg7[%c0_98, %c0_99] : memref<8x128xf32, #tpu.memory_space<vmem>>, vector<8x128xf32>
      tpu.vector_store %arg7[%c0_98, %c0_99], %247 {strides = array<i32>} : memref<8x128xf32, #tpu.memory_space<vmem>>, vector<8x128xf32>,
      %c0_100 = arith.constant 0 : index
      %c0_101 = arith.constant 0 : index
      %345 = vector.load %arg8[%c0_100, %c0_101] : memref<8x128xf32, #tpu.memory_space<vmem>>, vector<8x128xf32>
      tpu.vector_store %arg8[%c0_100, %c0_101], %245 {strides = array<i32>} : memref<8x128xf32, #tpu.memory_space<vmem>>, vector<8x128xf32>,
    } else {
    }
    %c6_i32 = arith.constant 6 : i32
    %258 = arith.index_cast %c6_i32 : i32 to index
    %c0_70 = arith.constant 0 : index
    %c0_71 = arith.constant 0 : index
    %259 = vector.load %arg2[%258, %c0_70, %c0_71] : memref<8x8x512xbf16, #tpu.memory_space<vmem>>, vector<1x8x512xbf16>
    %260 = vector.shape_cast %259 : vector<1x8x512xbf16> to vector<8x512xbf16>
    %261 = arith.extf %260 : vector<8x512xbf16> to vector<8x512xf32>
    %262 = arith.truncf %247 : vector<8x128xf32> to vector<8x128xbf16>
    %cst_72 = arith.constant dense<0.000000e+00> : vector<8x512xf32>
    %263 = tpu.matmul %262, %3, %cst_72 {dimension_numbers = #tpu.dot_dimension_numbers<[1], [0], [0], [1], [0, 0, 1, 1], [], []>} : vector<8x128xbf16>, vector<128x512xbf16>, vector<8x512xf32> -> vector<8x512xf32>
    %264 = arith.addf %261, %263 : vector<8x512xf32>
    %265 = vector.extract_strided_slice %264 {offsets = [0, 0], sizes = [8, 128], strides = [1, 1]} : vector<8x512xf32> to vector<8x128xf32>
    %266 = arith.negf %265 : vector<8x128xf32>
    %267 = math.exp %266 : vector<8x128xf32>
    %cst_73 = arith.constant 1.000000e+00 : f32
    %268 = vector.broadcast %cst_73 : f32 to vector<8x128xf32>
    %269 = arith.addf %268, %267 : vector<8x128xf32>
    %270 = arith.divf %268, %269 : vector<8x128xf32>
    %271 = vector.extract_strided_slice %264 {offsets = [0, 128], sizes = [8, 128], strides = [1, 1]} : vector<8x512xf32> to vector<8x128xf32>
    %272 = arith.negf %271 : vector<8x128xf32>
    %273 = math.exp %272 : vector<8x128xf32>
    %cst_74 = arith.constant 1.000000e+00 : f32
    %274 = vector.broadcast %cst_74 : f32 to vector<8x128xf32>
    %275 = arith.addf %274, %273 : vector<8x128xf32>
    %276 = arith.divf %274, %275 : vector<8x128xf32>
    %277 = vector.extract_strided_slice %264 {offsets = [0, 256], sizes = [8, 128], strides = [1, 1]} : vector<8x512xf32> to vector<8x128xf32>
    %278 = math.tanh %277 : vector<8x128xf32>
    %279 = vector.extract_strided_slice %264 {offsets = [0, 384], sizes = [8, 128], strides = [1, 1]} : vector<8x512xf32> to vector<8x128xf32>
    %280 = arith.negf %279 : vector<8x128xf32>
    %281 = math.exp %280 : vector<8x128xf32>
    %cst_75 = arith.constant 1.000000e+00 : f32
    %282 = vector.broadcast %cst_75 : f32 to vector<8x128xf32>
    %283 = arith.addf %282, %281 : vector<8x128xf32>
    %284 = arith.divf %282, %283 : vector<8x128xf32>
    %285 = arith.mulf %276, %245 : vector<8x128xf32>
    %286 = arith.mulf %270, %278 : vector<8x128xf32>
    %287 = arith.addf %285, %286 : vector<8x128xf32>
    %288 = math.tanh %287 : vector<8x128xf32>
    %289 = arith.mulf %284, %288 : vector<8x128xf32>
    %290 = arith.truncf %289 : vector<8x128xf32> to vector<8x128xbf16>
    %291 = arith.index_cast %c6_i32 : i32 to index
    %c0_76 = arith.constant 0 : index
    %c0_77 = arith.constant 0 : index
    %292 = vector.load %arg6[%291, %c0_76, %c0_77] : memref<8x8x128xbf16, #tpu.memory_space<vmem>>, vector<1x8x128xbf16>
    %293 = vector.shape_cast %292 : vector<1x8x128xbf16> to vector<8x128xbf16>
    %294 = vector.shape_cast %290 : vector<8x128xbf16> to vector<1x8x128xbf16>
    tpu.vector_store %arg6[%291, %c0_76, %c0_77], %294 {strides = array<i32>} : memref<8x8x128xbf16, #tpu.memory_space<vmem>>, vector<1x8x128xbf16>,
    %c8_i32_78 = arith.constant 8 : i32
    %295 = arith.muli %arg1, %c8_i32_78 : i32
    %296 = arith.addi %295, %c6_i32 : i32
    %c7_i32_79 = arith.constant 7 : i32
    %297 = arith.cmpi eq, %296, %c7_i32_79 : i32
    %298 = arith.extui %297 : i1 to i32
    %c0_i32_80 = arith.constant 0 : i32
    %299 = arith.cmpi ne, %298, %c0_i32_80 : i32
    scf.if %299 {
      %c0_98 = arith.constant 0 : index
      %c0_99 = arith.constant 0 : index
      %344 = vector.load %arg7[%c0_98, %c0_99] : memref<8x128xf32, #tpu.memory_space<vmem>>, vector<8x128xf32>
      tpu.vector_store %arg7[%c0_98, %c0_99], %289 {strides = array<i32>} : memref<8x128xf32, #tpu.memory_space<vmem>>, vector<8x128xf32>,
      %c0_100 = arith.constant 0 : index
      %c0_101 = arith.constant 0 : index
      %345 = vector.load %arg8[%c0_100, %c0_101] : memref<8x128xf32, #tpu.memory_space<vmem>>, vector<8x128xf32>
      tpu.vector_store %arg8[%c0_100, %c0_101], %287 {strides = array<i32>} : memref<8x128xf32, #tpu.memory_space<vmem>>, vector<8x128xf32>,
    } else {
    }
    %c7_i32_81 = arith.constant 7 : i32
    %300 = arith.index_cast %c7_i32_81 : i32 to index
    %c0_82 = arith.constant 0 : index
    %c0_83 = arith.constant 0 : index
    %301 = vector.load %arg2[%300, %c0_82, %c0_83] : memref<8x8x512xbf16, #tpu.memory_space<vmem>>, vector<1x8x512xbf16>
    %302 = vector.shape_cast %301 : vector<1x8x512xbf16> to vector<8x512xbf16>
    %303 = arith.extf %302 : vector<8x512xbf16> to vector<8x512xf32>
    %304 = arith.truncf %289 : vector<8x128xf32> to vector<8x128xbf16>
    %cst_84 = arith.constant dense<0.000000e+00> : vector<8x512xf32>
    %305 = tpu.matmul %304, %3, %cst_84 {dimension_numbers = #tpu.dot_dimension_numbers<[1], [0], [0], [1], [0, 0, 1, 1], [], []>} : vector<8x128xbf16>, vector<128x512xbf16>, vector<8x512xf32> -> vector<8x512xf32>
    %306 = arith.addf %303, %305 : vector<8x512xf32>
    %307 = vector.extract_strided_slice %306 {offsets = [0, 0], sizes = [8, 128], strides = [1, 1]} : vector<8x512xf32> to vector<8x128xf32>
    %308 = arith.negf %307 : vector<8x128xf32>
    %309 = math.exp %308 : vector<8x128xf32>
    %cst_85 = arith.constant 1.000000e+00 : f32
    %310 = vector.broadcast %cst_85 : f32 to vector<8x128xf32>
    %311 = arith.addf %310, %309 : vector<8x128xf32>
    %312 = arith.divf %310, %311 : vector<8x128xf32>
    %313 = vector.extract_strided_slice %306 {offsets = [0, 128], sizes = [8, 128], strides = [1, 1]} : vector<8x512xf32> to vector<8x128xf32>
    %314 = arith.negf %313 : vector<8x128xf32>
    %315 = math.exp %314 : vector<8x128xf32>
    %cst_86 = arith.constant 1.000000e+00 : f32
    %316 = vector.broadcast %cst_86 : f32 to vector<8x128xf32>
    %317 = arith.addf %316, %315 : vector<8x128xf32>
    %318 = arith.divf %316, %317 : vector<8x128xf32>
    %319 = vector.extract_strided_slice %306 {offsets = [0, 256], sizes = [8, 128], strides = [1, 1]} : vector<8x512xf32> to vector<8x128xf32>
    %320 = math.tanh %319 : vector<8x128xf32>
    %321 = vector.extract_strided_slice %306 {offsets = [0, 384], sizes = [8, 128], strides = [1, 1]} : vector<8x512xf32> to vector<8x128xf32>
    %322 = arith.negf %321 : vector<8x128xf32>
    %323 = math.exp %322 : vector<8x128xf32>
    %cst_87 = arith.constant 1.000000e+00 : f32
    %324 = vector.broadcast %cst_87 : f32 to vector<8x128xf32>
    %325 = arith.addf %324, %323 : vector<8x128xf32>
    %326 = arith.divf %324, %325 : vector<8x128xf32>
    %327 = arith.mulf %318, %287 : vector<8x128xf32>
    %328 = arith.mulf %312, %320 : vector<8x128xf32>
    %329 = arith.addf %327, %328 : vector<8x128xf32>
    %330 = math.tanh %329 : vector<8x128xf32>
    %331 = arith.mulf %326, %330 : vector<8x128xf32>
    %332 = arith.truncf %331 : vector<8x128xf32> to vector<8x128xbf16>
    %333 = arith.index_cast %c7_i32_81 : i32 to index
    %c0_88 = arith.constant 0 : index
    %c0_89 = arith.constant 0 : index
    %334 = vector.load %arg6[%333, %c0_88, %c0_89] : memref<8x8x128xbf16, #tpu.memory_space<vmem>>, vector<1x8x128xbf16>
    %335 = vector.shape_cast %334 : vector<1x8x128xbf16> to vector<8x128xbf16>
    %336 = vector.shape_cast %332 : vector<8x128xbf16> to vector<1x8x128xbf16>
    tpu.vector_store %arg6[%333, %c0_88, %c0_89], %336 {strides = array<i32>} : memref<8x8x128xbf16, #tpu.memory_space<vmem>>, vector<1x8x128xbf16>,
    %c8_i32_90 = arith.constant 8 : i32
    %337 = arith.muli %arg1, %c8_i32_90 : i32
    %338 = arith.addi %337, %c7_i32_81 : i32
    %c7_i32_91 = arith.constant 7 : i32
    %339 = arith.cmpi eq, %338, %c7_i32_91 : i32
    %340 = arith.extui %339 : i1 to i32
    %c0_i32_92 = arith.constant 0 : i32
    %341 = arith.cmpi ne, %340, %c0_i32_92 : i32
    scf.if %341 {
      %c0_98 = arith.constant 0 : index
      %c0_99 = arith.constant 0 : index
      %344 = vector.load %arg7[%c0_98, %c0_99] : memref<8x128xf32, #tpu.memory_space<vmem>>, vector<8x128xf32>
      tpu.vector_store %arg7[%c0_98, %c0_99], %331 {strides = array<i32>} : memref<8x128xf32, #tpu.memory_space<vmem>>, vector<8x128xf32>,
      %c0_100 = arith.constant 0 : index
      %c0_101 = arith.constant 0 : index
      %345 = vector.load %arg8[%c0_100, %c0_101] : memref<8x128xf32, #tpu.memory_space<vmem>>, vector<8x128xf32>
      tpu.vector_store %arg8[%c0_100, %c0_101], %329 {strides = array<i32>} : memref<8x128xf32, #tpu.memory_space<vmem>>, vector<8x128xf32>,
    } else {
    }
    %c8_i32_93 = arith.constant 8 : i32
    %c0_94 = arith.constant 0 : index
    %c0_95 = arith.constant 0 : index
    %342 = vector.load %arg10[%c0_94, %c0_95] : memref<8x128xf32, #tpu.memory_space<vmem>>, vector<8x128xf32>
    tpu.vector_store %arg10[%c0_94, %c0_95], %331 {strides = array<i32>} : memref<8x128xf32, #tpu.memory_space<vmem>>, vector<8x128xf32>,
    %c0_96 = arith.constant 0 : index
    %c0_97 = arith.constant 0 : index
    %343 = vector.load %arg11[%c0_96, %c0_97] : memref<8x128xf32, #tpu.memory_space<vmem>>, vector<8x128xf32>
    tpu.vector_store %arg11[%c0_96, %c0_97], %329 {strides = array<i32>} : memref<8x128xf32, #tpu.memory_space<vmem>>, vector<8x128xf32>,
    return
  }
  func.func @transform_0(%arg0: i32, %arg1: i32) -> (i32, i32, i32) {
    %c0_i32 = arith.constant 0 : i32
    %c0_i32_0 = arith.constant 0 : i32
    return %arg1, %arg0, %c0_i32 : i32, i32, i32
  }
  func.func @transform_1(%arg0: i32, %arg1: i32) -> (i32, i32) {
    %c0_i32 = arith.constant 0 : i32
    %c0_i32_0 = arith.constant 0 : i32
    return %arg0, %c0_i32 : i32, i32
  }
  func.func @transform_2(%arg0: i32, %arg1: i32) -> (i32, i32) {
    %c0_i32 = arith.constant 0 : i32
    %c0_i32_0 = arith.constant 0 : i32
    return %arg0, %c0_i32 : i32, i32
  }
  func.func @transform_4(%arg0: i32, %arg1: i32) -> (i32, i32, i32) {
    %c0_i32 = arith.constant 0 : i32
    %c0_i32_0 = arith.constant 0 : i32
    return %arg1, %arg0, %c0_i32 : i32, i32, i32
  }
  func.func @transform_5(%arg0: i32, %arg1: i32) -> (i32, i32) {
    %c0_i32 = arith.constant 0 : i32
    %c0_i32_0 = arith.constant 0 : i32
    return %arg0, %c0_i32 : i32, i32
  }
  func.func @transform_6(%arg0: i32, %arg1: i32) -> (i32, i32) {
    %c0_i32 = arith.constant 0 : i32
    %c0_i32_0 = arith.constant 0 : i32
    return %arg0, %c0_i32 : i32, i32
  }
}

</mosaic_0001>

<llo_original>
// kernel: forward.3
$region0: #{forward.3}
  #allocation0 [shape = 'u32[]', space=smem, size = 0x4, offset = 0x4, fixed_abs, tag = 'smem constant byte address 0x4 - core index']
  #allocation1 [shape = 'u32[144,128]{1,0:T(1,128)}', space=vmem, size = 0x12000, scoped, tag = 'internal scratch']
  #allocation2 [shape = 'bf16[128,512]{1,0:T(16,128)(2,1)}', space=vmem, size = 0x20000, scoped, tag = 'scratch operand']
  #allocation3 [shape = 'f32[8,128]{1,0:T(8,128)}', space=vmem, size = 0x1000, scoped, tag = 'scratch operand']
  #allocation4 [shape = 'f32[8,128]{1,0:T(8,128)}', space=vmem, size = 0x1000, scoped, tag = 'scratch operand']
  #allocation5 [shape = 's32[1]{0}', space=sflag, size = 0x4, scoped, tag = 'scratch operand']
  #allocation6 [shape = 's32[]', space=sflag, size = 0x4, offset = 0, fixed_abs, tag = 'sflag constant byte address 0x0 - dummy sync flag']
  %s0 = inlined_call_operand.vmem [shape: bf16[8,8,512], index: 0, kind: input, shape index: {}]
  %s1 = inlined_call_operand.vmem [shape: f32[8,128], index: 1, kind: input, shape index: {}]
  %s2 = inlined_call_operand.vmem [shape: f32[8,128], index: 2, kind: input, shape index: {}]
  %s3 = inlined_call_operand.vmem [shape: bf16[128,512], index: 3, kind: input, shape index: {}]
  %s4 = inlined_call_operand.vmem [shape: f32[8,8,128], index: 4, kind: output, shape index: {0}]
  %s5 = inlined_call_operand.vmem [shape: f32[8,128], index: 5, kind: output, shape index: {1}]
  %s6 = inlined_call_operand.vmem [shape: f32[8,128], index: 6, kind: output, shape index: {2}]
  %7 = xla_tuple %s4, %s5, %s6
  %s8 = sld [smem:[#allocation0]]
  $region111: #{forward.3} parent=0
    _
  %s10 = ssub.s32 1, %s8
  %s11 = scalar_select 0, %s10, %s8
  // Predicated region
  $region2: #{forward.3} parent=0 // pred_check
    _
  $region3: #{forward.3} parent=0 // pred_check_branch
    %13 = sbr.rel (0) target = $region5
  $region4: #{forward.3} parent=0 // pred_region
    _
  $region5: #{forward.3} parent=0 // pred_fallthru
    _
  // Predicated region
  $region6: #{forward.3} parent=0 // pred_check
    _
  $region7: #{forward.3} parent=0 // pred_check_branch
    %15 = sbr.rel (0) target = $region9
  $region8: #{forward.3} parent=0 // pred_region
    _
  $region9: #{forward.3} parent=0 // pred_fallthru
    _
  // Predicated region
  $region10: #{forward.3} parent=0 // pred_check
    _
  $region11: #{forward.3} parent=0 // pred_check_branch
    %17 = sbr.rel (0) target = $region13
  $region12: #{forward.3} parent=0 // pred_region
    _
  $region13: #{forward.3} parent=0 // pred_fallthru
    _
  %p19 = scmp.eq.s32.totalorder 0, 0
  // Predicated region
  $region14: #{forward.3} parent=0 // pred_check
    %p20 = pneg %p19
  $region15: #{forward.3} parent=0 // pred_check_branch
    %22 = sbr.rel (%p20) target = $region17
  $region16: #{forward.3} parent=0 // pred_region
    %p24 = scmp.lt.u32.totalorder 4, 8
    %p25 = pneg %p24
    // Predicated region
    $region18: #{forward.3} parent=16 // pred_check
      _
    $region19: #{forward.3} parent=16 // pred_check_branch
      %27 = sbr.rel (%p24) target = $region21
    $region20: #{forward.3} parent=16 // pred_region
      %s168 = sand.u32 4, 7
      %p169 = scmp.eq.s32.totalorder %s168, 0
      %p170 = pneg %p169
      // Predicated region
      $region33: #{forward.3} parent=20 // pred_check
        _
      $region34: #{forward.3} parent=20 // pred_check_branch
        %172 = sbr.rel (%p169) target = $region36
      $region35: #{forward.3} parent=20 // pred_region
        %s173 = sand.u32 4, 7
        %s174 = ssub.s32 4, %s173
        %s175 = scalar_lea.vmem %s3, %s174
        %s176 = ssub.s32 4, %s173
        %s177 = scalar_lea.vmem [#allocation2], %s176
        loop: start=0, step=1, limit=1
        $region37: #{forward.3} parent=35 // loop_pre_header
          _
        $region38: #{forward.3} parent=35 // loop_header
          %s179 = sphi 0, %s183
          %p180 = scmp.ge.s32.totalorder %s179, 1
          %s184 = sphi %s3, %s3
          %s185 = sphi [#allocation2], [#allocation2]
        $region39: #{forward.3} parent=35 // loop_header_branch
          %182 = sbr.rel (%p180) target = $region43
        $region40: #{forward.3} parent=35 // loop_body
          _
        $region41: #{forward.3} parent=35 // loop_footer
          %s183 = sadd.s32 1, %s179
        $region42: #{forward.3} parent=35 // loop_footer_branch
          %178 = sbr.rel target = $region38
        $region43: #{forward.3} parent=35 // loop_exit
          _
        %s186 = sshllo.u32 0, %s173
        loop: start=0, step=1, limit=1
        $region44: #{forward.3} parent=35 // loop_pre_header
          _
        $region45: #{forward.3} parent=35 // loop_header
          %s188 = sphi 0, %s192
          %p189 = scmp.ge.s32.totalorder %s188, 1
          %s193 = sphi %s175, %s175
          %s194 = sphi %s177, %s177
        $region46: #{forward.3} parent=35 // loop_header_branch
          %191 = sbr.rel (%p189) target = $region50
        $region47: #{forward.3} parent=35 // loop_body
          %v195 = vld [vmem:[%s193] sm:%s186]
          %196 = vst [vmem:[%s194] sm:%s186] %v195
          %v197 = vld [vmem:[%s193 + $0x10] sm:%s186]
          %198 = vst [vmem:[%s194 + $0x4] sm:%s186] %v197
          %v199 = vld [vmem:[%s193 + $0x4] sm:%s186]
          %200 = vst [vmem:[%s194 + $0x8] sm:%s186] %v199
          %v201 = vld [vmem:[%s193 + $0x14] sm:%s186]
          %202 = vst [vmem:[%s194 + $0xc] sm:%s186] %v201
          %v203 = vld [vmem:[%s193 + $0x8] sm:%s186]
          %204 = vst [vmem:[%s194 + $0x10] sm:%s186] %v203
          %v205 = vld [vmem:[%s193 + $0x18] sm:%s186]
          %206 = vst [vmem:[%s194 + $0x14] sm:%s186] %v205
          %v207 = vld [vmem:[%s193 + $0xc] sm:%s186]
          %208 = vst [vmem:[%s194 + $0x18] sm:%s186] %v207
          %v209 = vld [vmem:[%s193 + $0x1c] sm:%s186]
          %210 = vst [vmem:[%s194 + $0x1c] sm:%s186] %v209
          %v211 = vld [vmem:[%s193 + $0x20] sm:%s186]
          %212 = vst [vmem:[%s194 + $0x20] sm:%s186] %v211
          %v213 = vld [vmem:[%s193 + $0x30] sm:%s186]
          %214 = vst [vmem:[%s194 + $0x24] sm:%s186] %v213
          %v215 = vld [vmem:[%s193 + $0x24] sm:%s186]
          %216 = vst [vmem:[%s194 + $0x28] sm:%s186] %v215
          %v217 = vld [vmem:[%s193 + $0x34] sm:%s186]
          %218 = vst [vmem:[%s194 + $0x2c] sm:%s186] %v217
          %v219 = vld [vmem:[%s193 + $0x28] sm:%s186]
          %220 = vst [vmem:[%s194 + $0x30] sm:%s186] %v219
          %v221 = vld [vmem:[%s193 + $0x38] sm:%s186]
          %222 = vst [vmem:[%s194 + $0x34] sm:%s186] %v221
          %v223 = vld [vmem:[%s193 + $0x2c] sm:%s186]
          %224 = vst [vmem:[%s194 + $0x38] sm:%s186] %v223
          %v225 = vld [vmem:[%s193 + $0x3c] sm:%s186]
          %226 = vst [vmem:[%s194 + $0x3c] sm:%s186] %v225
          %v227 = vld [vmem:[%s193 + $0x40] sm:%s186]
          %228 = vst [vmem:[%s194 + $0x40] sm:%s186] %v227
          %v229 = vld [vmem:[%s193 + $0x50] sm:%s186]
          %230 = vst [vmem:[%s194 + $0x44] sm:%s186] %v229
          %v231 = vld [vmem:[%s193 + $0x44] sm:%s186]
          %232 = vst [vmem:[%s194 + $0x48] sm:%s186] %v231
          %v233 = vld [vmem:[%s193 + $0x54] sm:%s186]
          %234 = vst [vmem:[%s194 + $0x4c] sm:%s186] %v233
          %v235 = vld [vmem:[%s193 + $0x48] sm:%s186]
          %236 = vst [vmem:[%s194 + $0x50] sm:%s186] %v235
          %v237 = vld [vmem:[%s193 + $0x58] sm:%s186]
          %238 = vst [vmem:[%s194 + $0x54] sm:%s186] %v237
          %v239 = vld [vmem:[%s193 + $0x4c] sm:%s186]
          %240 = vst [vmem:[%s194 + $0x58] sm:%s186] %v239
          %v241 = vld [vmem:[%s193 + $0x5c] sm:%s186]
          %242 = vst [vmem:[%s194 + $0x5c] sm:%s186] %v241
          %v243 = vld [vmem:[%s193 + $0x60] sm:%s186]
          %244 = vst [vmem:[%s194 + $0x60] sm:%s186] %v243
          %v245 = vld [vmem:[%s193 + $0x70] sm:%s186]
          %246 = vst [vmem:[%s194 + $0x64] sm:%s186] %v245
          %v247 = vld [vmem:[%s193 + $0x64] sm:%s186]
          %248 = vst [vmem:[%s194 + $0x68] sm:%s186] %v247
          %v249 = vld [vmem:[%s193 + $0x74] sm:%s186]
          %250 = vst [vmem:[%s194 + $0x6c] sm:%s186] %v249
          %v251 = vld [vmem:[%s193 + $0x68] sm:%s186]
          %252 = vst [vmem:[%s194 + $0x70] sm:%s186] %v251
          %v253 = vld [vmem:[%s193 + $0x78] sm:%s186]
          %254 = vst [vmem:[%s194 + $0x74] sm:%s186] %v253
          %v255 = vld [vmem:[%s193 + $0x6c] sm:%s186]
          %256 = vst [vmem:[%s194 + $0x78] sm:%s186] %v255
          %v257 = vld [vmem:[%s193 + $0x7c] sm:%s186]
          %258 = vst [vmem:[%s194 + $0x7c] sm:%s186] %v257
          %v259 = vld [vmem:[%s193 + $0x80] sm:%s186]
          %260 = vst [vmem:[%s194 + $0x80] sm:%s186] %v259
          %v261 = vld [vmem:[%s193 + $0x90] sm:%s186]
          %262 = vst [vmem:[%s194 + $0x84] sm:%s186] %v261
          %v263 = vld [vmem:[%s193 + $0x84] sm:%s186]
          %264 = vst [vmem:[%s194 + $0x88] sm:%s186] %v263
          %v265 = vld [vmem:[%s193 + $0x94] sm:%s186]
          %266 = vst [vmem:[%s194 + $0x8c] sm:%s186] %v265
          %v267 = vld [vmem:[%s193 + $0x88] sm:%s186]
          %268 = vst [vmem:[%s194 + $0x90] sm:%s186] %v267
          %v269 = vld [vmem:[%s193 + $0x98] sm:%s186]
          %270 = vst [vmem:[%s194 + $0x94] sm:%s186] %v269
          %v271 = vld [vmem:[%s193 + $0x8c] sm:%s186]
          %272 = vst [vmem:[%s194 + $0x98] sm:%s186] %v271
          %v273 = vld [vmem:[%s193 + $0x9c] sm:%s186]
          %274 = vst [vmem:[%s194 + $0x9c] sm:%s186] %v273
          %v275 = vld [vmem:[%s193 + $0xa0] sm:%s186]
          %276 = vst [vmem:[%s194 + $0xa0] sm:%s186] %v275
          %v277 = vld [vmem:[%s193 + $0xb0] sm:%s186]
          %278 = vst [vmem:[%s194 + $0xa4] sm:%s186] %v277
          %v279 = vld [vmem:[%s193 + $0xa4] sm:%s186]
          %280 = vst [vmem:[%s194 + $0xa8] sm:%s186] %v279
          %v281 = vld [vmem:[%s193 + $0xb4] sm:%s186]
          %282 = vst [vmem:[%s194 + $0xac] sm:%s186] %v281
          %v283 = vld [vmem:[%s193 + $0xa8] sm:%s186]
          %284 = vst [vmem:[%s194 + $0xb0] sm:%s186] %v283
          %v285 = vld [vmem:[%s193 + $0xb8] sm:%s186]
          %286 = vst [vmem:[%s194 + $0xb4] sm:%s186] %v285
          %v287 = vld [vmem:[%s193 + $0xac] sm:%s186]
          %288 = vst [vmem:[%s194 + $0xb8] sm:%s186] %v287
          %v289 = vld [vmem:[%s193 + $0xbc] sm:%s186]
          %290 = vst [vmem:[%s194 + $0xbc] sm:%s186] %v289
          %v291 = vld [vmem:[%s193 + $0xc0] sm:%s186]
          %292 = vst [vmem:[%s194 + $0xc0] sm:%s186] %v291
          %v293 = vld [vmem:[%s193 + $0xd0] sm:%s186]
          %294 = vst [vmem:[%s194 + $0xc4] sm:%s186] %v293
          %v295 = vld [vmem:[%s193 + $0xc4] sm:%s186]
          %296 = vst [vmem:[%s194 + $0xc8] sm:%s186] %v295
          %v297 = vld [vmem:[%s193 + $0xd4] sm:%s186]
          %298 = vst [vmem:[%s194 + $0xcc] sm:%s186] %v297
          %v299 = vld [vmem:[%s193 + $0xc8] sm:%s186]
          %300 = vst [vmem:[%s194 + $0xd0] sm:%s186] %v299
          %v301 = vld [vmem:[%s193 + $0xd8] sm:%s186]
          %302 = vst [vmem:[%s194 + $0xd4] sm:%s186] %v301
          %v303 = vld [vmem:[%s193 + $0xcc] sm:%s186]
          %304 = vst [vmem:[%s194 + $0xd8] sm:%s186] %v303
          %v305 = vld [vmem:[%s193 + $0xdc] sm:%s186]
          %306 = vst [vmem:[%s194 + $0xdc] sm:%s186] %v305
          %v307 = vld [vmem:[%s193 + $0xe0] sm:%s186]
          %308 = vst [vmem:[%s194 + $0xe0] sm:%s186] %v307
          %v309 = vld [vmem:[%s193 + $0xf0] sm:%s186]
          %310 = vst [vmem:[%s194 + $0xe4] sm:%s186] %v309
          %v311 = vld [vmem:[%s193 + $0xe4] sm:%s186]
          %312 = vst [vmem:[%s194 + $0xe8] sm:%s186] %v311
          %v313 = vld [vmem:[%s193 + $0xf4] sm:%s186]
          %314 = vst [vmem:[%s194 + $0xec] sm:%s186] %v313
          %v315 = vld [vmem:[%s193 + $0xe8] sm:%s186]
          %316 = vst [vmem:[%s194 + $0xf0] sm:%s186] %v315
          %v317 = vld [vmem:[%s193 + $0xf8] sm:%s186]
          %318 = vst [vmem:[%s194 + $0xf4] sm:%s186] %v317
          %v319 = vld [vmem:[%s193 + $0xec] sm:%s186]
          %320 = vst [vmem:[%s194 + $0xf8] sm:%s186] %v319
          %v321 = vld [vmem:[%s193 + $0xfc] sm:%s186]
          %322 = vst [vmem:[%s194 + $0xfc] sm:%s186] %v321
        $region48: #{forward.3} parent=35 // loop_footer
          %s192 = sadd.s32 1, %s188
        $region49: #{forward.3} parent=35 // loop_footer_branch
          %187 = sbr.rel target = $region45
        $region50: #{forward.3} parent=35 // loop_exit
          _
      $region36: #{forward.3} parent=20 // pred_fallthru
        _
    $region21: #{forward.3} parent=16 // pred_fallthru
      _
    // Predicated region
    $region22: #{forward.3} parent=16 // pred_check
      %p28 = pneg %p24
    $region23: #{forward.3} parent=16 // pred_check_branch
      %30 = sbr.rel (%p28) target = $region25
    $region24: #{forward.3} parent=16 // pred_region
      %s31 = sshllo.u32 0, 4
      loop: start=0, step=1, limit=1
      $region26: #{forward.3} parent=24 // loop_pre_header
        _
      $region27: #{forward.3} parent=24 // loop_header
        %s33 = sphi 0, %s37
        %p34 = scmp.ge.s32.totalorder %s33, 1
        %s38 = sphi %s3, %s3
        %s39 = sphi [#allocation2], [#allocation2]
      $region28: #{forward.3} parent=24 // loop_header_branch
        %36 = sbr.rel (%p34) target = $region32
      $region29: #{forward.3} parent=24 // loop_body
        %v40 = vld [vmem:[%s38] sm:%s31]
        %41 = vst [vmem:[%s39] sm:%s31] %v40
        %v42 = vld [vmem:[%s38 + $0x10] sm:%s31]
        %43 = vst [vmem:[%s39 + $0x4] sm:%s31] %v42
        %v44 = vld [vmem:[%s38 + $0x4] sm:%s31]
        %45 = vst [vmem:[%s39 + $0x8] sm:%s31] %v44
        %v46 = vld [vmem:[%s38 + $0x14] sm:%s31]
        %47 = vst [vmem:[%s39 + $0xc] sm:%s31] %v46
        %v48 = vld [vmem:[%s38 + $0x8] sm:%s31]
        %49 = vst [vmem:[%s39 + $0x10] sm:%s31] %v48
        %v50 = vld [vmem:[%s38 + $0x18] sm:%s31]
        %51 = vst [vmem:[%s39 + $0x14] sm:%s31] %v50
        %v52 = vld [vmem:[%s38 + $0xc] sm:%s31]
        %53 = vst [vmem:[%s39 + $0x18] sm:%s31] %v52
        %v54 = vld [vmem:[%s38 + $0x1c] sm:%s31]
        %55 = vst [vmem:[%s39 + $0x1c] sm:%s31] %v54
        %v56 = vld [vmem:[%s38 + $0x20] sm:%s31]
        %57 = vst [vmem:[%s39 + $0x20] sm:%s31] %v56
        %v58 = vld [vmem:[%s38 + $0x30] sm:%s31]
        %59 = vst [vmem:[%s39 + $0x24] sm:%s31] %v58
        %v60 = vld [vmem:[%s38 + $0x24] sm:%s31]
        %61 = vst [vmem:[%s39 + $0x28] sm:%s31] %v60
        %v62 = vld [vmem:[%s38 + $0x34] sm:%s31]
        %63 = vst [vmem:[%s39 + $0x2c] sm:%s31] %v62
        %v64 = vld [vmem:[%s38 + $0x28] sm:%s31]
        %65 = vst [vmem:[%s39 + $0x30] sm:%s31] %v64
        %v66 = vld [vmem:[%s38 + $0x38] sm:%s31]
        %67 = vst [vmem:[%s39 + $0x34] sm:%s31] %v66
        %v68 = vld [vmem:[%s38 + $0x2c] sm:%s31]
        %69 = vst [vmem:[%s39 + $0x38] sm:%s31] %v68
        %v70 = vld [vmem:[%s38 + $0x3c] sm:%s31]
        %71 = vst [vmem:[%s39 + $0x3c] sm:%s31] %v70
        %v72 = vld [vmem:[%s38 + $0x40] sm:%s31]
        %73 = vst [vmem:[%s39 + $0x40] sm:%s31] %v72
        %v74 = vld [vmem:[%s38 + $0x50] sm:%s31]
        %75 = vst [vmem:[%s39 + $0x44] sm:%s31] %v74
        %v76 = vld [vmem:[%s38 + $0x44] sm:%s31]
        %77 = vst [vmem:[%s39 + $0x48] sm:%s31] %v76
        %v78 = vld [vmem:[%s38 + $0x54] sm:%s31]
        %79 = vst [vmem:[%s39 + $0x4c] sm:%s31] %v78
        %v80 = vld [vmem:[%s38 + $0x48] sm:%s31]
        %81 = vst [vmem:[%s39 + $0x50] sm:%s31] %v80
        %v82 = vld [vmem:[%s38 + $0x58] sm:%s31]
        %83 = vst [vmem:[%s39 + $0x54] sm:%s31] %v82
        %v84 = vld [vmem:[%s38 + $0x4c] sm:%s31]
        %85 = vst [vmem:[%s39 + $0x58] sm:%s31] %v84
        %v86 = vld [vmem:[%s38 + $0x5c] sm:%s31]
        %87 = vst [vmem:[%s39 + $0x5c] sm:%s31] %v86
        %v88 = vld [vmem:[%s38 + $0x60] sm:%s31]
        %89 = vst [vmem:[%s39 + $0x60] sm:%s31] %v88
        %v90 = vld [vmem:[%s38 + $0x70] sm:%s31]
        %91 = vst [vmem:[%s39 + $0x64] sm:%s31] %v90
        %v92 = vld [vmem:[%s38 + $0x64] sm:%s31]
        %93 = vst [vmem:[%s39 + $0x68] sm:%s31] %v92
        %v94 = vld [vmem:[%s38 + $0x74] sm:%s31]
        %95 = vst [vmem:[%s39 + $0x6c] sm:%s31] %v94
        %v96 = vld [vmem:[%s38 + $0x68] sm:%s31]
        %97 = vst [vmem:[%s39 + $0x70] sm:%s31] %v96
        %v98 = vld [vmem:[%s38 + $0x78] sm:%s31]
        %99 = vst [vmem:[%s39 + $0x74] sm:%s31] %v98
        %v100 = vld [vmem:[%s38 + $0x6c] sm:%s31]
        %101 = vst [vmem:[%s39 + $0x78] sm:%s31] %v100
        %v102 = vld [vmem:[%s38 + $0x7c] sm:%s31]
        %103 = vst [vmem:[%s39 + $0x7c] sm:%s31] %v102
        %v104 = vld [vmem:[%s38 + $0x80] sm:%s31]
        %105 = vst [vmem:[%s39 + $0x80] sm:%s31] %v104
        %v106 = vld [vmem:[%s38 + $0x90] sm:%s31]
        %107 = vst [vmem:[%s39 + $0x84] sm:%s31] %v106
        %v108 = vld [vmem:[%s38 + $0x84] sm:%s31]
        %109 = vst [vmem:[%s39 + $0x88] sm:%s31] %v108
        %v110 = vld [vmem:[%s38 + $0x94] sm:%s31]
        %111 = vst [vmem:[%s39 + $0x8c] sm:%s31] %v110
        %v112 = vld [vmem:[%s38 + $0x88] sm:%s31]
        %113 = vst [vmem:[%s39 + $0x90] sm:%s31] %v112
        %v114 = vld [vmem:[%s38 + $0x98] sm:%s31]
        %115 = vst [vmem:[%s39 + $0x94] sm:%s31] %v114
        %v116 = vld [vmem:[%s38 + $0x8c] sm:%s31]
        %117 = vst [vmem:[%s39 + $0x98] sm:%s31] %v116
        %v118 = vld [vmem:[%s38 + $0x9c] sm:%s31]
        %119 = vst [vmem:[%s39 + $0x9c] sm:%s31] %v118
        %v120 = vld [vmem:[%s38 + $0xa0] sm:%s31]
        %121 = vst [vmem:[%s39 + $0xa0] sm:%s31] %v120
        %v122 = vld [vmem:[%s38 + $0xb0] sm:%s31]
        %123 = vst [vmem:[%s39 + $0xa4] sm:%s31] %v122
        %v124 = vld [vmem:[%s38 + $0xa4] sm:%s31]
        %125 = vst [vmem:[%s39 + $0xa8] sm:%s31] %v124
        %v126 = vld [vmem:[%s38 + $0xb4] sm:%s31]
        %127 = vst [vmem:[%s39 + $0xac] sm:%s31] %v126
        %v128 = vld [vmem:[%s38 + $0xa8] sm:%s31]
        %129 = vst [vmem:[%s39 + $0xb0] sm:%s31] %v128
        %v130 = vld [vmem:[%s38 + $0xb8] sm:%s31]
        %131 = vst [vmem:[%s39 + $0xb4] sm:%s31] %v130
        %v132 = vld [vmem:[%s38 + $0xac] sm:%s31]
        %133 = vst [vmem:[%s39 + $0xb8] sm:%s31] %v132
        %v134 = vld [vmem:[%s38 + $0xbc] sm:%s31]
        %135 = vst [vmem:[%s39 + $0xbc] sm:%s31] %v134
        %v136 = vld [vmem:[%s38 + $0xc0] sm:%s31]
        %137 = vst [vmem:[%s39 + $0xc0] sm:%s31] %v136
        %v138 = vld [vmem:[%s38 + $0xd0] sm:%s31]
        %139 = vst [vmem:[%s39 + $0xc4] sm:%s31] %v138
        %v140 = vld [vmem:[%s38 + $0xc4] sm:%s31]
        %141 = vst [vmem:[%s39 + $0xc8] sm:%s31] %v140
        %v142 = vld [vmem:[%s38 + $0xd4] sm:%s31]
        %143 = vst [vmem:[%s39 + $0xcc] sm:%s31] %v142
        %v144 = vld [vmem:[%s38 + $0xc8] sm:%s31]
        %145 = vst [vmem:[%s39 + $0xd0] sm:%s31] %v144
        %v146 = vld [vmem:[%s38 + $0xd8] sm:%s31]
        %147 = vst [vmem:[%s39 + $0xd4] sm:%s31] %v146
        %v148 = vld [vmem:[%s38 + $0xcc] sm:%s31]
        %149 = vst [vmem:[%s39 + $0xd8] sm:%s31] %v148
        %v150 = vld [vmem:[%s38 + $0xdc] sm:%s31]
        %151 = vst [vmem:[%s39 + $0xdc] sm:%s31] %v150
        %v152 = vld [vmem:[%s38 + $0xe0] sm:%s31]
        %153 = vst [vmem:[%s39 + $0xe0] sm:%s31] %v152
        %v154 = vld [vmem:[%s38 + $0xf0] sm:%s31]
        %155 = vst [vmem:[%s39 + $0xe4] sm:%s31] %v154
        %v156 = vld [vmem:[%s38 + $0xe4] sm:%s31]
        %157 = vst [vmem:[%s39 + $0xe8] sm:%s31] %v156
        %v158 = vld [vmem:[%s38 + $0xf4] sm:%s31]
        %159 = vst [vmem:[%s39 + $0xec] sm:%s31] %v158
        %v160 = vld [vmem:[%s38 + $0xe8] sm:%s31]
        %161 = vst [vmem:[%s39 + $0xf0] sm:%s31] %v160
        %v162 = vld [vmem:[%s38 + $0xf8] sm:%s31]
        %163 = vst [vmem:[%s39 + $0xf4] sm:%s31] %v162
        %v164 = vld [vmem:[%s38 + $0xec] sm:%s31]
        %165 = vst [vmem:[%s39 + $0xf8] sm:%s31] %v164
        %v166 = vld [vmem:[%s38 + $0xfc] sm:%s31]
        %167 = vst [vmem:[%s39 + $0xfc] sm:%s31] %v166
      $region30: #{forward.3} parent=24 // loop_footer
        %s37 = sadd.s32 1, %s33
      $region31: #{forward.3} parent=24 // loop_footer_branch
        %32 = sbr.rel target = $region27
      $region32: #{forward.3} parent=24 // loop_exit
        _
    $region25: #{forward.3} parent=16 // pred_fallthru
      _
    // Predicated region
    $region51: #{forward.3} parent=16 // pred_check
      _
    $region52: #{forward.3} parent=16 // pred_check_branch
      %325 = sbr.rel (0) target = $region54
    $region53: #{forward.3} parent=16 // pred_region
      %326 = vsyncadd [#allocation5], 4096
    $region54: #{forward.3} parent=16 // pred_fallthru
      _
    %s327 = smul.u32 4, 16
    %s328 = smul.u32 %s327, 4
    %s329 = sshll.u32 %s328, 4
    %330 = dma.done [#allocation5], %s329
    %v331 = vld [vmem:[%s1] sm:$0xff]
    %332 = vst [vmem:[#allocation3] sm:$0xff] %v331
    %v333 = vld [vmem:[%s2] sm:$0xff]
    %334 = vst [vmem:[#allocation4] sm:$0xff] %v333
  $region17: #{forward.3} parent=0 // pred_fallthru
    _
  %v335 = vld [vmem:[#allocation2] sm:$0xff]
  %v336 = vld [vmem:[#allocation2 + $0x8] sm:$0xff]
  %v337 = vld [vmem:[#allocation2 + $0x10] sm:$0xff]
  %v338 = vld [vmem:[#allocation2 + $0x18] sm:$0xff]
  %v339 = vld [vmem:[#allocation2 + $0x20] sm:$0xff]
  %v340 = vld [vmem:[#allocation2 + $0x28] sm:$0xff]
  %v341 = vld [vmem:[#allocation2 + $0x30] sm:$0xff]
  %v342 = vld [vmem:[#allocation2 + $0x38] sm:$0xff]
  %v343 = vld [vmem:[#allocation2 + $0x40] sm:$0xff]
  %v344 = vld [vmem:[#allocation2 + $0x48] sm:$0xff]
  %v345 = vld [vmem:[#allocation2 + $0x50] sm:$0xff]
  %v346 = vld [vmem:[#allocation2 + $0x58] sm:$0xff]
  %v347 = vld [vmem:[#allocation2 + $0x60] sm:$0xff]
  %v348 = vld [vmem:[#allocation2 + $0x68] sm:$0xff]
  %v349 = vld [vmem:[#allocation2 + $0x70] sm:$0xff]
  %v350 = vld [vmem:[#allocation2 + $0x78] sm:$0xff]
  %v351 = vld [vmem:[#allocation2 + $0x80] sm:$0xff]
  %v352 = vld [vmem:[#allocation2 + $0x88] sm:$0xff]
  %v353 = vld [vmem:[#allocation2 + $0x90] sm:$0xff]
  %v354 = vld [vmem:[#allocation2 + $0x98] sm:$0xff]
  %v355 = vld [vmem:[#allocation2 + $0xa0] sm:$0xff]
  %v356 = vld [vmem:[#allocation2 + $0xa8] sm:$0xff]
  %v357 = vld [vmem:[#allocation2 + $0xb0] sm:$0xff]
  %v358 = vld [vmem:[#allocation2 + $0xb8] sm:$0xff]
  %v359 = vld [vmem:[#allocation2 + $0xc0] sm:$0xff]
  %v360 = vld [vmem:[#allocation2 + $0xc8] sm:$0xff]
  %v361 = vld [vmem:[#allocation2 + $0xd0] sm:$0xff]
  %v362 = vld [vmem:[#allocation2 + $0xd8] sm:$0xff]
  %v363 = vld [vmem:[#allocation2 + $0xe0] sm:$0xff]
  %v364 = vld [vmem:[#allocation2 + $0xe8] sm:$0xff]
  %v365 = vld [vmem:[#allocation2 + $0xf0] sm:$0xff]
  %v366 = vld [vmem:[#allocation2 + $0xf8] sm:$0xff]
  %v367 = vld [vmem:[#allocation3] sm:$0xff]
  %v368 = vld [vmem:[#allocation4] sm:$0xff]
  %v369 = vld [vmem:[%s0] sm:$0xff]
  %v370 = vld [vmem:[%s0 + $0x8] sm:$0xff]
  %v371 = vunpack.c.l.bf16 %v369
  %v372 = vunpack.c.h.bf16 %v369
  %v373 = vunpack.c.l.bf16 %v370
  %v374 = vunpack.c.h.bf16 %v370
  %v375 = vpack.c.bf16 %v367, %v367
  %376 = vmatprep.subr.bf16.mxu0 %v336
  %377 = vmatpush1.bf16.msra.mxu0 %v335
  %378 = vmatprep.subr.bf16.mxu0 %v340
  %379 = vmatpush1.bf16.msra.mxu0 %v339
  %380 = vmatprep.subr.bf16.mxu0 %v344
  %381 = vmatpush1.bf16.msra.mxu0 %v343
  %382 = vmatprep.subr.bf16.mxu0 %v348
  %383 = vmatpush1.bf16.msra.mxu0 %v347
  %384 = vmatprep.subr.bf16.mxu0 %v352
  %385 = vmatpush1.bf16.msra.mxu0 %v351
  %386 = vmatprep.subr.bf16.mxu0 %v356
  %387 = vmatpush1.bf16.msra.mxu0 %v355
  %388 = vmatprep.subr.bf16.mxu0 %v360
  %389 = vmatpush1.bf16.msra.mxu0 %v359
  %390 = vmatprep.subr.bf16.mxu0 %v364
  %391 = vmatpush1.bf16.msra.mxu0 %v363
  %392 = vmatprep.subr.bf16.mxu0 0
  %393 = vmatpush1.bf16.msra.mxu0 0
  %394 = vmatprep.subr.bf16.mxu0 0
  %395 = vmatpush1.bf16.msra.mxu0 0
  %396 = vmatprep.subr.bf16.mxu0 0
  %397 = vmatpush1.bf16.msra.mxu0 0
  %398 = vmatprep.subr.bf16.mxu0 0
  %399 = vmatpush1.bf16.msra.mxu0 0
  %400 = vmatprep.subr.bf16.mxu0 0
  %401 = vmatpush1.bf16.msra.mxu0 0
  %402 = vmatprep.subr.bf16.mxu0 0
  %403 = vmatpush1.bf16.msra.mxu0 0
  %404 = vmatprep.subr.bf16.mxu0 0
  %405 = vmatpush1.bf16.msra.mxu0 0
  %406 = vmatprep.subr.bf16.mxu0 0
  %407 = vmatpush1.bf16.msra.mxu0 0
  %408 = vmatprep.mubr.bf16.mxu0 0
  %409 = vmatmul.mubr.bf16.gmra.mrb[0].mxu0 %v375
  %v410 = vpop.f32.mrb[0].mxu0
  %v411 = vadd.f32 0.0, %v410
  %v412 = vpop.f32.mrb[0].mxu0
  %v413 = vadd.f32 0.0, %v412
  %v414 = vpop.f32.mrb[0].mxu0
  %v415 = vpop.f32.mrb[0].mxu0
  %416 = vdwg.mxu0
  %417 = vmatprep.subr.bf16.mxu0 %v338
  %418 = vmatpush1.bf16.msra.mxu0 %v337
  %419 = vmatprep.subr.bf16.mxu0 %v342
  %420 = vmatpush1.bf16.msra.mxu0 %v341
  %421 = vmatprep.subr.bf16.mxu0 %v346
  %422 = vmatpush1.bf16.msra.mxu0 %v345
  %423 = vmatprep.subr.bf16.mxu0 %v350
  %424 = vmatpush1.bf16.msra.mxu0 %v349
  %425 = vmatprep.subr.bf16.mxu0 %v354
  %426 = vmatpush1.bf16.msra.mxu0 %v353
  %427 = vmatprep.subr.bf16.mxu0 %v358
  %428 = vmatpush1.bf16.msra.mxu0 %v357
  %429 = vmatprep.subr.bf16.mxu0 %v362
  %430 = vmatpush1.bf16.msra.mxu0 %v361
  %431 = vmatprep.subr.bf16.mxu0 %v366
  %432 = vmatpush1.bf16.msra.mxu0 %v365
  %433 = vmatprep.subr.bf16.mxu0 0
  %434 = vmatpush1.bf16.msra.mxu0 0
  %435 = vmatprep.subr.bf16.mxu0 0
  %436 = vmatpush1.bf16.msra.mxu0 0
  %437 = vmatprep.subr.bf16.mxu0 0
  %438 = vmatpush1.bf16.msra.mxu0 0
  %439 = vmatprep.subr.bf16.mxu0 0
  %440 = vmatpush1.bf16.msra.mxu0 0
  %441 = vmatprep.subr.bf16.mxu0 0
  %442 = vmatpush1.bf16.msra.mxu0 0
  %443 = vmatprep.subr.bf16.mxu0 0
  %444 = vmatpush1.bf16.msra.mxu0 0
  %445 = vmatprep.subr.bf16.mxu0 0
  %446 = vmatpush1.bf16.msra.mxu0 0
  %447 = vmatprep.subr.bf16.mxu0 0
  %448 = vmatpush1.bf16.msra.mxu0 0
  %449 = vmatprep.mubr.bf16.mxu0 0
  %450 = vmatmul.mubr.bf16.gmra.mrb[0].mxu0 %v375
  %v451 = vpop.f32.mrb[0].mxu0
  %v452 = vadd.f32 0.0, %v451
  %v453 = vpop.f32.mrb[0].mxu0
  %v454 = vadd.f32 0.0, %v453
  %v455 = vpop.f32.mrb[0].mxu0
  %v456 = vpop.f32.mrb[0].mxu0
  %457 = vdwg.mxu0
  %v458 = vadd.f32 %v371, %v411
  %v459 = vadd.f32 %v372, %v413
  %v460 = vadd.f32 %v373, %v452
  %v461 = vadd.f32 %v374, %v454
  %v462 = vxor.u32 %v458, 2147483648
  %v463 = vmul.f32 %v462, 1.442695
  %v464 = vpow.pop %v463
  %v465 = vadd.f32 %v464, 1.0
  %v466 = vrcp.pop %v465
  %v467 = vmul.f32 1.0, %v466
  %v468 = vxor.u32 %v459, 2147483648
  %v469 = vmul.f32 %v468, 1.442695
  %v470 = vpow.pop %v469
  %v471 = vadd.f32 %v470, 1.0
  %v472 = vrcp.pop %v471
  %v473 = vmul.f32 1.0, %v472
  %v474 = vtanh.pop %v460
  %v475 = vxor.u32 %v461, 2147483648
  %v476 = vmul.f32 %v475, 1.442695
  %v477 = vpow.pop %v476
  %v478 = vadd.f32 %v477, 1.0
  %v479 = vrcp.pop %v478
  %v480 = vmul.f32 1.0, %v479
  %v481 = vmul.f32 %v473, %v368
  %v482 = vmul.f32 %v467, %v474
  %v483 = vadd.f32 %v481, %v482
  %v484 = vtanh.pop %v483
  %v485 = vmul.f32 %v480, %v484
  %486 = vst [vmem:[%s4] sm:$0xff] %v485
  %s487 = smul.u32 0, 8
  %p488 = scmp.eq.s32.totalorder %s487, 7
  // Predicated region
  $region55: #{forward.3} parent=0 // pred_check
    %p489 = pneg %p488
  $region56: #{forward.3} parent=0 // pred_check_branch
    %491 = sbr.rel (%p489) target = $region58
  $region57: #{forward.3} parent=0 // pred_region
    %492 = vst [vmem:[%s5] sm:$0xff] %v485
    %493 = vst [vmem:[%s6] sm:$0xff] %v483
  $region58: #{forward.3} parent=0 // pred_fallthru
    _
  %s494 = scalar_lea.vmem %s0, 16
  %v495 = vld [vmem:[%s494] sm:$0xff]
  %v496 = vld [vmem:[%s494 + $0x8] sm:$0xff]
  %v497 = vunpack.c.l.bf16 %v495
  %v498 = vunpack.c.h.bf16 %v495
  %v499 = vunpack.c.l.bf16 %v496
  %v500 = vunpack.c.h.bf16 %v496
  %v501 = vpack.c.bf16 %v485, %v485
  %502 = vmatprep.subr.bf16.mxu0 %v336
  %503 = vmatpush1.bf16.msra.mxu0 %v335
  %504 = vmatprep.subr.bf16.mxu0 %v340
  %505 = vmatpush1.bf16.msra.mxu0 %v339
  %506 = vmatprep.subr.bf16.mxu0 %v344
  %507 = vmatpush1.bf16.msra.mxu0 %v343
  %508 = vmatprep.subr.bf16.mxu0 %v348
  %509 = vmatpush1.bf16.msra.mxu0 %v347
  %510 = vmatprep.subr.bf16.mxu0 %v352
  %511 = vmatpush1.bf16.msra.mxu0 %v351
  %512 = vmatprep.subr.bf16.mxu0 %v356
  %513 = vmatpush1.bf16.msra.mxu0 %v355
  %514 = vmatprep.subr.bf16.mxu0 %v360
  %515 = vmatpush1.bf16.msra.mxu0 %v359
  %516 = vmatprep.subr.bf16.mxu0 %v364
  %517 = vmatpush1.bf16.msra.mxu0 %v363
  %518 = vmatprep.subr.bf16.mxu0 0
  %519 = vmatpush1.bf16.msra.mxu0 0
  %520 = vmatprep.subr.bf16.mxu0 0
  %521 = vmatpush1.bf16.msra.mxu0 0
  %522 = vmatprep.subr.bf16.mxu0 0
  %523 = vmatpush1.bf16.msra.mxu0 0
  %524 = vmatprep.subr.bf16.mxu0 0
  %525 = vmatpush1.bf16.msra.mxu0 0
  %526 = vmatprep.subr.bf16.mxu0 0
  %527 = vmatpush1.bf16.msra.mxu0 0
  %528 = vmatprep.subr.bf16.mxu0 0
  %529 = vmatpush1.bf16.msra.mxu0 0
  %530 = vmatprep.subr.bf16.mxu0 0
  %531 = vmatpush1.bf16.msra.mxu0 0
  %532 = vmatprep.subr.bf16.mxu0 0
  %533 = vmatpush1.bf16.msra.mxu0 0
  %534 = vmatprep.mubr.bf16.mxu0 0
  %535 = vmatmul.mubr.bf16.gmra.mrb[0].mxu0 %v501
  %v536 = vpop.f32.mrb[0].mxu0
  %v537 = vadd.f32 0.0, %v536
  %v538 = vpop.f32.mrb[0].mxu0
  %v539 = vadd.f32 0.0, %v538
  %v540 = vpop.f32.mrb[0].mxu0
  %v541 = vpop.f32.mrb[0].mxu0
  %542 = vdwg.mxu0
  %543 = vmatprep.subr.bf16.mxu0 %v338
  %544 = vmatpush1.bf16.msra.mxu0 %v337
  %545 = vmatprep.subr.bf16.mxu0 %v342
  %546 = vmatpush1.bf16.msra.mxu0 %v341
  %547 = vmatprep.subr.bf16.mxu0 %v346
  %548 = vmatpush1.bf16.msra.mxu0 %v345
  %549 = vmatprep.subr.bf16.mxu0 %v350
  %550 = vmatpush1.bf16.msra.mxu0 %v349
  %551 = vmatprep.subr.bf16.mxu0 %v354
  %552 = vmatpush1.bf16.msra.mxu0 %v353
  %553 = vmatprep.subr.bf16.mxu0 %v358
  %554 = vmatpush1.bf16.msra.mxu0 %v357
  %555 = vmatprep.subr.bf16.mxu0 %v362
  %556 = vmatpush1.bf16.msra.mxu0 %v361
  %557 = vmatprep.subr.bf16.mxu0 %v366
  %558 = vmatpush1.bf16.msra.mxu0 %v365
  %559 = vmatprep.subr.bf16.mxu0 0
  %560 = vmatpush1.bf16.msra.mxu0 0
  %561 = vmatprep.subr.bf16.mxu0 0
  %562 = vmatpush1.bf16.msra.mxu0 0
  %563 = vmatprep.subr.bf16.mxu0 0
  %564 = vmatpush1.bf16.msra.mxu0 0
  %565 = vmatprep.subr.bf16.mxu0 0
  %566 = vmatpush1.bf16.msra.mxu0 0
  %567 = vmatprep.subr.bf16.mxu0 0
  %568 = vmatpush1.bf16.msra.mxu0 0
  %569 = vmatprep.subr.bf16.mxu0 0
  %570 = vmatpush1.bf16.msra.mxu0 0
  %571 = vmatprep.subr.bf16.mxu0 0
  %572 = vmatpush1.bf16.msra.mxu0 0
  %573 = vmatprep.subr.bf16.mxu0 0
  %574 = vmatpush1.bf16.msra.mxu0 0
  %575 = vmatprep.mubr.bf16.mxu0 0
  %576 = vmatmul.mubr.bf16.gmra.mrb[0].mxu0 %v501
  %v577 = vpop.f32.mrb[0].mxu0
  %v578 = vadd.f32 0.0, %v577
  %v579 = vpop.f32.mrb[0].mxu0
  %v580 = vadd.f32 0.0, %v579
  %v581 = vpop.f32.mrb[0].mxu0
  %v582 = vpop.f32.mrb[0].mxu0
  %583 = vdwg.mxu0
  %v584 = vadd.f32 %v497, %v537
  %v585 = vadd.f32 %v498, %v539
  %v586 = vadd.f32 %v499, %v578
  %v587 = vadd.f32 %v500, %v580
  %v588 = vxor.u32 %v584, 2147483648
  %v589 = vmul.f32 %v588, 1.442695
  %v590 = vpow.pop %v589
  %v591 = vadd.f32 %v590, 1.0
  %v592 = vrcp.pop %v591
  %v593 = vmul.f32 1.0, %v592
  %v594 = vxor.u32 %v585, 2147483648
  %v595 = vmul.f32 %v594, 1.442695
  %v596 = vpow.pop %v595
  %v597 = vadd.f32 %v596, 1.0
  %v598 = vrcp.pop %v597
  %v599 = vmul.f32 1.0, %v598
  %v600 = vtanh.pop %v586
  %v601 = vxor.u32 %v587, 2147483648
  %v602 = vmul.f32 %v601, 1.442695
  %v603 = vpow.pop %v602
  %v604 = vadd.f32 %v603, 1.0
  %v605 = vrcp.pop %v604
  %v606 = vmul.f32 1.0, %v605
  %v607 = vmul.f32 %v599, %v483
  %v608 = vmul.f32 %v593, %v600
  %v609 = vadd.f32 %v607, %v608
  %v610 = vtanh.pop %v609
  %v611 = vmul.f32 %v606, %v610
  %s612 = scalar_lea.vmem %s4, 8
  %613 = vst [vmem:[%s612] sm:$0xff] %v611
  %s614 = sadd.s32 %s487, 1
  %p615 = scmp.eq.s32.totalorder %s614, 7
  // Predicated region
  $region59: #{forward.3} parent=0 // pred_check
    %p616 = pneg %p615
  $region60: #{forward.3} parent=0 // pred_check_branch
    %618 = sbr.rel (%p616) target = $region62
  $region61: #{forward.3} parent=0 // pred_region
    %619 = vst [vmem:[%s5] sm:$0xff] %v611
    %620 = vst [vmem:[%s6] sm:$0xff] %v609
  $region62: #{forward.3} parent=0 // pred_fallthru
    _
  %s621 = scalar_lea.vmem %s0, 32
  %v622 = vld [vmem:[%s621] sm:$0xff]
  %v623 = vld [vmem:[%s621 + $0x8] sm:$0xff]
  %v624 = vunpack.c.l.bf16 %v622
  %v625 = vunpack.c.h.bf16 %v622
  %v626 = vunpack.c.l.bf16 %v623
  %v627 = vunpack.c.h.bf16 %v623
  %v628 = vpack.c.bf16 %v611, %v611
  %629 = vmatprep.subr.bf16.mxu0 %v336
  %630 = vmatpush1.bf16.msra.mxu0 %v335
  %631 = vmatprep.subr.bf16.mxu0 %v340
  %632 = vmatpush1.bf16.msra.mxu0 %v339
  %633 = vmatprep.subr.bf16.mxu0 %v344
  %634 = vmatpush1.bf16.msra.mxu0 %v343
  %635 = vmatprep.subr.bf16.mxu0 %v348
  %636 = vmatpush1.bf16.msra.mxu0 %v347
  %637 = vmatprep.subr.bf16.mxu0 %v352
  %638 = vmatpush1.bf16.msra.mxu0 %v351
  %639 = vmatprep.subr.bf16.mxu0 %v356
  %640 = vmatpush1.bf16.msra.mxu0 %v355
  %641 = vmatprep.subr.bf16.mxu0 %v360
  %642 = vmatpush1.bf16.msra.mxu0 %v359
  %643 = vmatprep.subr.bf16.mxu0 %v364
  %644 = vmatpush1.bf16.msra.mxu0 %v363
  %645 = vmatprep.subr.bf16.mxu0 0
  %646 = vmatpush1.bf16.msra.mxu0 0
  %647 = vmatprep.subr.bf16.mxu0 0
  %648 = vmatpush1.bf16.msra.mxu0 0
  %649 = vmatprep.subr.bf16.mxu0 0
  %650 = vmatpush1.bf16.msra.mxu0 0
  %651 = vmatprep.subr.bf16.mxu0 0
  %652 = vmatpush1.bf16.msra.mxu0 0
  %653 = vmatprep.subr.bf16.mxu0 0
  %654 = vmatpush1.bf16.msra.mxu0 0
  %655 = vmatprep.subr.bf16.mxu0 0
  %656 = vmatpush1.bf16.msra.mxu0 0
  %657 = vmatprep.subr.bf16.mxu0 0
  %658 = vmatpush1.bf16.msra.mxu0 0
  %659 = vmatprep.subr.bf16.mxu0 0
  %660 = vmatpush1.bf16.msra.mxu0 0
  %661 = vmatprep.mubr.bf16.mxu0 0
  %662 = vmatmul.mubr.bf16.gmra.mrb[0].mxu0 %v628
  %v663 = vpop.f32.mrb[0].mxu0
  %v664 = vadd.f32 0.0, %v663
  %v665 = vpop.f32.mrb[0].mxu0
  %v666 = vadd.f32 0.0, %v665
  %v667 = vpop.f32.mrb[0].mxu0
  %v668 = vpop.f32.mrb[0].mxu0
  %669 = vdwg.mxu0
  %670 = vmatprep.subr.bf16.mxu0 %v338
  %671 = vmatpush1.bf16.msra.mxu0 %v337
  %672 = vmatprep.subr.bf16.mxu0 %v342
  %673 = vmatpush1.bf16.msra.mxu0 %v341
  %674 = vmatprep.subr.bf16.mxu0 %v346
  %675 = vmatpush1.bf16.msra.mxu0 %v345
  %676 = vmatprep.subr.bf16.mxu0 %v350
  %677 = vmatpush1.bf16.msra.mxu0 %v349
  %678 = vmatprep.subr.bf16.mxu0 %v354
  %679 = vmatpush1.bf16.msra.mxu0 %v353
  %680 = vmatprep.subr.bf16.mxu0 %v358
  %681 = vmatpush1.bf16.msra.mxu0 %v357
  %682 = vmatprep.subr.bf16.mxu0 %v362
  %683 = vmatpush1.bf16.msra.mxu0 %v361
  %684 = vmatprep.subr.bf16.mxu0 %v366
  %685 = vmatpush1.bf16.msra.mxu0 %v365
  %686 = vmatprep.subr.bf16.mxu0 0
  %687 = vmatpush1.bf16.msra.mxu0 0
  %688 = vmatprep.subr.bf16.mxu0 0
  %689 = vmatpush1.bf16.msra.mxu0 0
  %690 = vmatprep.subr.bf16.mxu0 0
  %691 = vmatpush1.bf16.msra.mxu0 0
  %692 = vmatprep.subr.bf16.mxu0 0
  %693 = vmatpush1.bf16.msra.mxu0 0
  %694 = vmatprep.subr.bf16.mxu0 0
  %695 = vmatpush1.bf16.msra.mxu0 0
  %696 = vmatprep.subr.bf16.mxu0 0
  %697 = vmatpush1.bf16.msra.mxu0 0
  %698 = vmatprep.subr.bf16.mxu0 0
  %699 = vmatpush1.bf16.msra.mxu0 0
  %700 = vmatprep.subr.bf16.mxu0 0
  %701 = vmatpush1.bf16.msra.mxu0 0
  %702 = vmatprep.mubr.bf16.mxu0 0
  %703 = vmatmul.mubr.bf16.gmra.mrb[0].mxu0 %v628
  %v704 = vpop.f32.mrb[0].mxu0
  %v705 = vadd.f32 0.0, %v704
  %v706 = vpop.f32.mrb[0].mxu0
  %v707 = vadd.f32 0.0, %v706
  %v708 = vpop.f32.mrb[0].mxu0
  %v709 = vpop.f32.mrb[0].mxu0
  %710 = vdwg.mxu0
  %v711 = vadd.f32 %v624, %v664
  %v712 = vadd.f32 %v625, %v666
  %v713 = vadd.f32 %v626, %v705
  %v714 = vadd.f32 %v627, %v707
  %v715 = vxor.u32 %v711, 2147483648
  %v716 = vmul.f32 %v715, 1.442695
  %v717 = vpow.pop %v716
  %v718 = vadd.f32 %v717, 1.0
  %v719 = vrcp.pop %v718
  %v720 = vmul.f32 1.0, %v719
  %v721 = vxor.u32 %v712, 2147483648
  %v722 = vmul.f32 %v721, 1.442695
  %v723 = vpow.pop %v722
  %v724 = vadd.f32 %v723, 1.0
  %v725 = vrcp.pop %v724
  %v726 = vmul.f32 1.0, %v725
  %v727 = vtanh.pop %v713
  %v728 = vxor.u32 %v714, 2147483648
  %v729 = vmul.f32 %v728, 1.442695
  %v730 = vpow.pop %v729
  %v731 = vadd.f32 %v730, 1.0
  %v732 = vrcp.pop %v731
  %v733 = vmul.f32 1.0, %v732
  %v734 = vmul.f32 %v726, %v609
  %v735 = vmul.f32 %v720, %v727
  %v736 = vadd.f32 %v734, %v735
  %v737 = vtanh.pop %v736
  %v738 = vmul.f32 %v733, %v737
  %s739 = scalar_lea.vmem %s4, 16
  %740 = vst [vmem:[%s739] sm:$0xff] %v738
  %s741 = sadd.s32 %s487, 2
  %p742 = scmp.eq.s32.totalorder %s741, 7
  // Predicated region
  $region63: #{forward.3} parent=0 // pred_check
    %p743 = pneg %p742
  $region64: #{forward.3} parent=0 // pred_check_branch
    %745 = sbr.rel (%p743) target = $region66
  $region65: #{forward.3} parent=0 // pred_region
    %746 = vst [vmem:[%s5] sm:$0xff] %v738
    %747 = vst [vmem:[%s6] sm:$0xff] %v736
  $region66: #{forward.3} parent=0 // pred_fallthru
    _
  %s748 = scalar_lea.vmem %s0, 48
  %v749 = vld [vmem:[%s748] sm:$0xff]
  %v750 = vld [vmem:[%s748 + $0x8] sm:$0xff]
  %v751 = vunpack.c.l.bf16 %v749
  %v752 = vunpack.c.h.bf16 %v749
  %v753 = vunpack.c.l.bf16 %v750
  %v754 = vunpack.c.h.bf16 %v750
  %v755 = vpack.c.bf16 %v738, %v738
  %756 = vmatprep.subr.bf16.mxu0 %v336
  %757 = vmatpush1.bf16.msra.mxu0 %v335
  %758 = vmatprep.subr.bf16.mxu0 %v340
  %759 = vmatpush1.bf16.msra.mxu0 %v339
  %760 = vmatprep.subr.bf16.mxu0 %v344
  %761 = vmatpush1.bf16.msra.mxu0 %v343
  %762 = vmatprep.subr.bf16.mxu0 %v348
  %763 = vmatpush1.bf16.msra.mxu0 %v347
  %764 = vmatprep.subr.bf16.mxu0 %v352
  %765 = vmatpush1.bf16.msra.mxu0 %v351
  %766 = vmatprep.subr.bf16.mxu0 %v356
  %767 = vmatpush1.bf16.msra.mxu0 %v355
  %768 = vmatprep.subr.bf16.mxu0 %v360
  %769 = vmatpush1.bf16.msra.mxu0 %v359
  %770 = vmatprep.subr.bf16.mxu0 %v364
  %771 = vmatpush1.bf16.msra.mxu0 %v363
  %772 = vmatprep.subr.bf16.mxu0 0
  %773 = vmatpush1.bf16.msra.mxu0 0
  %774 = vmatprep.subr.bf16.mxu0 0
  %775 = vmatpush1.bf16.msra.mxu0 0
  %776 = vmatprep.subr.bf16.mxu0 0
  %777 = vmatpush1.bf16.msra.mxu0 0
  %778 = vmatprep.subr.bf16.mxu0 0
  %779 = vmatpush1.bf16.msra.mxu0 0
  %780 = vmatprep.subr.bf16.mxu0 0
  %781 = vmatpush1.bf16.msra.mxu0 0
  %782 = vmatprep.subr.bf16.mxu0 0
  %783 = vmatpush1.bf16.msra.mxu0 0
  %784 = vmatprep.subr.bf16.mxu0 0
  %785 = vmatpush1.bf16.msra.mxu0 0
  %786 = vmatprep.subr.bf16.mxu0 0
  %787 = vmatpush1.bf16.msra.mxu0 0
  %788 = vmatprep.mubr.bf16.mxu0 0
  %789 = vmatmul.mubr.bf16.gmra.mrb[0].mxu0 %v755
  %v790 = vpop.f32.mrb[0].mxu0
  %v791 = vadd.f32 0.0, %v790
  %v792 = vpop.f32.mrb[0].mxu0
  %v793 = vadd.f32 0.0, %v792
  %v794 = vpop.f32.mrb[0].mxu0
  %v795 = vpop.f32.mrb[0].mxu0
  %796 = vdwg.mxu0
  %797 = vmatprep.subr.bf16.mxu0 %v338
  %798 = vmatpush1.bf16.msra.mxu0 %v337
  %799 = vmatprep.subr.bf16.mxu0 %v342
  %800 = vmatpush1.bf16.msra.mxu0 %v341
  %801 = vmatprep.subr.bf16.mxu0 %v346
  %802 = vmatpush1.bf16.msra.mxu0 %v345
  %803 = vmatprep.subr.bf16.mxu0 %v350
  %804 = vmatpush1.bf16.msra.mxu0 %v349
  %805 = vmatprep.subr.bf16.mxu0 %v354
  %806 = vmatpush1.bf16.msra.mxu0 %v353
  %807 = vmatprep.subr.bf16.mxu0 %v358
  %808 = vmatpush1.bf16.msra.mxu0 %v357
  %809 = vmatprep.subr.bf16.mxu0 %v362
  %810 = vmatpush1.bf16.msra.mxu0 %v361
  %811 = vmatprep.subr.bf16.mxu0 %v366
  %812 = vmatpush1.bf16.msra.mxu0 %v365
  %813 = vmatprep.subr.bf16.mxu0 0
  %814 = vmatpush1.bf16.msra.mxu0 0
  %815 = vmatprep.subr.bf16.mxu0 0
  %816 = vmatpush1.bf16.msra.mxu0 0
  %817 = vmatprep.subr.bf16.mxu0 0
  %818 = vmatpush1.bf16.msra.mxu0 0
  %819 = vmatprep.subr.bf16.mxu0 0
  %820 = vmatpush1.bf16.msra.mxu0 0
  %821 = vmatprep.subr.bf16.mxu0 0
  %822 = vmatpush1.bf16.msra.mxu0 0
  %823 = vmatprep.subr.bf16.mxu0 0
  %824 = vmatpush1.bf16.msra.mxu0 0
  %825 = vmatprep.subr.bf16.mxu0 0
  %826 = vmatpush1.bf16.msra.mxu0 0
  %827 = vmatprep.subr.bf16.mxu0 0
  %828 = vmatpush1.bf16.msra.mxu0 0
  %829 = vmatprep.mubr.bf16.mxu0 0
  %830 = vmatmul.mubr.bf16.gmra.mrb[0].mxu0 %v755
  %v831 = vpop.f32.mrb[0].mxu0
  %v832 = vadd.f32 0.0, %v831
  %v833 = vpop.f32.mrb[0].mxu0
  %v834 = vadd.f32 0.0, %v833
  %v835 = vpop.f32.mrb[0].mxu0
  %v836 = vpop.f32.mrb[0].mxu0
  %837 = vdwg.mxu0
  %v838 = vadd.f32 %v751, %v791
  %v839 = vadd.f32 %v752, %v793
  %v840 = vadd.f32 %v753, %v832
  %v841 = vadd.f32 %v754, %v834
  %v842 = vxor.u32 %v838, 2147483648
  %v843 = vmul.f32 %v842, 1.442695
  %v844 = vpow.pop %v843
  %v845 = vadd.f32 %v844, 1.0
  %v846 = vrcp.pop %v845
  %v847 = vmul.f32 1.0, %v846
  %v848 = vxor.u32 %v839, 2147483648
  %v849 = vmul.f32 %v848, 1.442695
  %v850 = vpow.pop %v849
  %v851 = vadd.f32 %v850, 1.0
  %v852 = vrcp.pop %v851
  %v853 = vmul.f32 1.0, %v852
  %v854 = vtanh.pop %v840
  %v855 = vxor.u32 %v841, 2147483648
  %v856 = vmul.f32 %v855, 1.442695
  %v857 = vpow.pop %v856
  %v858 = vadd.f32 %v857, 1.0
  %v859 = vrcp.pop %v858
  %v860 = vmul.f32 1.0, %v859
  %v861 = vmul.f32 %v853, %v736
  %v862 = vmul.f32 %v847, %v854
  %v863 = vadd.f32 %v861, %v862
  %v864 = vtanh.pop %v863
  %v865 = vmul.f32 %v860, %v864
  %s866 = scalar_lea.vmem %s4, 24
  %867 = vst [vmem:[%s866] sm:$0xff] %v865
  %s868 = sadd.s32 %s487, 3
  %p869 = scmp.eq.s32.totalorder %s868, 7
  // Predicated region
  $region67: #{forward.3} parent=0 // pred_check
    %p870 = pneg %p869
  $region68: #{forward.3} parent=0 // pred_check_branch
    %872 = sbr.rel (%p870) target = $region70
  $region69: #{forward.3} parent=0 // pred_region
    %873 = vst [vmem:[%s5] sm:$0xff] %v865
    %874 = vst [vmem:[%s6] sm:$0xff] %v863
  $region70: #{forward.3} parent=0 // pred_fallthru
    _
  %s875 = scalar_lea.vmem %s0, 64
  %v876 = vld [vmem:[%s875] sm:$0xff]
  %v877 = vld [vmem:[%s875 + $0x8] sm:$0xff]
  %v878 = vunpack.c.l.bf16 %v876
  %v879 = vunpack.c.h.bf16 %v876
  %v880 = vunpack.c.l.bf16 %v877
  %v881 = vunpack.c.h.bf16 %v877
  %v882 = vpack.c.bf16 %v865, %v865
  %883 = vmatprep.subr.bf16.mxu0 %v336
  %884 = vmatpush1.bf16.msra.mxu0 %v335
  %885 = vmatprep.subr.bf16.mxu0 %v340
  %886 = vmatpush1.bf16.msra.mxu0 %v339
  %887 = vmatprep.subr.bf16.mxu0 %v344
  %888 = vmatpush1.bf16.msra.mxu0 %v343
  %889 = vmatprep.subr.bf16.mxu0 %v348
  %890 = vmatpush1.bf16.msra.mxu0 %v347
  %891 = vmatprep.subr.bf16.mxu0 %v352
  %892 = vmatpush1.bf16.msra.mxu0 %v351
  %893 = vmatprep.subr.bf16.mxu0 %v356
  %894 = vmatpush1.bf16.msra.mxu0 %v355
  %895 = vmatprep.subr.bf16.mxu0 %v360
  %896 = vmatpush1.bf16.msra.mxu0 %v359
  %897 = vmatprep.subr.bf16.mxu0 %v364
  %898 = vmatpush1.bf16.msra.mxu0 %v363
  %899 = vmatprep.subr.bf16.mxu0 0
  %900 = vmatpush1.bf16.msra.mxu0 0
  %901 = vmatprep.subr.bf16.mxu0 0
  %902 = vmatpush1.bf16.msra.mxu0 0
  %903 = vmatprep.subr.bf16.mxu0 0
  %904 = vmatpush1.bf16.msra.mxu0 0
  %905 = vmatprep.subr.bf16.mxu0 0
  %906 = vmatpush1.bf16.msra.mxu0 0
  %907 = vmatprep.subr.bf16.mxu0 0
  %908 = vmatpush1.bf16.msra.mxu0 0
  %909 = vmatprep.subr.bf16.mxu0 0
  %910 = vmatpush1.bf16.msra.mxu0 0
  %911 = vmatprep.subr.bf16.mxu0 0
  %912 = vmatpush1.bf16.msra.mxu0 0
  %913 = vmatprep.subr.bf16.mxu0 0
  %914 = vmatpush1.bf16.msra.mxu0 0
  %915 = vmatprep.mubr.bf16.mxu0 0
  %916 = vmatmul.mubr.bf16.gmra.mrb[0].mxu0 %v882
  %v917 = vpop.f32.mrb[0].mxu0
  %v918 = vadd.f32 0.0, %v917
  %v919 = vpop.f32.mrb[0].mxu0
  %v920 = vadd.f32 0.0, %v919
  %v921 = vpop.f32.mrb[0].mxu0
  %v922 = vpop.f32.mrb[0].mxu0
  %923 = vdwg.mxu0
  %924 = vmatprep.subr.bf16.mxu0 %v338
  %925 = vmatpush1.bf16.msra.mxu0 %v337
  %926 = vmatprep.subr.bf16.mxu0 %v342
  %927 = vmatpush1.bf16.msra.mxu0 %v341
  %928 = vmatprep.subr.bf16.mxu0 %v346
  %929 = vmatpush1.bf16.msra.mxu0 %v345
  %930 = vmatprep.subr.bf16.mxu0 %v350
  %931 = vmatpush1.bf16.msra.mxu0 %v349
  %932 = vmatprep.subr.bf16.mxu0 %v354
  %933 = vmatpush1.bf16.msra.mxu0 %v353
  %934 = vmatprep.subr.bf16.mxu0 %v358
  %935 = vmatpush1.bf16.msra.mxu0 %v357
  %936 = vmatprep.subr.bf16.mxu0 %v362
  %937 = vmatpush1.bf16.msra.mxu0 %v361
  %938 = vmatprep.subr.bf16.mxu0 %v366
  %939 = vmatpush1.bf16.msra.mxu0 %v365
  %940 = vmatprep.subr.bf16.mxu0 0
  %941 = vmatpush1.bf16.msra.mxu0 0
  %942 = vmatprep.subr.bf16.mxu0 0
  %943 = vmatpush1.bf16.msra.mxu0 0
  %944 = vmatprep.subr.bf16.mxu0 0
  %945 = vmatpush1.bf16.msra.mxu0 0
  %946 = vmatprep.subr.bf16.mxu0 0
  %947 = vmatpush1.bf16.msra.mxu0 0
  %948 = vmatprep.subr.bf16.mxu0 0
  %949 = vmatpush1.bf16.msra.mxu0 0
  %950 = vmatprep.subr.bf16.mxu0 0
  %951 = vmatpush1.bf16.msra.mxu0 0
  %952 = vmatprep.subr.bf16.mxu0 0
  %953 = vmatpush1.bf16.msra.mxu0 0
  %954 = vmatprep.subr.bf16.mxu0 0
  %955 = vmatpush1.bf16.msra.mxu0 0
  %956 = vmatprep.mubr.bf16.mxu0 0
  %957 = vmatmul.mubr.bf16.gmra.mrb[0].mxu0 %v882
  %v958 = vpop.f32.mrb[0].mxu0
  %v959 = vadd.f32 0.0, %v958
  %v960 = vpop.f32.mrb[0].mxu0
  %v961 = vadd.f32 0.0, %v960
  %v962 = vpop.f32.mrb[0].mxu0
  %v963 = vpop.f32.mrb[0].mxu0
  %964 = vdwg.mxu0
  %v965 = vadd.f32 %v878, %v918
  %v966 = vadd.f32 %v879, %v920
  %v967 = vadd.f32 %v880, %v959
  %v968 = vadd.f32 %v881, %v961
  %v969 = vxor.u32 %v965, 2147483648
  %v970 = vmul.f32 %v969, 1.442695
  %v971 = vpow.pop %v970
  %v972 = vadd.f32 %v971, 1.0
  %v973 = vrcp.pop %v972
  %v974 = vmul.f32 1.0, %v973
  %v975 = vxor.u32 %v966, 2147483648
  %v976 = vmul.f32 %v975, 1.442695
  %v977 = vpow.pop %v976
  %v978 = vadd.f32 %v977, 1.0
  %v979 = vrcp.pop %v978
  %v980 = vmul.f32 1.0, %v979
  %v981 = vtanh.pop %v967
  %v982 = vxor.u32 %v968, 2147483648
  %v983 = vmul.f32 %v982, 1.442695
  %v984 = vpow.pop %v983
  %v985 = vadd.f32 %v984, 1.0
  %v986 = vrcp.pop %v985
  %v987 = vmul.f32 1.0, %v986
  %v988 = vmul.f32 %v980, %v863
  %v989 = vmul.f32 %v974, %v981
  %v990 = vadd.f32 %v988, %v989
  %v991 = vtanh.pop %v990
  %v992 = vmul.f32 %v987, %v991
  %s993 = scalar_lea.vmem %s4, 32
  %994 = vst [vmem:[%s993] sm:$0xff] %v992
  %s995 = sadd.s32 %s487, 4
  %p996 = scmp.eq.s32.totalorder %s995, 7
  // Predicated region
  $region71: #{forward.3} parent=0 // pred_check
    %p997 = pneg %p996
  $region72: #{forward.3} parent=0 // pred_check_branch
    %999 = sbr.rel (%p997) target = $region74
  $region73: #{forward.3} parent=0 // pred_region
    %1000 = vst [vmem:[%s5] sm:$0xff] %v992
    %1001 = vst [vmem:[%s6] sm:$0xff] %v990
  $region74: #{forward.3} parent=0 // pred_fallthru
    _
  %s1002 = scalar_lea.vmem %s0, 80
  %v1003 = vld [vmem:[%s1002] sm:$0xff]
  %v1004 = vld [vmem:[%s1002 + $0x8] sm:$0xff]
  %v1005 = vunpack.c.l.bf16 %v1003
  %v1006 = vunpack.c.h.bf16 %v1003
  %v1007 = vunpack.c.l.bf16 %v1004
  %v1008 = vunpack.c.h.bf16 %v1004
  %v1009 = vpack.c.bf16 %v992, %v992
  %1010 = vmatprep.subr.bf16.mxu0 %v336
  %1011 = vmatpush1.bf16.msra.mxu0 %v335
  %1012 = vmatprep.subr.bf16.mxu0 %v340
  %1013 = vmatpush1.bf16.msra.mxu0 %v339
  %1014 = vmatprep.subr.bf16.mxu0 %v344
  %1015 = vmatpush1.bf16.msra.mxu0 %v343
  %1016 = vmatprep.subr.bf16.mxu0 %v348
  %1017 = vmatpush1.bf16.msra.mxu0 %v347
  %1018 = vmatprep.subr.bf16.mxu0 %v352
  %1019 = vmatpush1.bf16.msra.mxu0 %v351
  %1020 = vmatprep.subr.bf16.mxu0 %v356
  %1021 = vmatpush1.bf16.msra.mxu0 %v355
  %1022 = vmatprep.subr.bf16.mxu0 %v360
  %1023 = vmatpush1.bf16.msra.mxu0 %v359
  %1024 = vmatprep.subr.bf16.mxu0 %v364
  %1025 = vmatpush1.bf16.msra.mxu0 %v363
  %1026 = vmatprep.subr.bf16.mxu0 0
  %1027 = vmatpush1.bf16.msra.mxu0 0
  %1028 = vmatprep.subr.bf16.mxu0 0
  %1029 = vmatpush1.bf16.msra.mxu0 0
  %1030 = vmatprep.subr.bf16.mxu0 0
  %1031 = vmatpush1.bf16.msra.mxu0 0
  %1032 = vmatprep.subr.bf16.mxu0 0
  %1033 = vmatpush1.bf16.msra.mxu0 0
  %1034 = vmatprep.subr.bf16.mxu0 0
  %1035 = vmatpush1.bf16.msra.mxu0 0
  %1036 = vmatprep.subr.bf16.mxu0 0
  %1037 = vmatpush1.bf16.msra.mxu0 0
  %1038 = vmatprep.subr.bf16.mxu0 0
  %1039 = vmatpush1.bf16.msra.mxu0 0
  %1040 = vmatprep.subr.bf16.mxu0 0
  %1041 = vmatpush1.bf16.msra.mxu0 0
  %1042 = vmatprep.mubr.bf16.mxu0 0
  %1043 = vmatmul.mubr.bf16.gmra.mrb[0].mxu0 %v1009
  %v1044 = vpop.f32.mrb[0].mxu0
  %v1045 = vadd.f32 0.0, %v1044
  %v1046 = vpop.f32.mrb[0].mxu0
  %v1047 = vadd.f32 0.0, %v1046
  %v1048 = vpop.f32.mrb[0].mxu0
  %v1049 = vpop.f32.mrb[0].mxu0
  %1050 = vdwg.mxu0
  %1051 = vmatprep.subr.bf16.mxu0 %v338
  %1052 = vmatpush1.bf16.msra.mxu0 %v337
  %1053 = vmatprep.subr.bf16.mxu0 %v342
  %1054 = vmatpush1.bf16.msra.mxu0 %v341
  %1055 = vmatprep.subr.bf16.mxu0 %v346
  %1056 = vmatpush1.bf16.msra.mxu0 %v345
  %1057 = vmatprep.subr.bf16.mxu0 %v350
  %1058 = vmatpush1.bf16.msra.mxu0 %v349
  %1059 = vmatprep.subr.bf16.mxu0 %v354
  %1060 = vmatpush1.bf16.msra.mxu0 %v353
  %1061 = vmatprep.subr.bf16.mxu0 %v358
  %1062 = vmatpush1.bf16.msra.mxu0 %v357
  %1063 = vmatprep.subr.bf16.mxu0 %v362
  %1064 = vmatpush1.bf16.msra.mxu0 %v361
  %1065 = vmatprep.subr.bf16.mxu0 %v366
  %1066 = vmatpush1.bf16.msra.mxu0 %v365
  %1067 = vmatprep.subr.bf16.mxu0 0
  %1068 = vmatpush1.bf16.msra.mxu0 0
  %1069 = vmatprep.subr.bf16.mxu0 0
  %1070 = vmatpush1.bf16.msra.mxu0 0
  %1071 = vmatprep.subr.bf16.mxu0 0
  %1072 = vmatpush1.bf16.msra.mxu0 0
  %1073 = vmatprep.subr.bf16.mxu0 0
  %1074 = vmatpush1.bf16.msra.mxu0 0
  %1075 = vmatprep.subr.bf16.mxu0 0
  %1076 = vmatpush1.bf16.msra.mxu0 0
  %1077 = vmatprep.subr.bf16.mxu0 0
  %1078 = vmatpush1.bf16.msra.mxu0 0
  %1079 = vmatprep.subr.bf16.mxu0 0
  %1080 = vmatpush1.bf16.msra.mxu0 0
  %1081 = vmatprep.subr.bf16.mxu0 0
  %1082 = vmatpush1.bf16.msra.mxu0 0
  %1083 = vmatprep.mubr.bf16.mxu0 0
  %1084 = vmatmul.mubr.bf16.gmra.mrb[0].mxu0 %v1009
  %v1085 = vpop.f32.mrb[0].mxu0
  %v1086 = vadd.f32 0.0, %v1085
  %v1087 = vpop.f32.mrb[0].mxu0
  %v1088 = vadd.f32 0.0, %v1087
  %v1089 = vpop.f32.mrb[0].mxu0
  %v1090 = vpop.f32.mrb[0].mxu0
  %1091 = vdwg.mxu0
  %v1092 = vadd.f32 %v1005, %v1045
  %v1093 = vadd.f32 %v1006, %v1047
  %v1094 = vadd.f32 %v1007, %v1086
  %v1095 = vadd.f32 %v1008, %v1088
  %v1096 = vxor.u32 %v1092, 2147483648
  %v1097 = vmul.f32 %v1096, 1.442695
  %v1098 = vpow.pop %v1097
  %v1099 = vadd.f32 %v1098, 1.0
  %v1100 = vrcp.pop %v1099
  %v1101 = vmul.f32 1.0, %v1100
  %v1102 = vxor.u32 %v1093, 2147483648
  %v1103 = vmul.f32 %v1102, 1.442695
  %v1104 = vpow.pop %v1103
  %v1105 = vadd.f32 %v1104, 1.0
  %v1106 = vrcp.pop %v1105
  %v1107 = vmul.f32 1.0, %v1106
  %v1108 = vtanh.pop %v1094
  %v1109 = vxor.u32 %v1095, 2147483648
  %v1110 = vmul.f32 %v1109, 1.442695
  %v1111 = vpow.pop %v1110
  %v1112 = vadd.f32 %v1111, 1.0
  %v1113 = vrcp.pop %v1112
  %v1114 = vmul.f32 1.0, %v1113
  %v1115 = vmul.f32 %v1107, %v990
  %v1116 = vmul.f32 %v1101, %v1108
  %v1117 = vadd.f32 %v1115, %v1116
  %v1118 = vtanh.pop %v1117
  %v1119 = vmul.f32 %v1114, %v1118
  %s1120 = scalar_lea.vmem %s4, 40
  %1121 = vst [vmem:[%s1120] sm:$0xff] %v1119
  %s1122 = sadd.s32 %s487, 5
  %p1123 = scmp.eq.s32.totalorder %s1122, 7
  // Predicated region
  $region75: #{forward.3} parent=0 // pred_check
    %p1124 = pneg %p1123
  $region76: #{forward.3} parent=0 // pred_check_branch
    %1126 = sbr.rel (%p1124) target = $region78
  $region77: #{forward.3} parent=0 // pred_region
    %1127 = vst [vmem:[%s5] sm:$0xff] %v1119
    %1128 = vst [vmem:[%s6] sm:$0xff] %v1117
  $region78: #{forward.3} parent=0 // pred_fallthru
    _
  %s1129 = scalar_lea.vmem %s0, 96
  %v1130 = vld [vmem:[%s1129] sm:$0xff]
  %v1131 = vld [vmem:[%s1129 + $0x8] sm:$0xff]
  %v1132 = vunpack.c.l.bf16 %v1130
  %v1133 = vunpack.c.h.bf16 %v1130
  %v1134 = vunpack.c.l.bf16 %v1131
  %v1135 = vunpack.c.h.bf16 %v1131
  %v1136 = vpack.c.bf16 %v1119, %v1119
  %1137 = vmatprep.subr.bf16.mxu0 %v336
  %1138 = vmatpush1.bf16.msra.mxu0 %v335
  %1139 = vmatprep.subr.bf16.mxu0 %v340
  %1140 = vmatpush1.bf16.msra.mxu0 %v339
  %1141 = vmatprep.subr.bf16.mxu0 %v344
  %1142 = vmatpush1.bf16.msra.mxu0 %v343
  %1143 = vmatprep.subr.bf16.mxu0 %v348
  %1144 = vmatpush1.bf16.msra.mxu0 %v347
  %1145 = vmatprep.subr.bf16.mxu0 %v352
  %1146 = vmatpush1.bf16.msra.mxu0 %v351
  %1147 = vmatprep.subr.bf16.mxu0 %v356
  %1148 = vmatpush1.bf16.msra.mxu0 %v355
  %1149 = vmatprep.subr.bf16.mxu0 %v360
  %1150 = vmatpush1.bf16.msra.mxu0 %v359
  %1151 = vmatprep.subr.bf16.mxu0 %v364
  %1152 = vmatpush1.bf16.msra.mxu0 %v363
  %1153 = vmatprep.subr.bf16.mxu0 0
  %1154 = vmatpush1.bf16.msra.mxu0 0
  %1155 = vmatprep.subr.bf16.mxu0 0
  %1156 = vmatpush1.bf16.msra.mxu0 0
  %1157 = vmatprep.subr.bf16.mxu0 0
  %1158 = vmatpush1.bf16.msra.mxu0 0
  %1159 = vmatprep.subr.bf16.mxu0 0
  %1160 = vmatpush1.bf16.msra.mxu0 0
  %1161 = vmatprep.subr.bf16.mxu0 0
  %1162 = vmatpush1.bf16.msra.mxu0 0
  %1163 = vmatprep.subr.bf16.mxu0 0
  %1164 = vmatpush1.bf16.msra.mxu0 0
  %1165 = vmatprep.subr.bf16.mxu0 0
  %1166 = vmatpush1.bf16.msra.mxu0 0
  %1167 = vmatprep.subr.bf16.mxu0 0
  %1168 = vmatpush1.bf16.msra.mxu0 0
  %1169 = vmatprep.mubr.bf16.mxu0 0
  %1170 = vmatmul.mubr.bf16.gmra.mrb[0].mxu0 %v1136
  %v1171 = vpop.f32.mrb[0].mxu0
  %v1172 = vadd.f32 0.0, %v1171
  %v1173 = vpop.f32.mrb[0].mxu0
  %v1174 = vadd.f32 0.0, %v1173
  %v1175 = vpop.f32.mrb[0].mxu0
  %v1176 = vpop.f32.mrb[0].mxu0
  %1177 = vdwg.mxu0
  %1178 = vmatprep.subr.bf16.mxu0 %v338
  %1179 = vmatpush1.bf16.msra.mxu0 %v337
  %1180 = vmatprep.subr.bf16.mxu0 %v342
  %1181 = vmatpush1.bf16.msra.mxu0 %v341
  %1182 = vmatprep.subr.bf16.mxu0 %v346
  %1183 = vmatpush1.bf16.msra.mxu0 %v345
  %1184 = vmatprep.subr.bf16.mxu0 %v350
  %1185 = vmatpush1.bf16.msra.mxu0 %v349
  %1186 = vmatprep.subr.bf16.mxu0 %v354
  %1187 = vmatpush1.bf16.msra.mxu0 %v353
  %1188 = vmatprep.subr.bf16.mxu0 %v358
  %1189 = vmatpush1.bf16.msra.mxu0 %v357
  %1190 = vmatprep.subr.bf16.mxu0 %v362
  %1191 = vmatpush1.bf16.msra.mxu0 %v361
  %1192 = vmatprep.subr.bf16.mxu0 %v366
  %1193 = vmatpush1.bf16.msra.mxu0 %v365
  %1194 = vmatprep.subr.bf16.mxu0 0
  %1195 = vmatpush1.bf16.msra.mxu0 0
  %1196 = vmatprep.subr.bf16.mxu0 0
  %1197 = vmatpush1.bf16.msra.mxu0 0
  %1198 = vmatprep.subr.bf16.mxu0 0
  %1199 = vmatpush1.bf16.msra.mxu0 0
  %1200 = vmatprep.subr.bf16.mxu0 0
  %1201 = vmatpush1.bf16.msra.mxu0 0
  %1202 = vmatprep.subr.bf16.mxu0 0
  %1203 = vmatpush1.bf16.msra.mxu0 0
  %1204 = vmatprep.subr.bf16.mxu0 0
  %1205 = vmatpush1.bf16.msra.mxu0 0
  %1206 = vmatprep.subr.bf16.mxu0 0
  %1207 = vmatpush1.bf16.msra.mxu0 0
  %1208 = vmatprep.subr.bf16.mxu0 0
  %1209 = vmatpush1.bf16.msra.mxu0 0
  %1210 = vmatprep.mubr.bf16.mxu0 0
  %1211 = vmatmul.mubr.bf16.gmra.mrb[0].mxu0 %v1136
  %v1212 = vpop.f32.mrb[0].mxu0
  %v1213 = vadd.f32 0.0, %v1212
  %v1214 = vpop.f32.mrb[0].mxu0
  %v1215 = vadd.f32 0.0, %v1214
  %v1216 = vpop.f32.mrb[0].mxu0
  %v1217 = vpop.f32.mrb[0].mxu0
  %1218 = vdwg.mxu0
  %v1219 = vadd.f32 %v1132, %v1172
  %v1220 = vadd.f32 %v1133, %v1174
  %v1221 = vadd.f32 %v1134, %v1213
  %v1222 = vadd.f32 %v1135, %v1215
  %v1223 = vxor.u32 %v1219, 2147483648
  %v1224 = vmul.f32 %v1223, 1.442695
  %v1225 = vpow.pop %v1224
  %v1226 = vadd.f32 %v1225, 1.0
  %v1227 = vrcp.pop %v1226
  %v1228 = vmul.f32 1.0, %v1227
  %v1229 = vxor.u32 %v1220, 2147483648
  %v1230 = vmul.f32 %v1229, 1.442695
  %v1231 = vpow.pop %v1230
  %v1232 = vadd.f32 %v1231, 1.0
  %v1233 = vrcp.pop %v1232
  %v1234 = vmul.f32 1.0, %v1233
  %v1235 = vtanh.pop %v1221
  %v1236 = vxor.u32 %v1222, 2147483648
  %v1237 = vmul.f32 %v1236, 1.442695
  %v1238 = vpow.pop %v1237
  %v1239 = vadd.f32 %v1238, 1.0
  %v1240 = vrcp.pop %v1239
  %v1241 = vmul.f32 1.0, %v1240
  %v1242 = vmul.f32 %v1234, %v1117
  %v1243 = vmul.f32 %v1228, %v1235
  %v1244 = vadd.f32 %v1242, %v1243
  %v1245 = vtanh.pop %v1244
  %v1246 = vmul.f32 %v1241, %v1245
  %s1247 = scalar_lea.vmem %s4, 48
  %1248 = vst [vmem:[%s1247] sm:$0xff] %v1246
  %s1249 = sadd.s32 %s487, 6
  %p1250 = scmp.eq.s32.totalorder %s1249, 7
  // Predicated region
  $region79: #{forward.3} parent=0 // pred_check
    %p1251 = pneg %p1250
  $region80: #{forward.3} parent=0 // pred_check_branch
    %1253 = sbr.rel (%p1251) target = $region82
  $region81: #{forward.3} parent=0 // pred_region
    %1254 = vst [vmem:[%s5] sm:$0xff] %v1246
    %1255 = vst [vmem:[%s6] sm:$0xff] %v1244
  $region82: #{forward.3} parent=0 // pred_fallthru
    _
  %s1256 = scalar_lea.vmem %s0, 112
  %v1257 = vld [vmem:[%s1256] sm:$0xff]
  %v1258 = vld [vmem:[%s1256 + $0x8] sm:$0xff]
  %v1259 = vunpack.c.l.bf16 %v1257
  %v1260 = vunpack.c.h.bf16 %v1257
  %v1261 = vunpack.c.l.bf16 %v1258
  %v1262 = vunpack.c.h.bf16 %v1258
  %v1263 = vpack.c.bf16 %v1246, %v1246
  %1264 = vmatprep.subr.bf16.mxu0 %v336
  %1265 = vmatpush1.bf16.msra.mxu0 %v335
  %1266 = vmatprep.subr.bf16.mxu0 %v340
  %1267 = vmatpush1.bf16.msra.mxu0 %v339
  %1268 = vmatprep.subr.bf16.mxu0 %v344
  %1269 = vmatpush1.bf16.msra.mxu0 %v343
  %1270 = vmatprep.subr.bf16.mxu0 %v348
  %1271 = vmatpush1.bf16.msra.mxu0 %v347
  %1272 = vmatprep.subr.bf16.mxu0 %v352
  %1273 = vmatpush1.bf16.msra.mxu0 %v351
  %1274 = vmatprep.subr.bf16.mxu0 %v356
  %1275 = vmatpush1.bf16.msra.mxu0 %v355
  %1276 = vmatprep.subr.bf16.mxu0 %v360
  %1277 = vmatpush1.bf16.msra.mxu0 %v359
  %1278 = vmatprep.subr.bf16.mxu0 %v364
  %1279 = vmatpush1.bf16.msra.mxu0 %v363
  %1280 = vmatprep.subr.bf16.mxu0 0
  %1281 = vmatpush1.bf16.msra.mxu0 0
  %1282 = vmatprep.subr.bf16.mxu0 0
  %1283 = vmatpush1.bf16.msra.mxu0 0
  %1284 = vmatprep.subr.bf16.mxu0 0
  %1285 = vmatpush1.bf16.msra.mxu0 0
  %1286 = vmatprep.subr.bf16.mxu0 0
  %1287 = vmatpush1.bf16.msra.mxu0 0
  %1288 = vmatprep.subr.bf16.mxu0 0
  %1289 = vmatpush1.bf16.msra.mxu0 0
  %1290 = vmatprep.subr.bf16.mxu0 0
  %1291 = vmatpush1.bf16.msra.mxu0 0
  %1292 = vmatprep.subr.bf16.mxu0 0
  %1293 = vmatpush1.bf16.msra.mxu0 0
  %1294 = vmatprep.subr.bf16.mxu0 0
  %1295 = vmatpush1.bf16.msra.mxu0 0
  %1296 = vmatprep.mubr.bf16.mxu0 0
  %1297 = vmatmul.mubr.bf16.gmra.mrb[0].mxu0 %v1263
  %v1298 = vpop.f32.mrb[0].mxu0
  %v1299 = vadd.f32 0.0, %v1298
  %v1300 = vpop.f32.mrb[0].mxu0
  %v1301 = vadd.f32 0.0, %v1300
  %v1302 = vpop.f32.mrb[0].mxu0
  %v1303 = vpop.f32.mrb[0].mxu0
  %1304 = vdwg.mxu0
  %1305 = vmatprep.subr.bf16.mxu0 %v338
  %1306 = vmatpush1.bf16.msra.mxu0 %v337
  %1307 = vmatprep.subr.bf16.mxu0 %v342
  %1308 = vmatpush1.bf16.msra.mxu0 %v341
  %1309 = vmatprep.subr.bf16.mxu0 %v346
  %1310 = vmatpush1.bf16.msra.mxu0 %v345
  %1311 = vmatprep.subr.bf16.mxu0 %v350
  %1312 = vmatpush1.bf16.msra.mxu0 %v349
  %1313 = vmatprep.subr.bf16.mxu0 %v354
  %1314 = vmatpush1.bf16.msra.mxu0 %v353
  %1315 = vmatprep.subr.bf16.mxu0 %v358
  %1316 = vmatpush1.bf16.msra.mxu0 %v357
  %1317 = vmatprep.subr.bf16.mxu0 %v362
  %1318 = vmatpush1.bf16.msra.mxu0 %v361
  %1319 = vmatprep.subr.bf16.mxu0 %v366
  %1320 = vmatpush1.bf16.msra.mxu0 %v365
  %1321 = vmatprep.subr.bf16.mxu0 0
  %1322 = vmatpush1.bf16.msra.mxu0 0
  %1323 = vmatprep.subr.bf16.mxu0 0
  %1324 = vmatpush1.bf16.msra.mxu0 0
  %1325 = vmatprep.subr.bf16.mxu0 0
  %1326 = vmatpush1.bf16.msra.mxu0 0
  %1327 = vmatprep.subr.bf16.mxu0 0
  %1328 = vmatpush1.bf16.msra.mxu0 0
  %1329 = vmatprep.subr.bf16.mxu0 0
  %1330 = vmatpush1.bf16.msra.mxu0 0
  %1331 = vmatprep.subr.bf16.mxu0 0
  %1332 = vmatpush1.bf16.msra.mxu0 0
  %1333 = vmatprep.subr.bf16.mxu0 0
  %1334 = vmatpush1.bf16.msra.mxu0 0
  %1335 = vmatprep.subr.bf16.mxu0 0
  %1336 = vmatpush1.bf16.msra.mxu0 0
  %1337 = vmatprep.mubr.bf16.mxu0 0
  %1338 = vmatmul.mubr.bf16.gmra.mrb[0].mxu0 %v1263
  %v1339 = vpop.f32.mrb[0].mxu0
  %v1340 = vadd.f32 0.0, %v1339
  %v1341 = vpop.f32.mrb[0].mxu0
  %v1342 = vadd.f32 0.0, %v1341
  %v1343 = vpop.f32.mrb[0].mxu0
  %v1344 = vpop.f32.mrb[0].mxu0
  %1345 = vdwg.mxu0
  %v1346 = vadd.f32 %v1259, %v1299
  %v1347 = vadd.f32 %v1260, %v1301
  %v1348 = vadd.f32 %v1261, %v1340
  %v1349 = vadd.f32 %v1262, %v1342
  %v1350 = vxor.u32 %v1346, 2147483648
  %v1351 = vmul.f32 %v1350, 1.442695
  %v1352 = vpow.pop %v1351
  %v1353 = vadd.f32 %v1352, 1.0
  %v1354 = vrcp.pop %v1353
  %v1355 = vmul.f32 1.0, %v1354
  %v1356 = vxor.u32 %v1347, 2147483648
  %v1357 = vmul.f32 %v1356, 1.442695
  %v1358 = vpow.pop %v1357
  %v1359 = vadd.f32 %v1358, 1.0
  %v1360 = vrcp.pop %v1359
  %v1361 = vmul.f32 1.0, %v1360
  %v1362 = vtanh.pop %v1348
  %v1363 = vxor.u32 %v1349, 2147483648
  %v1364 = vmul.f32 %v1363, 1.442695
  %v1365 = vpow.pop %v1364
  %v1366 = vadd.f32 %v1365, 1.0
  %v1367 = vrcp.pop %v1366
  %v1368 = vmul.f32 1.0, %v1367
  %v1369 = vmul.f32 %v1361, %v1244
  %v1370 = vmul.f32 %v1355, %v1362
  %v1371 = vadd.f32 %v1369, %v1370
  %v1372 = vtanh.pop %v1371
  %v1373 = vmul.f32 %v1368, %v1372
  %s1374 = scalar_lea.vmem %s4, 56
  %1375 = vst [vmem:[%s1374] sm:$0xff] %v1373
  %s1376 = sadd.s32 %s487, 7
  %p1377 = scmp.eq.s32.totalorder %s1376, 7
  // Predicated region
  $region83: #{forward.3} parent=0 // pred_check
    %p1378 = pneg %p1377
  $region84: #{forward.3} parent=0 // pred_check_branch
    %1380 = sbr.rel (%p1378) target = $region86
  $region85: #{forward.3} parent=0 // pred_region
    %1381 = vst [vmem:[%s5] sm:$0xff] %v1373
    %1382 = vst [vmem:[%s6] sm:$0xff] %v1371
  $region86: #{forward.3} parent=0 // pred_fallthru
    _
  %1383 = vst [vmem:[#allocation3] sm:$0xff] %v1373
  %1384 = vst [vmem:[#allocation4] sm:$0xff] %v1371
  // Predicated region
  $region87: #{forward.3} parent=0 // pred_check
    _
  $region88: #{forward.3} parent=0 // pred_check_branch
    %1386 = sbr.rel (0) target = $region90
  $region89: #{forward.3} parent=0 // pred_region
    _
  $region90: #{forward.3} parent=0 // pred_fallthru
    _
  // Predicated region
  $region91: #{forward.3} parent=0 // pred_check
    _
  $region92: #{forward.3} parent=0 // pred_check_branch
    %1388 = sbr.rel (0) target = $region94
  $region93: #{forward.3} parent=0 // pred_region
    _
  $region94: #{forward.3} parent=0 // pred_fallthru
    _
  // Predicated region
  $region95: #{forward.3} parent=0 // pred_check
    _
  $region96: #{forward.3} parent=0 // pred_check_branch
    %1390 = sbr.rel (0) target = $region98
  $region97: #{forward.3} parent=0 // pred_region
    _
  $region98: #{forward.3} parent=0 // pred_fallthru
    _
  // Predicated region
  $region99: #{forward.3} parent=0 // pred_check
    _
  $region100: #{forward.3} parent=0 // pred_check_branch
    %1392 = sbr.rel (0) target = $region102
  $region101: #{forward.3} parent=0 // pred_region
    _
  $region102: #{forward.3} parent=0 // pred_fallthru
    _
  // Predicated region
  $region103: #{forward.3} parent=0 // pred_check
    _
  $region104: #{forward.3} parent=0 // pred_check_branch
    %1394 = sbr.rel (0) target = $region106
  $region105: #{forward.3} parent=0 // pred_region
    _
  $region106: #{forward.3} parent=0 // pred_fallthru
    _
  // Predicated region
  $region107: #{forward.3} parent=0 // pred_check
    _
  $region108: #{forward.3} parent=0 // pred_check_branch
    %1396 = sbr.rel (0) target = $region110
  $region109: #{forward.3} parent=0 // pred_region
    _
  $region110: #{forward.3} parent=0 // pred_fallthru
    _
  %1397 = vsyncmov [#allocation5]
  %s1398 = vpop.sfrf %1397
  %p1399 = scmp.eq.s32.totalorder %s1398, 0
  %p1400 = pneg %p1399
  %1402 = shalt.err (%p1400)

// kernel: forward.2
$region0: #{forward.2}
  #allocation0 [shape = 'u32[]', space=smem, size = 0x4, offset = 0x4, fixed_abs, tag = 'smem constant byte address 0x4 - core index']
  #allocation1 [shape = 'u32[144,128]{1,0:T(1,128)}', space=vmem, size = 0x12000, scoped, tag = 'internal scratch']
  #allocation2 [shape = 'bf16[128,512]{1,0:T(16,128)(2,1)}', space=vmem, size = 0x20000, scoped, tag = 'scratch operand']
  #allocation3 [shape = 'f32[8,128]{1,0:T(8,128)}', space=vmem, size = 0x1000, scoped, tag = 'scratch operand']
  #allocation4 [shape = 'f32[8,128]{1,0:T(8,128)}', space=vmem, size = 0x1000, scoped, tag = 'scratch operand']
  #allocation5 [shape = 's32[1]{0}', space=sflag, size = 0x4, scoped, tag = 'scratch operand']
  #allocation6 [shape = 's32[]', space=sflag, size = 0x4, offset = 0, fixed_abs, tag = 'sflag constant byte address 0x0 - dummy sync flag']
  %s0 = inlined_call_operand.vmem [shape: bf16[8,8,512], index: 0, kind: input, shape index: {}]
  %s1 = inlined_call_operand.vmem [shape: f32[8,128], index: 1, kind: input, shape index: {}]
  %s2 = inlined_call_operand.vmem [shape: f32[8,128], index: 2, kind: input, shape index: {}]
  %s3 = inlined_call_operand.vmem [shape: bf16[128,512], index: 3, kind: input, shape index: {}]
  %s4 = inlined_call_operand.vmem [shape: bf16[8,8,128], index: 4, kind: output, shape index: {0}]
  %s5 = inlined_call_operand.vmem [shape: f32[8,128], index: 5, kind: output, shape index: {1}]
  %s6 = inlined_call_operand.vmem [shape: f32[8,128], index: 6, kind: output, shape index: {2}]
  %7 = xla_tuple %s4, %s5, %s6
  %s8 = sld [smem:[#allocation0]]
  $region111: #{forward.2} parent=0
    _
  %s10 = ssub.s32 1, %s8
  %s11 = scalar_select 0, %s10, %s8
  // Predicated region
  $region2: #{forward.2} parent=0 // pred_check
    _
  $region3: #{forward.2} parent=0 // pred_check_branch
    %13 = sbr.rel (0) target = $region5
  $region4: #{forward.2} parent=0 // pred_region
    _
  $region5: #{forward.2} parent=0 // pred_fallthru
    _
  // Predicated region
  $region6: #{forward.2} parent=0 // pred_check
    _
  $region7: #{forward.2} parent=0 // pred_check_branch
    %15 = sbr.rel (0) target = $region9
  $region8: #{forward.2} parent=0 // pred_region
    _
  $region9: #{forward.2} parent=0 // pred_fallthru
    _
  // Predicated region
  $region10: #{forward.2} parent=0 // pred_check
    _
  $region11: #{forward.2} parent=0 // pred_check_branch
    %17 = sbr.rel (0) target = $region13
  $region12: #{forward.2} parent=0 // pred_region
    _
  $region13: #{forward.2} parent=0 // pred_fallthru
    _
  %p19 = scmp.eq.s32.totalorder 0, 0
  // Predicated region
  $region14: #{forward.2} parent=0 // pred_check
    %p20 = pneg %p19
  $region15: #{forward.2} parent=0 // pred_check_branch
    %22 = sbr.rel (%p20) target = $region17
  $region16: #{forward.2} parent=0 // pred_region
    %p24 = scmp.lt.u32.totalorder 4, 8
    %p25 = pneg %p24
    // Predicated region
    $region18: #{forward.2} parent=16 // pred_check
      _
    $region19: #{forward.2} parent=16 // pred_check_branch
      %27 = sbr.rel (%p24) target = $region21
    $region20: #{forward.2} parent=16 // pred_region
      %s168 = sand.u32 4, 7
      %p169 = scmp.eq.s32.totalorder %s168, 0
      %p170 = pneg %p169
      // Predicated region
      $region33: #{forward.2} parent=20 // pred_check
        _
      $region34: #{forward.2} parent=20 // pred_check_branch
        %172 = sbr.rel (%p169) target = $region36
      $region35: #{forward.2} parent=20 // pred_region
        %s173 = sand.u32 4, 7
        %s174 = ssub.s32 4, %s173
        %s175 = scalar_lea.vmem %s3, %s174
        %s176 = ssub.s32 4, %s173
        %s177 = scalar_lea.vmem [#allocation2], %s176
        loop: start=0, step=1, limit=1
        $region37: #{forward.2} parent=35 // loop_pre_header
          _
        $region38: #{forward.2} parent=35 // loop_header
          %s179 = sphi 0, %s183
          %p180 = scmp.ge.s32.totalorder %s179, 1
          %s184 = sphi %s3, %s3
          %s185 = sphi [#allocation2], [#allocation2]
        $region39: #{forward.2} parent=35 // loop_header_branch
          %182 = sbr.rel (%p180) target = $region43
        $region40: #{forward.2} parent=35 // loop_body
          _
        $region41: #{forward.2} parent=35 // loop_footer
          %s183 = sadd.s32 1, %s179
        $region42: #{forward.2} parent=35 // loop_footer_branch
          %178 = sbr.rel target = $region38
        $region43: #{forward.2} parent=35 // loop_exit
          _
        %s186 = sshllo.u32 0, %s173
        loop: start=0, step=1, limit=1
        $region44: #{forward.2} parent=35 // loop_pre_header
          _
        $region45: #{forward.2} parent=35 // loop_header
          %s188 = sphi 0, %s192
          %p189 = scmp.ge.s32.totalorder %s188, 1
          %s193 = sphi %s175, %s175
          %s194 = sphi %s177, %s177
        $region46: #{forward.2} parent=35 // loop_header_branch
          %191 = sbr.rel (%p189) target = $region50
        $region47: #{forward.2} parent=35 // loop_body
          %v195 = vld [vmem:[%s193] sm:%s186]
          %196 = vst [vmem:[%s194] sm:%s186] %v195
          %v197 = vld [vmem:[%s193 + $0x10] sm:%s186]
          %198 = vst [vmem:[%s194 + $0x4] sm:%s186] %v197
          %v199 = vld [vmem:[%s193 + $0x4] sm:%s186]
          %200 = vst [vmem:[%s194 + $0x8] sm:%s186] %v199
          %v201 = vld [vmem:[%s193 + $0x14] sm:%s186]
          %202 = vst [vmem:[%s194 + $0xc] sm:%s186] %v201
          %v203 = vld [vmem:[%s193 + $0x8] sm:%s186]
          %204 = vst [vmem:[%s194 + $0x10] sm:%s186] %v203
          %v205 = vld [vmem:[%s193 + $0x18] sm:%s186]
          %206 = vst [vmem:[%s194 + $0x14] sm:%s186] %v205
          %v207 = vld [vmem:[%s193 + $0xc] sm:%s186]
          %208 = vst [vmem:[%s194 + $0x18] sm:%s186] %v207
          %v209 = vld [vmem:[%s193 + $0x1c] sm:%s186]
          %210 = vst [vmem:[%s194 + $0x1c] sm:%s186] %v209
          %v211 = vld [vmem:[%s193 + $0x20] sm:%s186]
          %212 = vst [vmem:[%s194 + $0x20] sm:%s186] %v211
          %v213 = vld [vmem:[%s193 + $0x30] sm:%s186]
          %214 = vst [vmem:[%s194 + $0x24] sm:%s186] %v213
          %v215 = vld [vmem:[%s193 + $0x24] sm:%s186]
          %216 = vst [vmem:[%s194 + $0x28] sm:%s186] %v215
          %v217 = vld [vmem:[%s193 + $0x34] sm:%s186]
          %218 = vst [vmem:[%s194 + $0x2c] sm:%s186] %v217
          %v219 = vld [vmem:[%s193 + $0x28] sm:%s186]
          %220 = vst [vmem:[%s194 + $0x30] sm:%s186] %v219
          %v221 = vld [vmem:[%s193 + $0x38] sm:%s186]
          %222 = vst [vmem:[%s194 + $0x34] sm:%s186] %v221
          %v223 = vld [vmem:[%s193 + $0x2c] sm:%s186]
          %224 = vst [vmem:[%s194 + $0x38] sm:%s186] %v223
          %v225 = vld [vmem:[%s193 + $0x3c] sm:%s186]
          %226 = vst [vmem:[%s194 + $0x3c] sm:%s186] %v225
          %v227 = vld [vmem:[%s193 + $0x40] sm:%s186]
          %228 = vst [vmem:[%s194 + $0x40] sm:%s186] %v227
          %v229 = vld [vmem:[%s193 + $0x50] sm:%s186]
          %230 = vst [vmem:[%s194 + $0x44] sm:%s186] %v229
          %v231 = vld [vmem:[%s193 + $0x44] sm:%s186]
          %232 = vst [vmem:[%s194 + $0x48] sm:%s186] %v231
          %v233 = vld [vmem:[%s193 + $0x54] sm:%s186]
          %234 = vst [vmem:[%s194 + $0x4c] sm:%s186] %v233
          %v235 = vld [vmem:[%s193 + $0x48] sm:%s186]
          %236 = vst [vmem:[%s194 + $0x50] sm:%s186] %v235
          %v237 = vld [vmem:[%s193 + $0x58] sm:%s186]
          %238 = vst [vmem:[%s194 + $0x54] sm:%s186] %v237
          %v239 = vld [vmem:[%s193 + $0x4c] sm:%s186]
          %240 = vst [vmem:[%s194 + $0x58] sm:%s186] %v239
          %v241 = vld [vmem:[%s193 + $0x5c] sm:%s186]
          %242 = vst [vmem:[%s194 + $0x5c] sm:%s186] %v241
          %v243 = vld [vmem:[%s193 + $0x60] sm:%s186]
          %244 = vst [vmem:[%s194 + $0x60] sm:%s186] %v243
          %v245 = vld [vmem:[%s193 + $0x70] sm:%s186]
          %246 = vst [vmem:[%s194 + $0x64] sm:%s186] %v245
          %v247 = vld [vmem:[%s193 + $0x64] sm:%s186]
          %248 = vst [vmem:[%s194 + $0x68] sm:%s186] %v247
          %v249 = vld [vmem:[%s193 + $0x74] sm:%s186]
          %250 = vst [vmem:[%s194 + $0x6c] sm:%s186] %v249
          %v251 = vld [vmem:[%s193 + $0x68] sm:%s186]
          %252 = vst [vmem:[%s194 + $0x70] sm:%s186] %v251
          %v253 = vld [vmem:[%s193 + $0x78] sm:%s186]
          %254 = vst [vmem:[%s194 + $0x74] sm:%s186] %v253
          %v255 = vld [vmem:[%s193 + $0x6c] sm:%s186]
          %256 = vst [vmem:[%s194 + $0x78] sm:%s186] %v255
          %v257 = vld [vmem:[%s193 + $0x7c] sm:%s186]
          %258 = vst [vmem:[%s194 + $0x7c] sm:%s186] %v257
          %v259 = vld [vmem:[%s193 + $0x80] sm:%s186]
          %260 = vst [vmem:[%s194 + $0x80] sm:%s186] %v259
          %v261 = vld [vmem:[%s193 + $0x90] sm:%s186]
          %262 = vst [vmem:[%s194 + $0x84] sm:%s186] %v261
          %v263 = vld [vmem:[%s193 + $0x84] sm:%s186]
          %264 = vst [vmem:[%s194 + $0x88] sm:%s186] %v263
          %v265 = vld [vmem:[%s193 + $0x94] sm:%s186]
          %266 = vst [vmem:[%s194 + $0x8c] sm:%s186] %v265
          %v267 = vld [vmem:[%s193 + $0x88] sm:%s186]
          %268 = vst [vmem:[%s194 + $0x90] sm:%s186] %v267
          %v269 = vld [vmem:[%s193 + $0x98] sm:%s186]
          %270 = vst [vmem:[%s194 + $0x94] sm:%s186] %v269
          %v271 = vld [vmem:[%s193 + $0x8c] sm:%s186]
          %272 = vst [vmem:[%s194 + $0x98] sm:%s186] %v271
          %v273 = vld [vmem:[%s193 + $0x9c] sm:%s186]
          %274 = vst [vmem:[%s194 + $0x9c] sm:%s186] %v273
          %v275 = vld [vmem:[%s193 + $0xa0] sm:%s186]
          %276 = vst [vmem:[%s194 + $0xa0] sm:%s186] %v275
          %v277 = vld [vmem:[%s193 + $0xb0] sm:%s186]
          %278 = vst [vmem:[%s194 + $0xa4] sm:%s186] %v277
          %v279 = vld [vmem:[%s193 + $0xa4] sm:%s186]
          %280 = vst [vmem:[%s194 + $0xa8] sm:%s186] %v279
          %v281 = vld [vmem:[%s193 + $0xb4] sm:%s186]
          %282 = vst [vmem:[%s194 + $0xac] sm:%s186] %v281
          %v283 = vld [vmem:[%s193 + $0xa8] sm:%s186]
          %284 = vst [vmem:[%s194 + $0xb0] sm:%s186] %v283
          %v285 = vld [vmem:[%s193 + $0xb8] sm:%s186]
          %286 = vst [vmem:[%s194 + $0xb4] sm:%s186] %v285
          %v287 = vld [vmem:[%s193 + $0xac] sm:%s186]
          %288 = vst [vmem:[%s194 + $0xb8] sm:%s186] %v287
          %v289 = vld [vmem:[%s193 + $0xbc] sm:%s186]
          %290 = vst [vmem:[%s194 + $0xbc] sm:%s186] %v289
          %v291 = vld [vmem:[%s193 + $0xc0] sm:%s186]
          %292 = vst [vmem:[%s194 + $0xc0] sm:%s186] %v291
          %v293 = vld [vmem:[%s193 + $0xd0] sm:%s186]
          %294 = vst [vmem:[%s194 + $0xc4] sm:%s186] %v293
          %v295 = vld [vmem:[%s193 + $0xc4] sm:%s186]
          %296 = vst [vmem:[%s194 + $0xc8] sm:%s186] %v295
          %v297 = vld [vmem:[%s193 + $0xd4] sm:%s186]
          %298 = vst [vmem:[%s194 + $0xcc] sm:%s186] %v297
          %v299 = vld [vmem:[%s193 + $0xc8] sm:%s186]
          %300 = vst [vmem:[%s194 + $0xd0] sm:%s186] %v299
          %v301 = vld [vmem:[%s193 + $0xd8] sm:%s186]
          %302 = vst [vmem:[%s194 + $0xd4] sm:%s186] %v301
          %v303 = vld [vmem:[%s193 + $0xcc] sm:%s186]
          %304 = vst [vmem:[%s194 + $0xd8] sm:%s186] %v303
          %v305 = vld [vmem:[%s193 + $0xdc] sm:%s186]
          %306 = vst [vmem:[%s194 + $0xdc] sm:%s186] %v305
          %v307 = vld [vmem:[%s193 + $0xe0] sm:%s186]
          %308 = vst [vmem:[%s194 + $0xe0] sm:%s186] %v307
          %v309 = vld [vmem:[%s193 + $0xf0] sm:%s186]
          %310 = vst [vmem:[%s194 + $0xe4] sm:%s186] %v309
          %v311 = vld [vmem:[%s193 + $0xe4] sm:%s186]
          %312 = vst [vmem:[%s194 + $0xe8] sm:%s186] %v311
          %v313 = vld [vmem:[%s193 + $0xf4] sm:%s186]
          %314 = vst [vmem:[%s194 + $0xec] sm:%s186] %v313
          %v315 = vld [vmem:[%s193 + $0xe8] sm:%s186]
          %316 = vst [vmem:[%s194 + $0xf0] sm:%s186] %v315
          %v317 = vld [vmem:[%s193 + $0xf8] sm:%s186]
          %318 = vst [vmem:[%s194 + $0xf4] sm:%s186] %v317
          %v319 = vld [vmem:[%s193 + $0xec] sm:%s186]
          %320 = vst [vmem:[%s194 + $0xf8] sm:%s186] %v319
          %v321 = vld [vmem:[%s193 + $0xfc] sm:%s186]
          %322 = vst [vmem:[%s194 + $0xfc] sm:%s186] %v321
        $region48: #{forward.2} parent=35 // loop_footer
          %s192 = sadd.s32 1, %s188
        $region49: #{forward.2} parent=35 // loop_footer_branch
          %187 = sbr.rel target = $region45
        $region50: #{forward.2} parent=35 // loop_exit
          _
      $region36: #{forward.2} parent=20 // pred_fallthru
        _
    $region21: #{forward.2} parent=16 // pred_fallthru
      _
    // Predicated region
    $region22: #{forward.2} parent=16 // pred_check
      %p28 = pneg %p24
    $region23: #{forward.2} parent=16 // pred_check_branch
      %30 = sbr.rel (%p28) target = $region25
    $region24: #{forward.2} parent=16 // pred_region
      %s31 = sshllo.u32 0, 4
      loop: start=0, step=1, limit=1
      $region26: #{forward.2} parent=24 // loop_pre_header
        _
      $region27: #{forward.2} parent=24 // loop_header
        %s33 = sphi 0, %s37
        %p34 = scmp.ge.s32.totalorder %s33, 1
        %s38 = sphi %s3, %s3
        %s39 = sphi [#allocation2], [#allocation2]
      $region28: #{forward.2} parent=24 // loop_header_branch
        %36 = sbr.rel (%p34) target = $region32
      $region29: #{forward.2} parent=24 // loop_body
        %v40 = vld [vmem:[%s38] sm:%s31]
        %41 = vst [vmem:[%s39] sm:%s31] %v40
        %v42 = vld [vmem:[%s38 + $0x10] sm:%s31]
        %43 = vst [vmem:[%s39 + $0x4] sm:%s31] %v42
        %v44 = vld [vmem:[%s38 + $0x4] sm:%s31]
        %45 = vst [vmem:[%s39 + $0x8] sm:%s31] %v44
        %v46 = vld [vmem:[%s38 + $0x14] sm:%s31]
        %47 = vst [vmem:[%s39 + $0xc] sm:%s31] %v46
        %v48 = vld [vmem:[%s38 + $0x8] sm:%s31]
        %49 = vst [vmem:[%s39 + $0x10] sm:%s31] %v48
        %v50 = vld [vmem:[%s38 + $0x18] sm:%s31]
        %51 = vst [vmem:[%s39 + $0x14] sm:%s31] %v50
        %v52 = vld [vmem:[%s38 + $0xc] sm:%s31]
        %53 = vst [vmem:[%s39 + $0x18] sm:%s31] %v52
        %v54 = vld [vmem:[%s38 + $0x1c] sm:%s31]
        %55 = vst [vmem:[%s39 + $0x1c] sm:%s31] %v54
        %v56 = vld [vmem:[%s38 + $0x20] sm:%s31]
        %57 = vst [vmem:[%s39 + $0x20] sm:%s31] %v56
        %v58 = vld [vmem:[%s38 + $0x30] sm:%s31]
        %59 = vst [vmem:[%s39 + $0x24] sm:%s31] %v58
        %v60 = vld [vmem:[%s38 + $0x24] sm:%s31]
        %61 = vst [vmem:[%s39 + $0x28] sm:%s31] %v60
        %v62 = vld [vmem:[%s38 + $0x34] sm:%s31]
        %63 = vst [vmem:[%s39 + $0x2c] sm:%s31] %v62
        %v64 = vld [vmem:[%s38 + $0x28] sm:%s31]
        %65 = vst [vmem:[%s39 + $0x30] sm:%s31] %v64
        %v66 = vld [vmem:[%s38 + $0x38] sm:%s31]
        %67 = vst [vmem:[%s39 + $0x34] sm:%s31] %v66
        %v68 = vld [vmem:[%s38 + $0x2c] sm:%s31]
        %69 = vst [vmem:[%s39 + $0x38] sm:%s31] %v68
        %v70 = vld [vmem:[%s38 + $0x3c] sm:%s31]
        %71 = vst [vmem:[%s39 + $0x3c] sm:%s31] %v70
        %v72 = vld [vmem:[%s38 + $0x40] sm:%s31]
        %73 = vst [vmem:[%s39 + $0x40] sm:%s31] %v72
        %v74 = vld [vmem:[%s38 + $0x50] sm:%s31]
        %75 = vst [vmem:[%s39 + $0x44] sm:%s31] %v74
        %v76 = vld [vmem:[%s38 + $0x44] sm:%s31]
        %77 = vst [vmem:[%s39 + $0x48] sm:%s31] %v76
        %v78 = vld [vmem:[%s38 + $0x54] sm:%s31]
        %79 = vst [vmem:[%s39 + $0x4c] sm:%s31] %v78
        %v80 = vld [vmem:[%s38 + $0x48] sm:%s31]
        %81 = vst [vmem:[%s39 + $0x50] sm:%s31] %v80
        %v82 = vld [vmem:[%s38 + $0x58] sm:%s31]
        %83 = vst [vmem:[%s39 + $0x54] sm:%s31] %v82
        %v84 = vld [vmem:[%s38 + $0x4c] sm:%s31]
        %85 = vst [vmem:[%s39 + $0x58] sm:%s31] %v84
        %v86 = vld [vmem:[%s38 + $0x5c] sm:%s31]
        %87 = vst [vmem:[%s39 + $0x5c] sm:%s31] %v86
        %v88 = vld [vmem:[%s38 + $0x60] sm:%s31]
        %89 = vst [vmem:[%s39 + $0x60] sm:%s31] %v88
        %v90 = vld [vmem:[%s38 + $0x70] sm:%s31]
        %91 = vst [vmem:[%s39 + $0x64] sm:%s31] %v90
        %v92 = vld [vmem:[%s38 + $0x64] sm:%s31]
        %93 = vst [vmem:[%s39 + $0x68] sm:%s31] %v92
        %v94 = vld [vmem:[%s38 + $0x74] sm:%s31]
        %95 = vst [vmem:[%s39 + $0x6c] sm:%s31] %v94
        %v96 = vld [vmem:[%s38 + $0x68] sm:%s31]
        %97 = vst [vmem:[%s39 + $0x70] sm:%s31] %v96
        %v98 = vld [vmem:[%s38 + $0x78] sm:%s31]
        %99 = vst [vmem:[%s39 + $0x74] sm:%s31] %v98
        %v100 = vld [vmem:[%s38 + $0x6c] sm:%s31]
        %101 = vst [vmem:[%s39 + $0x78] sm:%s31] %v100
        %v102 = vld [vmem:[%s38 + $0x7c] sm:%s31]
        %103 = vst [vmem:[%s39 + $0x7c] sm:%s31] %v102
        %v104 = vld [vmem:[%s38 + $0x80] sm:%s31]
        %105 = vst [vmem:[%s39 + $0x80] sm:%s31] %v104
        %v106 = vld [vmem:[%s38 + $0x90] sm:%s31]
        %107 = vst [vmem:[%s39 + $0x84] sm:%s31] %v106
        %v108 = vld [vmem:[%s38 + $0x84] sm:%s31]
        %109 = vst [vmem:[%s39 + $0x88] sm:%s31] %v108
        %v110 = vld [vmem:[%s38 + $0x94] sm:%s31]
        %111 = vst [vmem:[%s39 + $0x8c] sm:%s31] %v110
        %v112 = vld [vmem:[%s38 + $0x88] sm:%s31]
        %113 = vst [vmem:[%s39 + $0x90] sm:%s31] %v112
        %v114 = vld [vmem:[%s38 + $0x98] sm:%s31]
        %115 = vst [vmem:[%s39 + $0x94] sm:%s31] %v114
        %v116 = vld [vmem:[%s38 + $0x8c] sm:%s31]
        %117 = vst [vmem:[%s39 + $0x98] sm:%s31] %v116
        %v118 = vld [vmem:[%s38 + $0x9c] sm:%s31]
        %119 = vst [vmem:[%s39 + $0x9c] sm:%s31] %v118
        %v120 = vld [vmem:[%s38 + $0xa0] sm:%s31]
        %121 = vst [vmem:[%s39 + $0xa0] sm:%s31] %v120
        %v122 = vld [vmem:[%s38 + $0xb0] sm:%s31]
        %123 = vst [vmem:[%s39 + $0xa4] sm:%s31] %v122
        %v124 = vld [vmem:[%s38 + $0xa4] sm:%s31]
        %125 = vst [vmem:[%s39 + $0xa8] sm:%s31] %v124
        %v126 = vld [vmem:[%s38 + $0xb4] sm:%s31]
        %127 = vst [vmem:[%s39 + $0xac] sm:%s31] %v126
        %v128 = vld [vmem:[%s38 + $0xa8] sm:%s31]
        %129 = vst [vmem:[%s39 + $0xb0] sm:%s31] %v128
        %v130 = vld [vmem:[%s38 + $0xb8] sm:%s31]
        %131 = vst [vmem:[%s39 + $0xb4] sm:%s31] %v130
        %v132 = vld [vmem:[%s38 + $0xac] sm:%s31]
        %133 = vst [vmem:[%s39 + $0xb8] sm:%s31] %v132
        %v134 = vld [vmem:[%s38 + $0xbc] sm:%s31]
        %135 = vst [vmem:[%s39 + $0xbc] sm:%s31] %v134
        %v136 = vld [vmem:[%s38 + $0xc0] sm:%s31]
        %137 = vst [vmem:[%s39 + $0xc0] sm:%s31] %v136
        %v138 = vld [vmem:[%s38 + $0xd0] sm:%s31]
        %139 = vst [vmem:[%s39 + $0xc4] sm:%s31] %v138
        %v140 = vld [vmem:[%s38 + $0xc4] sm:%s31]
        %141 = vst [vmem:[%s39 + $0xc8] sm:%s31] %v140
        %v142 = vld [vmem:[%s38 + $0xd4] sm:%s31]
        %143 = vst [vmem:[%s39 + $0xcc] sm:%s31] %v142
        %v144 = vld [vmem:[%s38 + $0xc8] sm:%s31]
        %145 = vst [vmem:[%s39 + $0xd0] sm:%s31] %v144
        %v146 = vld [vmem:[%s38 + $0xd8] sm:%s31]
        %147 = vst [vmem:[%s39 + $0xd4] sm:%s31] %v146
        %v148 = vld [vmem:[%s38 + $0xcc] sm:%s31]
        %149 = vst [vmem:[%s39 + $0xd8] sm:%s31] %v148
        %v150 = vld [vmem:[%s38 + $0xdc] sm:%s31]
        %151 = vst [vmem:[%s39 + $0xdc] sm:%s31] %v150
        %v152 = vld [vmem:[%s38 + $0xe0] sm:%s31]
        %153 = vst [vmem:[%s39 + $0xe0] sm:%s31] %v152
        %v154 = vld [vmem:[%s38 + $0xf0] sm:%s31]
        %155 = vst [vmem:[%s39 + $0xe4] sm:%s31] %v154
        %v156 = vld [vmem:[%s38 + $0xe4] sm:%s31]
        %157 = vst [vmem:[%s39 + $0xe8] sm:%s31] %v156
        %v158 = vld [vmem:[%s38 + $0xf4] sm:%s31]
        %159 = vst [vmem:[%s39 + $0xec] sm:%s31] %v158
        %v160 = vld [vmem:[%s38 + $0xe8] sm:%s31]
        %161 = vst [vmem:[%s39 + $0xf0] sm:%s31] %v160
        %v162 = vld [vmem:[%s38 + $0xf8] sm:%s31]
        %163 = vst [vmem:[%s39 + $0xf4] sm:%s31] %v162
        %v164 = vld [vmem:[%s38 + $0xec] sm:%s31]
        %165 = vst [vmem:[%s39 + $0xf8] sm:%s31] %v164
        %v166 = vld [vmem:[%s38 + $0xfc] sm:%s31]
        %167 = vst [vmem:[%s39 + $0xfc] sm:%s31] %v166
      $region30: #{forward.2} parent=24 // loop_footer
        %s37 = sadd.s32 1, %s33
      $region31: #{forward.2} parent=24 // loop_footer_branch
        %32 = sbr.rel target = $region27
      $region32: #{forward.2} parent=24 // loop_exit
        _
    $region25: #{forward.2} parent=16 // pred_fallthru
      _
    // Predicated region
    $region51: #{forward.2} parent=16 // pred_check
      _
    $region52: #{forward.2} parent=16 // pred_check_branch
      %325 = sbr.rel (0) target = $region54
    $region53: #{forward.2} parent=16 // pred_region
      %326 = vsyncadd [#allocation5], 4096
    $region54: #{forward.2} parent=16 // pred_fallthru
      _
    %s327 = smul.u32 4, 16
    %s328 = smul.u32 %s327, 4
    %s329 = sshll.u32 %s328, 4
    %330 = dma.done [#allocation5], %s329
    %v331 = vld [vmem:[%s1] sm:$0xff]
    %332 = vst [vmem:[#allocation3] sm:$0xff] %v331
    %v333 = vld [vmem:[%s2] sm:$0xff]
    %334 = vst [vmem:[#allocation4] sm:$0xff] %v333
  $region17: #{forward.2} parent=0 // pred_fallthru
    _
  %v335 = vld [vmem:[#allocation2] sm:$0xff]
  %v336 = vld [vmem:[#allocation2 + $0x8] sm:$0xff]
  %v337 = vld [vmem:[#allocation2 + $0x10] sm:$0xff]
  %v338 = vld [vmem:[#allocation2 + $0x18] sm:$0xff]
  %v339 = vld [vmem:[#allocation2 + $0x20] sm:$0xff]
  %v340 = vld [vmem:[#allocation2 + $0x28] sm:$0xff]
  %v341 = vld [vmem:[#allocation2 + $0x30] sm:$0xff]
  %v342 = vld [vmem:[#allocation2 + $0x38] sm:$0xff]
  %v343 = vld [vmem:[#allocation2 + $0x40] sm:$0xff]
  %v344 = vld [vmem:[#allocation2 + $0x48] sm:$0xff]
  %v345 = vld [vmem:[#allocation2 + $0x50] sm:$0xff]
  %v346 = vld [vmem:[#allocation2 + $0x58] sm:$0xff]
  %v347 = vld [vmem:[#allocation2 + $0x60] sm:$0xff]
  %v348 = vld [vmem:[#allocation2 + $0x68] sm:$0xff]
  %v349 = vld [vmem:[#allocation2 + $0x70] sm:$0xff]
  %v350 = vld [vmem:[#allocation2 + $0x78] sm:$0xff]
  %v351 = vld [vmem:[#allocation2 + $0x80] sm:$0xff]
  %v352 = vld [vmem:[#allocation2 + $0x88] sm:$0xff]
  %v353 = vld [vmem:[#allocation2 + $0x90] sm:$0xff]
  %v354 = vld [vmem:[#allocation2 + $0x98] sm:$0xff]
  %v355 = vld [vmem:[#allocation2 + $0xa0] sm:$0xff]
  %v356 = vld [vmem:[#allocation2 + $0xa8] sm:$0xff]
  %v357 = vld [vmem:[#allocation2 + $0xb0] sm:$0xff]
  %v358 = vld [vmem:[#allocation2 + $0xb8] sm:$0xff]
  %v359 = vld [vmem:[#allocation2 + $0xc0] sm:$0xff]
  %v360 = vld [vmem:[#allocation2 + $0xc8] sm:$0xff]
  %v361 = vld [vmem:[#allocation2 + $0xd0] sm:$0xff]
  %v362 = vld [vmem:[#allocation2 + $0xd8] sm:$0xff]
  %v363 = vld [vmem:[#allocation2 + $0xe0] sm:$0xff]
  %v364 = vld [vmem:[#allocation2 + $0xe8] sm:$0xff]
  %v365 = vld [vmem:[#allocation2 + $0xf0] sm:$0xff]
  %v366 = vld [vmem:[#allocation2 + $0xf8] sm:$0xff]
  %v367 = vld [vmem:[#allocation3] sm:$0xff]
  %v368 = vld [vmem:[#allocation4] sm:$0xff]
  %v369 = vld [vmem:[%s0] sm:$0xff]
  %v370 = vld [vmem:[%s0 + $0x8] sm:$0xff]
  %v371 = vunpack.c.l.bf16 %v369
  %v372 = vunpack.c.h.bf16 %v369
  %v373 = vunpack.c.l.bf16 %v370
  %v374 = vunpack.c.h.bf16 %v370
  %v375 = vpack.c.bf16 %v367, %v367
  %376 = vmatprep.subr.bf16.mxu0 %v336
  %377 = vmatpush1.bf16.msra.mxu0 %v335
  %378 = vmatprep.subr.bf16.mxu0 %v340
  %379 = vmatpush1.bf16.msra.mxu0 %v339
  %380 = vmatprep.subr.bf16.mxu0 %v344
  %381 = vmatpush1.bf16.msra.mxu0 %v343
  %382 = vmatprep.subr.bf16.mxu0 %v348
  %383 = vmatpush1.bf16.msra.mxu0 %v347
  %384 = vmatprep.subr.bf16.mxu0 %v352
  %385 = vmatpush1.bf16.msra.mxu0 %v351
  %386 = vmatprep.subr.bf16.mxu0 %v356
  %387 = vmatpush1.bf16.msra.mxu0 %v355
  %388 = vmatprep.subr.bf16.mxu0 %v360
  %389 = vmatpush1.bf16.msra.mxu0 %v359
  %390 = vmatprep.subr.bf16.mxu0 %v364
  %391 = vmatpush1.bf16.msra.mxu0 %v363
  %392 = vmatprep.subr.bf16.mxu0 0
  %393 = vmatpush1.bf16.msra.mxu0 0
  %394 = vmatprep.subr.bf16.mxu0 0
  %395 = vmatpush1.bf16.msra.mxu0 0
  %396 = vmatprep.subr.bf16.mxu0 0
  %397 = vmatpush1.bf16.msra.mxu0 0
  %398 = vmatprep.subr.bf16.mxu0 0
  %399 = vmatpush1.bf16.msra.mxu0 0
  %400 = vmatprep.subr.bf16.mxu0 0
  %401 = vmatpush1.bf16.msra.mxu0 0
  %402 = vmatprep.subr.bf16.mxu0 0
  %403 = vmatpush1.bf16.msra.mxu0 0
  %404 = vmatprep.subr.bf16.mxu0 0
  %405 = vmatpush1.bf16.msra.mxu0 0
  %406 = vmatprep.subr.bf16.mxu0 0
  %407 = vmatpush1.bf16.msra.mxu0 0
  %408 = vmatprep.mubr.bf16.mxu0 0
  %409 = vmatmul.mubr.bf16.gmra.mrb[0].mxu0 %v375
  %v410 = vpop.f32.mrb[0].mxu0
  %v411 = vadd.f32 0.0, %v410
  %v412 = vpop.f32.mrb[0].mxu0
  %v413 = vadd.f32 0.0, %v412
  %v414 = vpop.f32.mrb[0].mxu0
  %v415 = vpop.f32.mrb[0].mxu0
  %416 = vdwg.mxu0
  %417 = vmatprep.subr.bf16.mxu0 %v338
  %418 = vmatpush1.bf16.msra.mxu0 %v337
  %419 = vmatprep.subr.bf16.mxu0 %v342
  %420 = vmatpush1.bf16.msra.mxu0 %v341
  %421 = vmatprep.subr.bf16.mxu0 %v346
  %422 = vmatpush1.bf16.msra.mxu0 %v345
  %423 = vmatprep.subr.bf16.mxu0 %v350
  %424 = vmatpush1.bf16.msra.mxu0 %v349
  %425 = vmatprep.subr.bf16.mxu0 %v354
  %426 = vmatpush1.bf16.msra.mxu0 %v353
  %427 = vmatprep.subr.bf16.mxu0 %v358
  %428 = vmatpush1.bf16.msra.mxu0 %v357
  %429 = vmatprep.subr.bf16.mxu0 %v362
  %430 = vmatpush1.bf16.msra.mxu0 %v361
  %431 = vmatprep.subr.bf16.mxu0 %v366
  %432 = vmatpush1.bf16.msra.mxu0 %v365
  %433 = vmatprep.subr.bf16.mxu0 0
  %434 = vmatpush1.bf16.msra.mxu0 0
  %435 = vmatprep.subr.bf16.mxu0 0
  %436 = vmatpush1.bf16.msra.mxu0 0
  %437 = vmatprep.subr.bf16.mxu0 0
  %438 = vmatpush1.bf16.msra.mxu0 0
  %439 = vmatprep.subr.bf16.mxu0 0
  %440 = vmatpush1.bf16.msra.mxu0 0
  %441 = vmatprep.subr.bf16.mxu0 0
  %442 = vmatpush1.bf16.msra.mxu0 0
  %443 = vmatprep.subr.bf16.mxu0 0
  %444 = vmatpush1.bf16.msra.mxu0 0
  %445 = vmatprep.subr.bf16.mxu0 0
  %446 = vmatpush1.bf16.msra.mxu0 0
  %447 = vmatprep.subr.bf16.mxu0 0
  %448 = vmatpush1.bf16.msra.mxu0 0
  %449 = vmatprep.mubr.bf16.mxu0 0
  %450 = vmatmul.mubr.bf16.gmra.mrb[0].mxu0 %v375
  %v451 = vpop.f32.mrb[0].mxu0
  %v452 = vadd.f32 0.0, %v451
  %v453 = vpop.f32.mrb[0].mxu0
  %v454 = vadd.f32 0.0, %v453
  %v455 = vpop.f32.mrb[0].mxu0
  %v456 = vpop.f32.mrb[0].mxu0
  %457 = vdwg.mxu0
  %v458 = vadd.f32 %v371, %v411
  %v459 = vadd.f32 %v372, %v413
  %v460 = vadd.f32 %v373, %v452
  %v461 = vadd.f32 %v374, %v454
  %v462 = vxor.u32 %v458, 2147483648
  %v463 = vmul.f32 %v462, 1.442695
  %v464 = vpow.pop %v463
  %v465 = vadd.f32 %v464, 1.0
  %v466 = vrcp.pop %v465
  %v467 = vmul.f32 1.0, %v466
  %v468 = vxor.u32 %v459, 2147483648
  %v469 = vmul.f32 %v468, 1.442695
  %v470 = vpow.pop %v469
  %v471 = vadd.f32 %v470, 1.0
  %v472 = vrcp.pop %v471
  %v473 = vmul.f32 1.0, %v472
  %v474 = vtanh.pop %v460
  %v475 = vxor.u32 %v461, 2147483648
  %v476 = vmul.f32 %v475, 1.442695
  %v477 = vpow.pop %v476
  %v478 = vadd.f32 %v477, 1.0
  %v479 = vrcp.pop %v478
  %v480 = vmul.f32 1.0, %v479
  %v481 = vmul.f32 %v473, %v368
  %v482 = vmul.f32 %v467, %v474
  %v483 = vadd.f32 %v481, %v482
  %v484 = vtanh.pop %v483
  %v485 = vmul.f32 %v480, %v484
  %v486 = vpack.c.bf16 %v485, %v485
  %487 = vst [vmem:[%s4] sm:$0xf] %v486
  %s488 = smul.u32 0, 8
  %p489 = scmp.eq.s32.totalorder %s488, 7
  // Predicated region
  $region55: #{forward.2} parent=0 // pred_check
    %p490 = pneg %p489
  $region56: #{forward.2} parent=0 // pred_check_branch
    %492 = sbr.rel (%p490) target = $region58
  $region57: #{forward.2} parent=0 // pred_region
    %493 = vst [vmem:[%s5] sm:$0xff] %v485
    %494 = vst [vmem:[%s6] sm:$0xff] %v483
  $region58: #{forward.2} parent=0 // pred_fallthru
    _
  %s495 = scalar_lea.vmem %s0, 16
  %v496 = vld [vmem:[%s495] sm:$0xff]
  %v497 = vld [vmem:[%s495 + $0x8] sm:$0xff]
  %v498 = vunpack.c.l.bf16 %v496
  %v499 = vunpack.c.h.bf16 %v496
  %v500 = vunpack.c.l.bf16 %v497
  %v501 = vunpack.c.h.bf16 %v497
  %502 = vmatprep.subr.bf16.mxu0 %v336
  %503 = vmatpush1.bf16.msra.mxu0 %v335
  %504 = vmatprep.subr.bf16.mxu0 %v340
  %505 = vmatpush1.bf16.msra.mxu0 %v339
  %506 = vmatprep.subr.bf16.mxu0 %v344
  %507 = vmatpush1.bf16.msra.mxu0 %v343
  %508 = vmatprep.subr.bf16.mxu0 %v348
  %509 = vmatpush1.bf16.msra.mxu0 %v347
  %510 = vmatprep.subr.bf16.mxu0 %v352
  %511 = vmatpush1.bf16.msra.mxu0 %v351
  %512 = vmatprep.subr.bf16.mxu0 %v356
  %513 = vmatpush1.bf16.msra.mxu0 %v355
  %514 = vmatprep.subr.bf16.mxu0 %v360
  %515 = vmatpush1.bf16.msra.mxu0 %v359
  %516 = vmatprep.subr.bf16.mxu0 %v364
  %517 = vmatpush1.bf16.msra.mxu0 %v363
  %518 = vmatprep.subr.bf16.mxu0 0
  %519 = vmatpush1.bf16.msra.mxu0 0
  %520 = vmatprep.subr.bf16.mxu0 0
  %521 = vmatpush1.bf16.msra.mxu0 0
  %522 = vmatprep.subr.bf16.mxu0 0
  %523 = vmatpush1.bf16.msra.mxu0 0
  %524 = vmatprep.subr.bf16.mxu0 0
  %525 = vmatpush1.bf16.msra.mxu0 0
  %526 = vmatprep.subr.bf16.mxu0 0
  %527 = vmatpush1.bf16.msra.mxu0 0
  %528 = vmatprep.subr.bf16.mxu0 0
  %529 = vmatpush1.bf16.msra.mxu0 0
  %530 = vmatprep.subr.bf16.mxu0 0
  %531 = vmatpush1.bf16.msra.mxu0 0
  %532 = vmatprep.subr.bf16.mxu0 0
  %533 = vmatpush1.bf16.msra.mxu0 0
  %534 = vmatprep.mubr.bf16.mxu0 0
  %535 = vmatmul.mubr.bf16.gmra.mrb[0].mxu0 %v486
  %v536 = vpop.f32.mrb[0].mxu0
  %v537 = vadd.f32 0.0, %v536
  %v538 = vpop.f32.mrb[0].mxu0
  %v539 = vadd.f32 0.0, %v538
  %v540 = vpop.f32.mrb[0].mxu0
  %v541 = vpop.f32.mrb[0].mxu0
  %542 = vdwg.mxu0
  %543 = vmatprep.subr.bf16.mxu0 %v338
  %544 = vmatpush1.bf16.msra.mxu0 %v337
  %545 = vmatprep.subr.bf16.mxu0 %v342
  %546 = vmatpush1.bf16.msra.mxu0 %v341
  %547 = vmatprep.subr.bf16.mxu0 %v346
  %548 = vmatpush1.bf16.msra.mxu0 %v345
  %549 = vmatprep.subr.bf16.mxu0 %v350
  %550 = vmatpush1.bf16.msra.mxu0 %v349
  %551 = vmatprep.subr.bf16.mxu0 %v354
  %552 = vmatpush1.bf16.msra.mxu0 %v353
  %553 = vmatprep.subr.bf16.mxu0 %v358
  %554 = vmatpush1.bf16.msra.mxu0 %v357
  %555 = vmatprep.subr.bf16.mxu0 %v362
  %556 = vmatpush1.bf16.msra.mxu0 %v361
  %557 = vmatprep.subr.bf16.mxu0 %v366
  %558 = vmatpush1.bf16.msra.mxu0 %v365
  %559 = vmatprep.subr.bf16.mxu0 0
  %560 = vmatpush1.bf16.msra.mxu0 0
  %561 = vmatprep.subr.bf16.mxu0 0
  %562 = vmatpush1.bf16.msra.mxu0 0
  %563 = vmatprep.subr.bf16.mxu0 0
  %564 = vmatpush1.bf16.msra.mxu0 0
  %565 = vmatprep.subr.bf16.mxu0 0
  %566 = vmatpush1.bf16.msra.mxu0 0
  %567 = vmatprep.subr.bf16.mxu0 0
  %568 = vmatpush1.bf16.msra.mxu0 0
  %569 = vmatprep.subr.bf16.mxu0 0
  %570 = vmatpush1.bf16.msra.mxu0 0
  %571 = vmatprep.subr.bf16.mxu0 0
  %572 = vmatpush1.bf16.msra.mxu0 0
  %573 = vmatprep.subr.bf16.mxu0 0
  %574 = vmatpush1.bf16.msra.mxu0 0
  %575 = vmatprep.mubr.bf16.mxu0 0
  %576 = vmatmul.mubr.bf16.gmra.mrb[0].mxu0 %v486
  %v577 = vpop.f32.mrb[0].mxu0
  %v578 = vadd.f32 0.0, %v577
  %v579 = vpop.f32.mrb[0].mxu0
  %v580 = vadd.f32 0.0, %v579
  %v581 = vpop.f32.mrb[0].mxu0
  %v582 = vpop.f32.mrb[0].mxu0
  %583 = vdwg.mxu0
  %v584 = vadd.f32 %v498, %v537
  %v585 = vadd.f32 %v499, %v539
  %v586 = vadd.f32 %v500, %v578
  %v587 = vadd.f32 %v501, %v580
  %v588 = vxor.u32 %v584, 2147483648
  %v589 = vmul.f32 %v588, 1.442695
  %v590 = vpow.pop %v589
  %v591 = vadd.f32 %v590, 1.0
  %v592 = vrcp.pop %v591
  %v593 = vmul.f32 1.0, %v592
  %v594 = vxor.u32 %v585, 2147483648
  %v595 = vmul.f32 %v594, 1.442695
  %v596 = vpow.pop %v595
  %v597 = vadd.f32 %v596, 1.0
  %v598 = vrcp.pop %v597
  %v599 = vmul.f32 1.0, %v598
  %v600 = vtanh.pop %v586
  %v601 = vxor.u32 %v587, 2147483648
  %v602 = vmul.f32 %v601, 1.442695
  %v603 = vpow.pop %v602
  %v604 = vadd.f32 %v603, 1.0
  %v605 = vrcp.pop %v604
  %v606 = vmul.f32 1.0, %v605
  %v607 = vmul.f32 %v599, %v483
  %v608 = vmul.f32 %v593, %v600
  %v609 = vadd.f32 %v607, %v608
  %v610 = vtanh.pop %v609
  %v611 = vmul.f32 %v606, %v610
  %v612 = vpack.c.bf16 %v611, %v611
  %s613 = scalar_lea.vmem %s4, 4
  %614 = vst [vmem:[%s613] sm:$0xf] %v612
  %s615 = sadd.s32 %s488, 1
  %p616 = scmp.eq.s32.totalorder %s615, 7
  // Predicated region
  $region59: #{forward.2} parent=0 // pred_check
    %p617 = pneg %p616
  $region60: #{forward.2} parent=0 // pred_check_branch
    %619 = sbr.rel (%p617) target = $region62
  $region61: #{forward.2} parent=0 // pred_region
    %620 = vst [vmem:[%s5] sm:$0xff] %v611
    %621 = vst [vmem:[%s6] sm:$0xff] %v609
  $region62: #{forward.2} parent=0 // pred_fallthru
    _
  %s622 = scalar_lea.vmem %s0, 32
  %v623 = vld [vmem:[%s622] sm:$0xff]
  %v624 = vld [vmem:[%s622 + $0x8] sm:$0xff]
  %v625 = vunpack.c.l.bf16 %v623
  %v626 = vunpack.c.h.bf16 %v623
  %v627 = vunpack.c.l.bf16 %v624
  %v628 = vunpack.c.h.bf16 %v624
  %629 = vmatprep.subr.bf16.mxu0 %v336
  %630 = vmatpush1.bf16.msra.mxu0 %v335
  %631 = vmatprep.subr.bf16.mxu0 %v340
  %632 = vmatpush1.bf16.msra.mxu0 %v339
  %633 = vmatprep.subr.bf16.mxu0 %v344
  %634 = vmatpush1.bf16.msra.mxu0 %v343
  %635 = vmatprep.subr.bf16.mxu0 %v348
  %636 = vmatpush1.bf16.msra.mxu0 %v347
  %637 = vmatprep.subr.bf16.mxu0 %v352
  %638 = vmatpush1.bf16.msra.mxu0 %v351
  %639 = vmatprep.subr.bf16.mxu0 %v356
  %640 = vmatpush1.bf16.msra.mxu0 %v355
  %641 = vmatprep.subr.bf16.mxu0 %v360
  %642 = vmatpush1.bf16.msra.mxu0 %v359
  %643 = vmatprep.subr.bf16.mxu0 %v364
  %644 = vmatpush1.bf16.msra.mxu0 %v363
  %645 = vmatprep.subr.bf16.mxu0 0
  %646 = vmatpush1.bf16.msra.mxu0 0
  %647 = vmatprep.subr.bf16.mxu0 0
  %648 = vmatpush1.bf16.msra.mxu0 0
  %649 = vmatprep.subr.bf16.mxu0 0
  %650 = vmatpush1.bf16.msra.mxu0 0
  %651 = vmatprep.subr.bf16.mxu0 0
  %652 = vmatpush1.bf16.msra.mxu0 0
  %653 = vmatprep.subr.bf16.mxu0 0
  %654 = vmatpush1.bf16.msra.mxu0 0
  %655 = vmatprep.subr.bf16.mxu0 0
  %656 = vmatpush1.bf16.msra.mxu0 0
  %657 = vmatprep.subr.bf16.mxu0 0
  %658 = vmatpush1.bf16.msra.mxu0 0
  %659 = vmatprep.subr.bf16.mxu0 0
  %660 = vmatpush1.bf16.msra.mxu0 0
  %661 = vmatprep.mubr.bf16.mxu0 0
  %662 = vmatmul.mubr.bf16.gmra.mrb[0].mxu0 %v612
  %v663 = vpop.f32.mrb[0].mxu0
  %v664 = vadd.f32 0.0, %v663
  %v665 = vpop.f32.mrb[0].mxu0
  %v666 = vadd.f32 0.0, %v665
  %v667 = vpop.f32.mrb[0].mxu0
  %v668 = vpop.f32.mrb[0].mxu0
  %669 = vdwg.mxu0
  %670 = vmatprep.subr.bf16.mxu0 %v338
  %671 = vmatpush1.bf16.msra.mxu0 %v337
  %672 = vmatprep.subr.bf16.mxu0 %v342
  %673 = vmatpush1.bf16.msra.mxu0 %v341
  %674 = vmatprep.subr.bf16.mxu0 %v346
  %675 = vmatpush1.bf16.msra.mxu0 %v345
  %676 = vmatprep.subr.bf16.mxu0 %v350
  %677 = vmatpush1.bf16.msra.mxu0 %v349
  %678 = vmatprep.subr.bf16.mxu0 %v354
  %679 = vmatpush1.bf16.msra.mxu0 %v353
  %680 = vmatprep.subr.bf16.mxu0 %v358
  %681 = vmatpush1.bf16.msra.mxu0 %v357
  %682 = vmatprep.subr.bf16.mxu0 %v362
  %683 = vmatpush1.bf16.msra.mxu0 %v361
  %684 = vmatprep.subr.bf16.mxu0 %v366
  %685 = vmatpush1.bf16.msra.mxu0 %v365
  %686 = vmatprep.subr.bf16.mxu0 0
  %687 = vmatpush1.bf16.msra.mxu0 0
  %688 = vmatprep.subr.bf16.mxu0 0
  %689 = vmatpush1.bf16.msra.mxu0 0
  %690 = vmatprep.subr.bf16.mxu0 0
  %691 = vmatpush1.bf16.msra.mxu0 0
  %692 = vmatprep.subr.bf16.mxu0 0
  %693 = vmatpush1.bf16.msra.mxu0 0
  %694 = vmatprep.subr.bf16.mxu0 0
  %695 = vmatpush1.bf16.msra.mxu0 0
  %696 = vmatprep.subr.bf16.mxu0 0
  %697 = vmatpush1.bf16.msra.mxu0 0
  %698 = vmatprep.subr.bf16.mxu0 0
  %699 = vmatpush1.bf16.msra.mxu0 0
  %700 = vmatprep.subr.bf16.mxu0 0
  %701 = vmatpush1.bf16.msra.mxu0 0
  %702 = vmatprep.mubr.bf16.mxu0 0
  %703 = vmatmul.mubr.bf16.gmra.mrb[0].mxu0 %v612
  %v704 = vpop.f32.mrb[0].mxu0
  %v705 = vadd.f32 0.0, %v704
  %v706 = vpop.f32.mrb[0].mxu0
  %v707 = vadd.f32 0.0, %v706
  %v708 = vpop.f32.mrb[0].mxu0
  %v709 = vpop.f32.mrb[0].mxu0
  %710 = vdwg.mxu0
  %v711 = vadd.f32 %v625, %v664
  %v712 = vadd.f32 %v626, %v666
  %v713 = vadd.f32 %v627, %v705
  %v714 = vadd.f32 %v628, %v707
  %v715 = vxor.u32 %v711, 2147483648
  %v716 = vmul.f32 %v715, 1.442695
  %v717 = vpow.pop %v716
  %v718 = vadd.f32 %v717, 1.0
  %v719 = vrcp.pop %v718
  %v720 = vmul.f32 1.0, %v719
  %v721 = vxor.u32 %v712, 2147483648
  %v722 = vmul.f32 %v721, 1.442695
  %v723 = vpow.pop %v722
  %v724 = vadd.f32 %v723, 1.0
  %v725 = vrcp.pop %v724
  %v726 = vmul.f32 1.0, %v725
  %v727 = vtanh.pop %v713
  %v728 = vxor.u32 %v714, 2147483648
  %v729 = vmul.f32 %v728, 1.442695
  %v730 = vpow.pop %v729
  %v731 = vadd.f32 %v730, 1.0
  %v732 = vrcp.pop %v731
  %v733 = vmul.f32 1.0, %v732
  %v734 = vmul.f32 %v726, %v609
  %v735 = vmul.f32 %v720, %v727
  %v736 = vadd.f32 %v734, %v735
  %v737 = vtanh.pop %v736
  %v738 = vmul.f32 %v733, %v737
  %v739 = vpack.c.bf16 %v738, %v738
  %s740 = scalar_lea.vmem %s4, 8
  %741 = vst [vmem:[%s740] sm:$0xf] %v739
  %s742 = sadd.s32 %s488, 2
  %p743 = scmp.eq.s32.totalorder %s742, 7
  // Predicated region
  $region63: #{forward.2} parent=0 // pred_check
    %p744 = pneg %p743
  $region64: #{forward.2} parent=0 // pred_check_branch
    %746 = sbr.rel (%p744) target = $region66
  $region65: #{forward.2} parent=0 // pred_region
    %747 = vst [vmem:[%s5] sm:$0xff] %v738
    %748 = vst [vmem:[%s6] sm:$0xff] %v736
  $region66: #{forward.2} parent=0 // pred_fallthru
    _
  %s749 = scalar_lea.vmem %s0, 48
  %v750 = vld [vmem:[%s749] sm:$0xff]
  %v751 = vld [vmem:[%s749 + $0x8] sm:$0xff]
  %v752 = vunpack.c.l.bf16 %v750
  %v753 = vunpack.c.h.bf16 %v750
  %v754 = vunpack.c.l.bf16 %v751
  %v755 = vunpack.c.h.bf16 %v751
  %756 = vmatprep.subr.bf16.mxu0 %v336
  %757 = vmatpush1.bf16.msra.mxu0 %v335
  %758 = vmatprep.subr.bf16.mxu0 %v340
  %759 = vmatpush1.bf16.msra.mxu0 %v339
  %760 = vmatprep.subr.bf16.mxu0 %v344
  %761 = vmatpush1.bf16.msra.mxu0 %v343
  %762 = vmatprep.subr.bf16.mxu0 %v348
  %763 = vmatpush1.bf16.msra.mxu0 %v347
  %764 = vmatprep.subr.bf16.mxu0 %v352
  %765 = vmatpush1.bf16.msra.mxu0 %v351
  %766 = vmatprep.subr.bf16.mxu0 %v356
  %767 = vmatpush1.bf16.msra.mxu0 %v355
  %768 = vmatprep.subr.bf16.mxu0 %v360
  %769 = vmatpush1.bf16.msra.mxu0 %v359
  %770 = vmatprep.subr.bf16.mxu0 %v364
  %771 = vmatpush1.bf16.msra.mxu0 %v363
  %772 = vmatprep.subr.bf16.mxu0 0
  %773 = vmatpush1.bf16.msra.mxu0 0
  %774 = vmatprep.subr.bf16.mxu0 0
  %775 = vmatpush1.bf16.msra.mxu0 0
  %776 = vmatprep.subr.bf16.mxu0 0
  %777 = vmatpush1.bf16.msra.mxu0 0
  %778 = vmatprep.subr.bf16.mxu0 0
  %779 = vmatpush1.bf16.msra.mxu0 0
  %780 = vmatprep.subr.bf16.mxu0 0
  %781 = vmatpush1.bf16.msra.mxu0 0
  %782 = vmatprep.subr.bf16.mxu0 0
  %783 = vmatpush1.bf16.msra.mxu0 0
  %784 = vmatprep.subr.bf16.mxu0 0
  %785 = vmatpush1.bf16.msra.mxu0 0
  %786 = vmatprep.subr.bf16.mxu0 0
  %787 = vmatpush1.bf16.msra.mxu0 0
  %788 = vmatprep.mubr.bf16.mxu0 0
  %789 = vmatmul.mubr.bf16.gmra.mrb[0].mxu0 %v739
  %v790 = vpop.f32.mrb[0].mxu0
  %v791 = vadd.f32 0.0, %v790
  %v792 = vpop.f32.mrb[0].mxu0
  %v793 = vadd.f32 0.0, %v792
  %v794 = vpop.f32.mrb[0].mxu0
  %v795 = vpop.f32.mrb[0].mxu0
  %796 = vdwg.mxu0
  %797 = vmatprep.subr.bf16.mxu0 %v338
  %798 = vmatpush1.bf16.msra.mxu0 %v337
  %799 = vmatprep.subr.bf16.mxu0 %v342
  %800 = vmatpush1.bf16.msra.mxu0 %v341
  %801 = vmatprep.subr.bf16.mxu0 %v346
  %802 = vmatpush1.bf16.msra.mxu0 %v345
  %803 = vmatprep.subr.bf16.mxu0 %v350
  %804 = vmatpush1.bf16.msra.mxu0 %v349
  %805 = vmatprep.subr.bf16.mxu0 %v354
  %806 = vmatpush1.bf16.msra.mxu0 %v353
  %807 = vmatprep.subr.bf16.mxu0 %v358
  %808 = vmatpush1.bf16.msra.mxu0 %v357
  %809 = vmatprep.subr.bf16.mxu0 %v362
  %810 = vmatpush1.bf16.msra.mxu0 %v361
  %811 = vmatprep.subr.bf16.mxu0 %v366
  %812 = vmatpush1.bf16.msra.mxu0 %v365
  %813 = vmatprep.subr.bf16.mxu0 0
  %814 = vmatpush1.bf16.msra.mxu0 0
  %815 = vmatprep.subr.bf16.mxu0 0
  %816 = vmatpush1.bf16.msra.mxu0 0
  %817 = vmatprep.subr.bf16.mxu0 0
  %818 = vmatpush1.bf16.msra.mxu0 0
  %819 = vmatprep.subr.bf16.mxu0 0
  %820 = vmatpush1.bf16.msra.mxu0 0
  %821 = vmatprep.subr.bf16.mxu0 0
  %822 = vmatpush1.bf16.msra.mxu0 0
  %823 = vmatprep.subr.bf16.mxu0 0
  %824 = vmatpush1.bf16.msra.mxu0 0
  %825 = vmatprep.subr.bf16.mxu0 0
  %826 = vmatpush1.bf16.msra.mxu0 0
  %827 = vmatprep.subr.bf16.mxu0 0
  %828 = vmatpush1.bf16.msra.mxu0 0
  %829 = vmatprep.mubr.bf16.mxu0 0
  %830 = vmatmul.mubr.bf16.gmra.mrb[0].mxu0 %v739
  %v831 = vpop.f32.mrb[0].mxu0
  %v832 = vadd.f32 0.0, %v831
  %v833 = vpop.f32.mrb[0].mxu0
  %v834 = vadd.f32 0.0, %v833
  %v835 = vpop.f32.mrb[0].mxu0
  %v836 = vpop.f32.mrb[0].mxu0
  %837 = vdwg.mxu0
  %v838 = vadd.f32 %v752, %v791
  %v839 = vadd.f32 %v753, %v793
  %v840 = vadd.f32 %v754, %v832
  %v841 = vadd.f32 %v755, %v834
  %v842 = vxor.u32 %v838, 2147483648
  %v843 = vmul.f32 %v842, 1.442695
  %v844 = vpow.pop %v843
  %v845 = vadd.f32 %v844, 1.0
  %v846 = vrcp.pop %v845
  %v847 = vmul.f32 1.0, %v846
  %v848 = vxor.u32 %v839, 2147483648
  %v849 = vmul.f32 %v848, 1.442695
  %v850 = vpow.pop %v849
  %v851 = vadd.f32 %v850, 1.0
  %v852 = vrcp.pop %v851
  %v853 = vmul.f32 1.0, %v852
  %v854 = vtanh.pop %v840
  %v855 = vxor.u32 %v841, 2147483648
  %v856 = vmul.f32 %v855, 1.442695
  %v857 = vpow.pop %v856
  %v858 = vadd.f32 %v857, 1.0
  %v859 = vrcp.pop %v858
  %v860 = vmul.f32 1.0, %v859
  %v861 = vmul.f32 %v853, %v736
  %v862 = vmul.f32 %v847, %v854
  %v863 = vadd.f32 %v861, %v862
  %v864 = vtanh.pop %v863
  %v865 = vmul.f32 %v860, %v864
  %v866 = vpack.c.bf16 %v865, %v865
  %s867 = scalar_lea.vmem %s4, 12
  %868 = vst [vmem:[%s867] sm:$0xf] %v866
  %s869 = sadd.s32 %s488, 3
  %p870 = scmp.eq.s32.totalorder %s869, 7
  // Predicated region
  $region67: #{forward.2} parent=0 // pred_check
    %p871 = pneg %p870
  $region68: #{forward.2} parent=0 // pred_check_branch
    %873 = sbr.rel (%p871) target = $region70
  $region69: #{forward.2} parent=0 // pred_region
    %874 = vst [vmem:[%s5] sm:$0xff] %v865
    %875 = vst [vmem:[%s6] sm:$0xff] %v863
  $region70: #{forward.2} parent=0 // pred_fallthru
    _
  %s876 = scalar_lea.vmem %s0, 64
  %v877 = vld [vmem:[%s876] sm:$0xff]
  %v878 = vld [vmem:[%s876 + $0x8] sm:$0xff]
  %v879 = vunpack.c.l.bf16 %v877
  %v880 = vunpack.c.h.bf16 %v877
  %v881 = vunpack.c.l.bf16 %v878
  %v882 = vunpack.c.h.bf16 %v878
  %883 = vmatprep.subr.bf16.mxu0 %v336
  %884 = vmatpush1.bf16.msra.mxu0 %v335
  %885 = vmatprep.subr.bf16.mxu0 %v340
  %886 = vmatpush1.bf16.msra.mxu0 %v339
  %887 = vmatprep.subr.bf16.mxu0 %v344
  %888 = vmatpush1.bf16.msra.mxu0 %v343
  %889 = vmatprep.subr.bf16.mxu0 %v348
  %890 = vmatpush1.bf16.msra.mxu0 %v347
  %891 = vmatprep.subr.bf16.mxu0 %v352
  %892 = vmatpush1.bf16.msra.mxu0 %v351
  %893 = vmatprep.subr.bf16.mxu0 %v356
  %894 = vmatpush1.bf16.msra.mxu0 %v355
  %895 = vmatprep.subr.bf16.mxu0 %v360
  %896 = vmatpush1.bf16.msra.mxu0 %v359
  %897 = vmatprep.subr.bf16.mxu0 %v364
  %898 = vmatpush1.bf16.msra.mxu0 %v363
  %899 = vmatprep.subr.bf16.mxu0 0
  %900 = vmatpush1.bf16.msra.mxu0 0
  %901 = vmatprep.subr.bf16.mxu0 0
  %902 = vmatpush1.bf16.msra.mxu0 0
  %903 = vmatprep.subr.bf16.mxu0 0
  %904 = vmatpush1.bf16.msra.mxu0 0
  %905 = vmatprep.subr.bf16.mxu0 0
  %906 = vmatpush1.bf16.msra.mxu0 0
  %907 = vmatprep.subr.bf16.mxu0 0
  %908 = vmatpush1.bf16.msra.mxu0 0
  %909 = vmatprep.subr.bf16.mxu0 0
  %910 = vmatpush1.bf16.msra.mxu0 0
  %911 = vmatprep.subr.bf16.mxu0 0
  %912 = vmatpush1.bf16.msra.mxu0 0
  %913 = vmatprep.subr.bf16.mxu0 0
  %914 = vmatpush1.bf16.msra.mxu0 0
  %915 = vmatprep.mubr.bf16.mxu0 0
  %916 = vmatmul.mubr.bf16.gmra.mrb[0].mxu0 %v866
  %v917 = vpop.f32.mrb[0].mxu0
  %v918 = vadd.f32 0.0, %v917
  %v919 = vpop.f32.mrb[0].mxu0
  %v920 = vadd.f32 0.0, %v919
  %v921 = vpop.f32.mrb[0].mxu0
  %v922 = vpop.f32.mrb[0].mxu0
  %923 = vdwg.mxu0
  %924 = vmatprep.subr.bf16.mxu0 %v338
  %925 = vmatpush1.bf16.msra.mxu0 %v337
  %926 = vmatprep.subr.bf16.mxu0 %v342
  %927 = vmatpush1.bf16.msra.mxu0 %v341
  %928 = vmatprep.subr.bf16.mxu0 %v346
  %929 = vmatpush1.bf16.msra.mxu0 %v345
  %930 = vmatprep.subr.bf16.mxu0 %v350
  %931 = vmatpush1.bf16.msra.mxu0 %v349
  %932 = vmatprep.subr.bf16.mxu0 %v354
  %933 = vmatpush1.bf16.msra.mxu0 %v353
  %934 = vmatprep.subr.bf16.mxu0 %v358
  %935 = vmatpush1.bf16.msra.mxu0 %v357
  %936 = vmatprep.subr.bf16.mxu0 %v362
  %937 = vmatpush1.bf16.msra.mxu0 %v361
  %938 = vmatprep.subr.bf16.mxu0 %v366
  %939 = vmatpush1.bf16.msra.mxu0 %v365
  %940 = vmatprep.subr.bf16.mxu0 0
  %941 = vmatpush1.bf16.msra.mxu0 0
  %942 = vmatprep.subr.bf16.mxu0 0
  %943 = vmatpush1.bf16.msra.mxu0 0
  %944 = vmatprep.subr.bf16.mxu0 0
  %945 = vmatpush1.bf16.msra.mxu0 0
  %946 = vmatprep.subr.bf16.mxu0 0
  %947 = vmatpush1.bf16.msra.mxu0 0
  %948 = vmatprep.subr.bf16.mxu0 0
  %949 = vmatpush1.bf16.msra.mxu0 0
  %950 = vmatprep.subr.bf16.mxu0 0
  %951 = vmatpush1.bf16.msra.mxu0 0
  %952 = vmatprep.subr.bf16.mxu0 0
  %953 = vmatpush1.bf16.msra.mxu0 0
  %954 = vmatprep.subr.bf16.mxu0 0
  %955 = vmatpush1.bf16.msra.mxu0 0
  %956 = vmatprep.mubr.bf16.mxu0 0
  %957 = vmatmul.mubr.bf16.gmra.mrb[0].mxu0 %v866
  %v958 = vpop.f32.mrb[0].mxu0
  %v959 = vadd.f32 0.0, %v958
  %v960 = vpop.f32.mrb[0].mxu0
  %v961 = vadd.f32 0.0, %v960
  %v962 = vpop.f32.mrb[0].mxu0
  %v963 = vpop.f32.mrb[0].mxu0
  %964 = vdwg.mxu0
  %v965 = vadd.f32 %v879, %v918
  %v966 = vadd.f32 %v880, %v920
  %v967 = vadd.f32 %v881, %v959
  %v968 = vadd.f32 %v882, %v961
  %v969 = vxor.u32 %v965, 2147483648
  %v970 = vmul.f32 %v969, 1.442695
  %v971 = vpow.pop %v970
  %v972 = vadd.f32 %v971, 1.0
  %v973 = vrcp.pop %v972
  %v974 = vmul.f32 1.0, %v973
  %v975 = vxor.u32 %v966, 2147483648
  %v976 = vmul.f32 %v975, 1.442695
  %v977 = vpow.pop %v976
  %v978 = vadd.f32 %v977, 1.0
  %v979 = vrcp.pop %v978
  %v980 = vmul.f32 1.0, %v979
  %v981 = vtanh.pop %v967
  %v982 = vxor.u32 %v968, 2147483648
  %v983 = vmul.f32 %v982, 1.442695
  %v984 = vpow.pop %v983
  %v985 = vadd.f32 %v984, 1.0
  %v986 = vrcp.pop %v985
  %v987 = vmul.f32 1.0, %v986
  %v988 = vmul.f32 %v980, %v863
  %v989 = vmul.f32 %v974, %v981
  %v990 = vadd.f32 %v988, %v989
  %v991 = vtanh.pop %v990
  %v992 = vmul.f32 %v987, %v991
  %v993 = vpack.c.bf16 %v992, %v992
  %s994 = scalar_lea.vmem %s4, 16
  %995 = vst [vmem:[%s994] sm:$0xf] %v993
  %s996 = sadd.s32 %s488, 4
  %p997 = scmp.eq.s32.totalorder %s996, 7
  // Predicated region
  $region71: #{forward.2} parent=0 // pred_check
    %p998 = pneg %p997
  $region72: #{forward.2} parent=0 // pred_check_branch
    %1000 = sbr.rel (%p998) target = $region74
  $region73: #{forward.2} parent=0 // pred_region
    %1001 = vst [vmem:[%s5] sm:$0xff] %v992
    %1002 = vst [vmem:[%s6] sm:$0xff] %v990
  $region74: #{forward.2} parent=0 // pred_fallthru
    _
  %s1003 = scalar_lea.vmem %s0, 80
  %v1004 = vld [vmem:[%s1003] sm:$0xff]
  %v1005 = vld [vmem:[%s1003 + $0x8] sm:$0xff]
  %v1006 = vunpack.c.l.bf16 %v1004
  %v1007 = vunpack.c.h.bf16 %v1004
  %v1008 = vunpack.c.l.bf16 %v1005
  %v1009 = vunpack.c.h.bf16 %v1005
  %1010 = vmatprep.subr.bf16.mxu0 %v336
  %1011 = vmatpush1.bf16.msra.mxu0 %v335
  %1012 = vmatprep.subr.bf16.mxu0 %v340
  %1013 = vmatpush1.bf16.msra.mxu0 %v339
  %1014 = vmatprep.subr.bf16.mxu0 %v344
  %1015 = vmatpush1.bf16.msra.mxu0 %v343
  %1016 = vmatprep.subr.bf16.mxu0 %v348
  %1017 = vmatpush1.bf16.msra.mxu0 %v347
  %1018 = vmatprep.subr.bf16.mxu0 %v352
  %1019 = vmatpush1.bf16.msra.mxu0 %v351
  %1020 = vmatprep.subr.bf16.mxu0 %v356
  %1021 = vmatpush1.bf16.msra.mxu0 %v355
  %1022 = vmatprep.subr.bf16.mxu0 %v360
  %1023 = vmatpush1.bf16.msra.mxu0 %v359
  %1024 = vmatprep.subr.bf16.mxu0 %v364
  %1025 = vmatpush1.bf16.msra.mxu0 %v363
  %1026 = vmatprep.subr.bf16.mxu0 0
  %1027 = vmatpush1.bf16.msra.mxu0 0
  %1028 = vmatprep.subr.bf16.mxu0 0
  %1029 = vmatpush1.bf16.msra.mxu0 0
  %1030 = vmatprep.subr.bf16.mxu0 0
  %1031 = vmatpush1.bf16.msra.mxu0 0
  %1032 = vmatprep.subr.bf16.mxu0 0
  %1033 = vmatpush1.bf16.msra.mxu0 0
  %1034 = vmatprep.subr.bf16.mxu0 0
  %1035 = vmatpush1.bf16.msra.mxu0 0
  %1036 = vmatprep.subr.bf16.mxu0 0
  %1037 = vmatpush1.bf16.msra.mxu0 0
  %1038 = vmatprep.subr.bf16.mxu0 0
  %1039 = vmatpush1.bf16.msra.mxu0 0
  %1040 = vmatprep.subr.bf16.mxu0 0
  %1041 = vmatpush1.bf16.msra.mxu0 0
  %1042 = vmatprep.mubr.bf16.mxu0 0
  %1043 = vmatmul.mubr.bf16.gmra.mrb[0].mxu0 %v993
  %v1044 = vpop.f32.mrb[0].mxu0
  %v1045 = vadd.f32 0.0, %v1044
  %v1046 = vpop.f32.mrb[0].mxu0
  %v1047 = vadd.f32 0.0, %v1046
  %v1048 = vpop.f32.mrb[0].mxu0
  %v1049 = vpop.f32.mrb[0].mxu0
  %1050 = vdwg.mxu0
  %1051 = vmatprep.subr.bf16.mxu0 %v338
  %1052 = vmatpush1.bf16.msra.mxu0 %v337
  %1053 = vmatprep.subr.bf16.mxu0 %v342
  %1054 = vmatpush1.bf16.msra.mxu0 %v341
  %1055 = vmatprep.subr.bf16.mxu0 %v346
  %1056 = vmatpush1.bf16.msra.mxu0 %v345
  %1057 = vmatprep.subr.bf16.mxu0 %v350
  %1058 = vmatpush1.bf16.msra.mxu0 %v349
  %1059 = vmatprep.subr.bf16.mxu0 %v354
  %1060 = vmatpush1.bf16.msra.mxu0 %v353
  %1061 = vmatprep.subr.bf16.mxu0 %v358
  %1062 = vmatpush1.bf16.msra.mxu0 %v357
  %1063 = vmatprep.subr.bf16.mxu0 %v362
  %1064 = vmatpush1.bf16.msra.mxu0 %v361
  %1065 = vmatprep.subr.bf16.mxu0 %v366
  %1066 = vmatpush1.bf16.msra.mxu0 %v365
  %1067 = vmatprep.subr.bf16.mxu0 0
  %1068 = vmatpush1.bf16.msra.mxu0 0
  %1069 = vmatprep.subr.bf16.mxu0 0
  %1070 = vmatpush1.bf16.msra.mxu0 0
  %1071 = vmatprep.subr.bf16.mxu0 0
  %1072 = vmatpush1.bf16.msra.mxu0 0
  %1073 = vmatprep.subr.bf16.mxu0 0
  %1074 = vmatpush1.bf16.msra.mxu0 0
  %1075 = vmatprep.subr.bf16.mxu0 0
  %1076 = vmatpush1.bf16.msra.mxu0 0
  %1077 = vmatprep.subr.bf16.mxu0 0
  %1078 = vmatpush1.bf16.msra.mxu0 0
  %1079 = vmatprep.subr.bf16.mxu0 0
  %1080 = vmatpush1.bf16.msra.mxu0 0
  %1081 = vmatprep.subr.bf16.mxu0 0
  %1082 = vmatpush1.bf16.msra.mxu0 0
  %1083 = vmatprep.mubr.bf16.mxu0 0
  %1084 = vmatmul.mubr.bf16.gmra.mrb[0].mxu0 %v993
  %v1085 = vpop.f32.mrb[0].mxu0
  %v1086 = vadd.f32 0.0, %v1085
  %v1087 = vpop.f32.mrb[0].mxu0
  %v1088 = vadd.f32 0.0, %v1087
  %v1089 = vpop.f32.mrb[0].mxu0
  %v1090 = vpop.f32.mrb[0].mxu0
  %1091 = vdwg.mxu0
  %v1092 = vadd.f32 %v1006, %v1045
  %v1093 = vadd.f32 %v1007, %v1047
  %v1094 = vadd.f32 %v1008, %v1086
  %v1095 = vadd.f32 %v1009, %v1088
  %v1096 = vxor.u32 %v1092, 2147483648
  %v1097 = vmul.f32 %v1096, 1.442695
  %v1098 = vpow.pop %v1097
  %v1099 = vadd.f32 %v1098, 1.0
  %v1100 = vrcp.pop %v1099
  %v1101 = vmul.f32 1.0, %v1100
  %v1102 = vxor.u32 %v1093, 2147483648
  %v1103 = vmul.f32 %v1102, 1.442695
  %v1104 = vpow.pop %v1103
  %v1105 = vadd.f32 %v1104, 1.0
  %v1106 = vrcp.pop %v1105
  %v1107 = vmul.f32 1.0, %v1106
  %v1108 = vtanh.pop %v1094
  %v1109 = vxor.u32 %v1095, 2147483648
  %v1110 = vmul.f32 %v1109, 1.442695
  %v1111 = vpow.pop %v1110
  %v1112 = vadd.f32 %v1111, 1.0
  %v1113 = vrcp.pop %v1112
  %v1114 = vmul.f32 1.0, %v1113
  %v1115 = vmul.f32 %v1107, %v990
  %v1116 = vmul.f32 %v1101, %v1108
  %v1117 = vadd.f32 %v1115, %v1116
  %v1118 = vtanh.pop %v1117
  %v1119 = vmul.f32 %v1114, %v1118
  %v1120 = vpack.c.bf16 %v1119, %v1119
  %s1121 = scalar_lea.vmem %s4, 20
  %1122 = vst [vmem:[%s1121] sm:$0xf] %v1120
  %s1123 = sadd.s32 %s488, 5
  %p1124 = scmp.eq.s32.totalorder %s1123, 7
  // Predicated region
  $region75: #{forward.2} parent=0 // pred_check
    %p1125 = pneg %p1124
  $region76: #{forward.2} parent=0 // pred_check_branch
    %1127 = sbr.rel (%p1125) target = $region78
  $region77: #{forward.2} parent=0 // pred_region
    %1128 = vst [vmem:[%s5] sm:$0xff] %v1119
    %1129 = vst [vmem:[%s6] sm:$0xff] %v1117
  $region78: #{forward.2} parent=0 // pred_fallthru
    _
  %s1130 = scalar_lea.vmem %s0, 96
  %v1131 = vld [vmem:[%s1130] sm:$0xff]
  %v1132 = vld [vmem:[%s1130 + $0x8] sm:$0xff]
  %v1133 = vunpack.c.l.bf16 %v1131
  %v1134 = vunpack.c.h.bf16 %v1131
  %v1135 = vunpack.c.l.bf16 %v1132
  %v1136 = vunpack.c.h.bf16 %v1132
  %1137 = vmatprep.subr.bf16.mxu0 %v336
  %1138 = vmatpush1.bf16.msra.mxu0 %v335
  %1139 = vmatprep.subr.bf16.mxu0 %v340
  %1140 = vmatpush1.bf16.msra.mxu0 %v339
  %1141 = vmatprep.subr.bf16.mxu0 %v344
  %1142 = vmatpush1.bf16.msra.mxu0 %v343
  %1143 = vmatprep.subr.bf16.mxu0 %v348
  %1144 = vmatpush1.bf16.msra.mxu0 %v347
  %1145 = vmatprep.subr.bf16.mxu0 %v352
  %1146 = vmatpush1.bf16.msra.mxu0 %v351
  %1147 = vmatprep.subr.bf16.mxu0 %v356
  %1148 = vmatpush1.bf16.msra.mxu0 %v355
  %1149 = vmatprep.subr.bf16.mxu0 %v360
  %1150 = vmatpush1.bf16.msra.mxu0 %v359
  %1151 = vmatprep.subr.bf16.mxu0 %v364
  %1152 = vmatpush1.bf16.msra.mxu0 %v363
  %1153 = vmatprep.subr.bf16.mxu0 0
  %1154 = vmatpush1.bf16.msra.mxu0 0
  %1155 = vmatprep.subr.bf16.mxu0 0
  %1156 = vmatpush1.bf16.msra.mxu0 0
  %1157 = vmatprep.subr.bf16.mxu0 0
  %1158 = vmatpush1.bf16.msra.mxu0 0
  %1159 = vmatprep.subr.bf16.mxu0 0
  %1160 = vmatpush1.bf16.msra.mxu0 0
  %1161 = vmatprep.subr.bf16.mxu0 0
  %1162 = vmatpush1.bf16.msra.mxu0 0
  %1163 = vmatprep.subr.bf16.mxu0 0
  %1164 = vmatpush1.bf16.msra.mxu0 0
  %1165 = vmatprep.subr.bf16.mxu0 0
  %1166 = vmatpush1.bf16.msra.mxu0 0
  %1167 = vmatprep.subr.bf16.mxu0 0
  %1168 = vmatpush1.bf16.msra.mxu0 0
  %1169 = vmatprep.mubr.bf16.mxu0 0
  %1170 = vmatmul.mubr.bf16.gmra.mrb[0].mxu0 %v1120
  %v1171 = vpop.f32.mrb[0].mxu0
  %v1172 = vadd.f32 0.0, %v1171
  %v1173 = vpop.f32.mrb[0].mxu0
  %v1174 = vadd.f32 0.0, %v1173
  %v1175 = vpop.f32.mrb[0].mxu0
  %v1176 = vpop.f32.mrb[0].mxu0
  %1177 = vdwg.mxu0
  %1178 = vmatprep.subr.bf16.mxu0 %v338
  %1179 = vmatpush1.bf16.msra.mxu0 %v337
  %1180 = vmatprep.subr.bf16.mxu0 %v342
  %1181 = vmatpush1.bf16.msra.mxu0 %v341
  %1182 = vmatprep.subr.bf16.mxu0 %v346
  %1183 = vmatpush1.bf16.msra.mxu0 %v345
  %1184 = vmatprep.subr.bf16.mxu0 %v350
  %1185 = vmatpush1.bf16.msra.mxu0 %v349
  %1186 = vmatprep.subr.bf16.mxu0 %v354
  %1187 = vmatpush1.bf16.msra.mxu0 %v353
  %1188 = vmatprep.subr.bf16.mxu0 %v358
  %1189 = vmatpush1.bf16.msra.mxu0 %v357
  %1190 = vmatprep.subr.bf16.mxu0 %v362
  %1191 = vmatpush1.bf16.msra.mxu0 %v361
  %1192 = vmatprep.subr.bf16.mxu0 %v366
  %1193 = vmatpush1.bf16.msra.mxu0 %v365
  %1194 = vmatprep.subr.bf16.mxu0 0
  %1195 = vmatpush1.bf16.msra.mxu0 0
  %1196 = vmatprep.subr.bf16.mxu0 0
  %1197 = vmatpush1.bf16.msra.mxu0 0
  %1198 = vmatprep.subr.bf16.mxu0 0
  %1199 = vmatpush1.bf16.msra.mxu0 0
  %1200 = vmatprep.subr.bf16.mxu0 0
  %1201 = vmatpush1.bf16.msra.mxu0 0
  %1202 = vmatprep.subr.bf16.mxu0 0
  %1203 = vmatpush1.bf16.msra.mxu0 0
  %1204 = vmatprep.subr.bf16.mxu0 0
  %1205 = vmatpush1.bf16.msra.mxu0 0
  %1206 = vmatprep.subr.bf16.mxu0 0
  %1207 = vmatpush1.bf16.msra.mxu0 0
  %1208 = vmatprep.subr.bf16.mxu0 0
  %1209 = vmatpush1.bf16.msra.mxu0 0
  %1210 = vmatprep.mubr.bf16.mxu0 0
  %1211 = vmatmul.mubr.bf16.gmra.mrb[0].mxu0 %v1120
  %v1212 = vpop.f32.mrb[0].mxu0
  %v1213 = vadd.f32 0.0, %v1212
  %v1214 = vpop.f32.mrb[0].mxu0
  %v1215 = vadd.f32 0.0, %v1214
  %v1216 = vpop.f32.mrb[0].mxu0
  %v1217 = vpop.f32.mrb[0].mxu0
  %1218 = vdwg.mxu0
  %v1219 = vadd.f32 %v1133, %v1172
  %v1220 = vadd.f32 %v1134, %v1174
  %v1221 = vadd.f32 %v1135, %v1213
  %v1222 = vadd.f32 %v1136, %v1215
  %v1223 = vxor.u32 %v1219, 2147483648
  %v1224 = vmul.f32 %v1223, 1.442695
  %v1225 = vpow.pop %v1224
  %v1226 = vadd.f32 %v1225, 1.0
  %v1227 = vrcp.pop %v1226
  %v1228 = vmul.f32 1.0, %v1227
  %v1229 = vxor.u32 %v1220, 2147483648
  %v1230 = vmul.f32 %v1229, 1.442695
  %v1231 = vpow.pop %v1230
  %v1232 = vadd.f32 %v1231, 1.0
  %v1233 = vrcp.pop %v1232
  %v1234 = vmul.f32 1.0, %v1233
  %v1235 = vtanh.pop %v1221
  %v1236 = vxor.u32 %v1222, 2147483648
  %v1237 = vmul.f32 %v1236, 1.442695
  %v1238 = vpow.pop %v1237
  %v1239 = vadd.f32 %v1238, 1.0
  %v1240 = vrcp.pop %v1239
  %v1241 = vmul.f32 1.0, %v1240
  %v1242 = vmul.f32 %v1234, %v1117
  %v1243 = vmul.f32 %v1228, %v1235
  %v1244 = vadd.f32 %v1242, %v1243
  %v1245 = vtanh.pop %v1244
  %v1246 = vmul.f32 %v1241, %v1245
  %v1247 = vpack.c.bf16 %v1246, %v1246
  %s1248 = scalar_lea.vmem %s4, 24
  %1249 = vst [vmem:[%s1248] sm:$0xf] %v1247
  %s1250 = sadd.s32 %s488, 6
  %p1251 = scmp.eq.s32.totalorder %s1250, 7
  // Predicated region
  $region79: #{forward.2} parent=0 // pred_check
    %p1252 = pneg %p1251
  $region80: #{forward.2} parent=0 // pred_check_branch
    %1254 = sbr.rel (%p1252) target = $region82
  $region81: #{forward.2} parent=0 // pred_region
    %1255 = vst [vmem:[%s5] sm:$0xff] %v1246
    %1256 = vst [vmem:[%s6] sm:$0xff] %v1244
  $region82: #{forward.2} parent=0 // pred_fallthru
    _
  %s1257 = scalar_lea.vmem %s0, 112
  %v1258 = vld [vmem:[%s1257] sm:$0xff]
  %v1259 = vld [vmem:[%s1257 + $0x8] sm:$0xff]
  %v1260 = vunpack.c.l.bf16 %v1258
  %v1261 = vunpack.c.h.bf16 %v1258
  %v1262 = vunpack.c.l.bf16 %v1259
  %v1263 = vunpack.c.h.bf16 %v1259
  %1264 = vmatprep.subr.bf16.mxu0 %v336
  %1265 = vmatpush1.bf16.msra.mxu0 %v335
  %1266 = vmatprep.subr.bf16.mxu0 %v340
  %1267 = vmatpush1.bf16.msra.mxu0 %v339
  %1268 = vmatprep.subr.bf16.mxu0 %v344
  %1269 = vmatpush1.bf16.msra.mxu0 %v343
  %1270 = vmatprep.subr.bf16.mxu0 %v348
  %1271 = vmatpush1.bf16.msra.mxu0 %v347
  %1272 = vmatprep.subr.bf16.mxu0 %v352
  %1273 = vmatpush1.bf16.msra.mxu0 %v351
  %1274 = vmatprep.subr.bf16.mxu0 %v356
  %1275 = vmatpush1.bf16.msra.mxu0 %v355
  %1276 = vmatprep.subr.bf16.mxu0 %v360
  %1277 = vmatpush1.bf16.msra.mxu0 %v359
  %1278 = vmatprep.subr.bf16.mxu0 %v364
  %1279 = vmatpush1.bf16.msra.mxu0 %v363
  %1280 = vmatprep.subr.bf16.mxu0 0
  %1281 = vmatpush1.bf16.msra.mxu0 0
  %1282 = vmatprep.subr.bf16.mxu0 0
  %1283 = vmatpush1.bf16.msra.mxu0 0
  %1284 = vmatprep.subr.bf16.mxu0 0
  %1285 = vmatpush1.bf16.msra.mxu0 0
  %1286 = vmatprep.subr.bf16.mxu0 0
  %1287 = vmatpush1.bf16.msra.mxu0 0
  %1288 = vmatprep.subr.bf16.mxu0 0
  %1289 = vmatpush1.bf16.msra.mxu0 0
  %1290 = vmatprep.subr.bf16.mxu0 0
  %1291 = vmatpush1.bf16.msra.mxu0 0
  %1292 = vmatprep.subr.bf16.mxu0 0
  %1293 = vmatpush1.bf16.msra.mxu0 0
  %1294 = vmatprep.subr.bf16.mxu0 0
  %1295 = vmatpush1.bf16.msra.mxu0 0
  %1296 = vmatprep.mubr.bf16.mxu0 0
  %1297 = vmatmul.mubr.bf16.gmra.mrb[0].mxu0 %v1247
  %v1298 = vpop.f32.mrb[0].mxu0
  %v1299 = vadd.f32 0.0, %v1298
  %v1300 = vpop.f32.mrb[0].mxu0
  %v1301 = vadd.f32 0.0, %v1300
  %v1302 = vpop.f32.mrb[0].mxu0
  %v1303 = vpop.f32.mrb[0].mxu0
  %1304 = vdwg.mxu0
  %1305 = vmatprep.subr.bf16.mxu0 %v338
  %1306 = vmatpush1.bf16.msra.mxu0 %v337
  %1307 = vmatprep.subr.bf16.mxu0 %v342
  %1308 = vmatpush1.bf16.msra.mxu0 %v341
  %1309 = vmatprep.subr.bf16.mxu0 %v346
  %1310 = vmatpush1.bf16.msra.mxu0 %v345
  %1311 = vmatprep.subr.bf16.mxu0 %v350
  %1312 = vmatpush1.bf16.msra.mxu0 %v349
  %1313 = vmatprep.subr.bf16.mxu0 %v354
  %1314 = vmatpush1.bf16.msra.mxu0 %v353
  %1315 = vmatprep.subr.bf16.mxu0 %v358
  %1316 = vmatpush1.bf16.msra.mxu0 %v357
  %1317 = vmatprep.subr.bf16.mxu0 %v362
  %1318 = vmatpush1.bf16.msra.mxu0 %v361
  %1319 = vmatprep.subr.bf16.mxu0 %v366
  %1320 = vmatpush1.bf16.msra.mxu0 %v365
  %1321 = vmatprep.subr.bf16.mxu0 0
  %1322 = vmatpush1.bf16.msra.mxu0 0
  %1323 = vmatprep.subr.bf16.mxu0 0
  %1324 = vmatpush1.bf16.msra.mxu0 0
  %1325 = vmatprep.subr.bf16.mxu0 0
  %1326 = vmatpush1.bf16.msra.mxu0 0
  %1327 = vmatprep.subr.bf16.mxu0 0
  %1328 = vmatpush1.bf16.msra.mxu0 0
  %1329 = vmatprep.subr.bf16.mxu0 0
  %1330 = vmatpush1.bf16.msra.mxu0 0
  %1331 = vmatprep.subr.bf16.mxu0 0
  %1332 = vmatpush1.bf16.msra.mxu0 0
  %1333 = vmatprep.subr.bf16.mxu0 0
  %1334 = vmatpush1.bf16.msra.mxu0 0
  %1335 = vmatprep.subr.bf16.mxu0 0
  %1336 = vmatpush1.bf16.msra.mxu0 0
  %1337 = vmatprep.mubr.bf16.mxu0 0
  %1338 = vmatmul.mubr.bf16.gmra.mrb[0].mxu0 %v1247
  %v1339 = vpop.f32.mrb[0].mxu0
  %v1340 = vadd.f32 0.0, %v1339
  %v1341 = vpop.f32.mrb[0].mxu0
  %v1342 = vadd.f32 0.0, %v1341
  %v1343 = vpop.f32.mrb[0].mxu0
  %v1344 = vpop.f32.mrb[0].mxu0
  %1345 = vdwg.mxu0
  %v1346 = vadd.f32 %v1260, %v1299
  %v1347 = vadd.f32 %v1261, %v1301
  %v1348 = vadd.f32 %v1262, %v1340
  %v1349 = vadd.f32 %v1263, %v1342
  %v1350 = vxor.u32 %v1346, 2147483648
  %v1351 = vmul.f32 %v1350, 1.442695
  %v1352 = vpow.pop %v1351
  %v1353 = vadd.f32 %v1352, 1.0
  %v1354 = vrcp.pop %v1353
  %v1355 = vmul.f32 1.0, %v1354
  %v1356 = vxor.u32 %v1347, 2147483648
  %v1357 = vmul.f32 %v1356, 1.442695
  %v1358 = vpow.pop %v1357
  %v1359 = vadd.f32 %v1358, 1.0
  %v1360 = vrcp.pop %v1359
  %v1361 = vmul.f32 1.0, %v1360
  %v1362 = vtanh.pop %v1348
  %v1363 = vxor.u32 %v1349, 2147483648
  %v1364 = vmul.f32 %v1363, 1.442695
  %v1365 = vpow.pop %v1364
  %v1366 = vadd.f32 %v1365, 1.0
  %v1367 = vrcp.pop %v1366
  %v1368 = vmul.f32 1.0, %v1367
  %v1369 = vmul.f32 %v1361, %v1244
  %v1370 = vmul.f32 %v1355, %v1362
  %v1371 = vadd.f32 %v1369, %v1370
  %v1372 = vtanh.pop %v1371
  %v1373 = vmul.f32 %v1368, %v1372
  %v1374 = vpack.c.bf16 %v1373, %v1373
  %s1375 = scalar_lea.vmem %s4, 28
  %1376 = vst [vmem:[%s1375] sm:$0xf] %v1374
  %s1377 = sadd.s32 %s488, 7
  %p1378 = scmp.eq.s32.totalorder %s1377, 7
  // Predicated region
  $region83: #{forward.2} parent=0 // pred_check
    %p1379 = pneg %p1378
  $region84: #{forward.2} parent=0 // pred_check_branch
    %1381 = sbr.rel (%p1379) target = $region86
  $region85: #{forward.2} parent=0 // pred_region
    %1382 = vst [vmem:[%s5] sm:$0xff] %v1373
    %1383 = vst [vmem:[%s6] sm:$0xff] %v1371
  $region86: #{forward.2} parent=0 // pred_fallthru
    _
  %1384 = vst [vmem:[#allocation3] sm:$0xff] %v1373
  %1385 = vst [vmem:[#allocation4] sm:$0xff] %v1371
  // Predicated region
  $region87: #{forward.2} parent=0 // pred_check
    _
  $region88: #{forward.2} parent=0 // pred_check_branch
    %1387 = sbr.rel (0) target = $region90
  $region89: #{forward.2} parent=0 // pred_region
    _
  $region90: #{forward.2} parent=0 // pred_fallthru
    _
  // Predicated region
  $region91: #{forward.2} parent=0 // pred_check
    _
  $region92: #{forward.2} parent=0 // pred_check_branch
    %1389 = sbr.rel (0) target = $region94
  $region93: #{forward.2} parent=0 // pred_region
    _
  $region94: #{forward.2} parent=0 // pred_fallthru
    _
  // Predicated region
  $region95: #{forward.2} parent=0 // pred_check
    _
  $region96: #{forward.2} parent=0 // pred_check_branch
    %1391 = sbr.rel (0) target = $region98
  $region97: #{forward.2} parent=0 // pred_region
    _
  $region98: #{forward.2} parent=0 // pred_fallthru
    _
  // Predicated region
  $region99: #{forward.2} parent=0 // pred_check
    _
  $region100: #{forward.2} parent=0 // pred_check_branch
    %1393 = sbr.rel (0) target = $region102
  $region101: #{forward.2} parent=0 // pred_region
    _
  $region102: #{forward.2} parent=0 // pred_fallthru
    _
  // Predicated region
  $region103: #{forward.2} parent=0 // pred_check
    _
  $region104: #{forward.2} parent=0 // pred_check_branch
    %1395 = sbr.rel (0) target = $region106
  $region105: #{forward.2} parent=0 // pred_region
    _
  $region106: #{forward.2} parent=0 // pred_fallthru
    _
  // Predicated region
  $region107: #{forward.2} parent=0 // pred_check
    _
  $region108: #{forward.2} parent=0 // pred_check_branch
    %1397 = sbr.rel (0) target = $region110
  $region109: #{forward.2} parent=0 // pred_region
    _
  $region110: #{forward.2} parent=0 // pred_fallthru
    _
  %1398 = vsyncmov [#allocation5]
  %s1399 = vpop.sfrf %1398
  %p1400 = scmp.eq.s32.totalorder %s1399, 0
  %p1401 = pneg %p1400
  %1403 = shalt.err (%p1401)

</llo_original>
